<compile_context>
chip_gen: v7x
topology: tpu7x:2x2x1
jax: 0.10.0
libtpu: 0.0.40
codegen_flags: <defaults>
</compile_context>

<pallas_src>
import functools

import numpy as np
import jax
import jax.numpy as jnp
from jax.experimental import pallas as pl
from jax.experimental.pallas import tpu as pltpu

_BN_EPS = 1e-5


# --------------------------- generation-aware knobs ---------------------------

def _vmem_limit_bytes():
    """~75% of physical VMEM (96 MiB on v5e/v6e, 48 MiB on v7x), capped at 100 MiB."""
    try:
        cap = int(pltpu.get_tpu_info().vmem_capacity_bytes)
    except Exception:  # not queryable -> conservative default
        cap = 128 * 1024 * 1024
    return int(max(32 * 1024 * 1024, min(cap * 3 // 4, 100 * 1024 * 1024)))


def _cparams(*sem):
    return pltpu.CompilerParams(dimension_semantics=sem,
                                vmem_limit_bytes=_vmem_limit_bytes())


def _pick_lane_tile(hw, bytes_per_lane, target_bytes=4 << 20):
    """Largest multiple-of-128 divisor of hw whose block stays under target (else hw)."""
    if hw * bytes_per_lane <= target_bytes:
        return hw
    best = hw
    t = 128
    while t <= hw:
        if hw % t == 0 and t * bytes_per_lane <= target_bytes:
            best = t
        t += 128
    return best


# ------------------------------ Pallas kernels -------------------------------

def _conv1x1_stats_kernel(x_ref, w_ref, y_ref, st_ref):
    """y = w @ x over one (C, TL) lane tile; per-channel sum / sumsq partials (f32)."""
    y = jnp.dot(w_ref[...], x_ref[0].astype(jnp.bfloat16),
                preferred_element_type=jnp.float32)          # (Cout, TL) f32
    y_ref[0] = y.astype(y_ref.dtype)                          # bf16 activation store
    st_ref[0, 0, :, 0:1] = jnp.sum(y, axis=1, keepdims=True)
    st_ref[0, 0, :, 1:2] = jnp.sum(y * y, axis=1, keepdims=True)


def _bn_relu_conv3x3_stats_kernel(y1_ref, w_ref, sc_ref, sh_ref, y2_ref, st_ref,
                                  zp_ref, slab_ref, *, H, W, Cint, Cpad):
    """Per image: BN1+ReLU on the raw conv1 output, zero halo filled in VMEM (no HBM
    jnp.pad), in-VMEM im2col slab (K = 9*Cpad) and a single fat MXU matmul for the
    3x3 convolution with padding=1."""
    # BN1 apply + ReLU in f32; cast to bf16 exactly once (not per tap).
    z = jnp.maximum(y1_ref[0].astype(jnp.float32) * sc_ref[...] + sh_ref[...], 0.0)
    z = z.astype(jnp.bfloat16).reshape(Cint, H, W)

    # Zero-filled halo in a VMEM scratch (replaces the wrapper-side jnp.pad round trip).
    zp_ref[...] = jnp.zeros(zp_ref.shape, zp_ref.dtype)
    zp_ref[:, 1:H + 1, 1:W + 1] = z

    # Build the im2col slab: 9 shifted windows stacked along K at 16-sublane-aligned
    # offsets.  Padded in-channel rows stay zero and the matching packed-weight columns
    # are zero, so they contribute nothing.
    slab_ref[...] = jnp.zeros(slab_ref.shape, slab_ref.dtype)
    for di in range(3):
        for dj in range(3):
            t = di * 3 + dj
            tap = zp_ref[:, di:di + H, dj:dj + W].reshape(Cint, H * W)
            slab_ref[pl.ds(t * Cpad, Cint), :] = tap

    # One fat matmul: (Cint, 9*Cpad) x (9*Cpad, H*W) -> (Cint, H*W), f32 accumulation.
    y2 = jnp.dot(w_ref[...], slab_ref[...], preferred_element_type=jnp.float32)
    y2_ref[0] = y2.astype(y2_ref.dtype)
    st_ref[0, 0, :, 0:1] = jnp.sum(y2, axis=1, keepdims=True)
    st_ref[0, 0, :, 1:2] = jnp.sum(y2 * y2, axis=1, keepdims=True)


def _bn_relu_conv1x1_stats_kernel(y2_ref, w_ref, sc_ref, sh_ref, y3_ref, st_ref):
    """z = ReLU(BN2(y2)); y3 = w3 @ z; per-channel sum / sumsq partials."""
    z = jnp.maximum(y2_ref[0].astype(jnp.float32) * sc_ref[...] + sh_ref[...], 0.0)
    y = jnp.dot(w_ref[...], z.astype(jnp.bfloat16), preferred_element_type=jnp.float32)
    y3_ref[0] = y.astype(y3_ref.dtype)
    st_ref[0, 0, :, 0:1] = jnp.sum(y, axis=1, keepdims=True)
    st_ref[0, 0, :, 1:2] = jnp.sum(y * y, axis=1, keepdims=True)


def _bn_relu_add_relu_kernel(y3_ref, x_ref, sc_ref, sh_ref, o_ref):
    """out = ReLU( ReLU(BN3(y3)) + x ).  (Dropout2d p=0 is identity.)"""
    ext = jnp.maximum(y3_ref[0].astype(jnp.float32) * sc_ref[...] + sh_ref[...], 0.0)
    o_ref[0] = jnp.maximum(ext + x_ref[0], 0.0)


# ------------------------------ helpers ---------------------------------------

def _finalize_bn(st, gamma, beta, count):
    """Fold per-tile (sum, sumsq) partials into BN scale/shift (training-mode stats)."""
    st = st.reshape(-1, st.shape[-2], 2)
    s = jnp.sum(st[..., 0], axis=0)
    ss = jnp.sum(st[..., 1], axis=0)
    mean = s / count
    var = jnp.maximum(ss / count - mean * mean, 0.0)
    scale = gamma * jax.lax.rsqrt(var + _BN_EPS)
    shift = beta - mean * scale
    return scale.reshape(-1, 1), shift.reshape(-1, 1)   # (C, 1) sublane-broadcast shape


# ------------------------------ forward ----------------------------------------

@jax.jit
def regular_bottleneck_forward(x_nchw, params):
    N, C, H, W = x_nchw.shape
    Cint = params["w1"].shape[0]
    HW = H * W
    M = N * HW

    # NCHW kept end-to-end: per-image (C, H*W) matrices, spatial on the lane axis.
    x2 = x_nchw.reshape(N, C, HW)

    TL = _pick_lane_tile(HW, 6 * (C + Cint))
    nL = HW // TL

    # PyTorch OIHW weights -> matmul layouts (bf16 operands, f32 accumulation).
    w1m = params["w1"].reshape(Cint, C).astype(jnp.bfloat16)
    w3m = params["w3"].reshape(C, Cint).astype(jnp.bfloat16)
    # conv2 taps packed along K; per-tap in-channel block padded to a multiple of 16
    # sublanes so the in-kernel slab stores stay tile-row aligned.
    Cpad = ((Cint + 15) // 16) * 16
    w2t = jnp.transpose(params["w2"], (2, 3, 0, 1)).reshape(9, Cint, Cint)  # (tap, out, in)
    w2p = jnp.zeros((9, Cint, Cpad), jnp.float32).at[:, :, :Cint].set(w2t)
    w2m = jnp.transpose(w2p, (1, 0, 2)).reshape(Cint, 9 * Cpad).astype(jnp.bfloat16)

    # ---- stage 1: conv1 (1x1) + BN1 partial stats ------------------------------
    ce1 = pl.CostEstimate(flops=2 * M * C * Cint, transcendentals=0,
                          bytes_accessed=M * C * 4 + M * Cint * 2)
    y1, st1 = pl.pallas_call(
        _conv1x1_stats_kernel,
        grid=(N, nL),
        in_specs=[pl.BlockSpec((1, C, TL), lambda n, l: (n, 0, l)),
                  pl.BlockSpec((Cint, C), lambda n, l: (0, 0))],
        out_specs=(pl.BlockSpec((1, Cint, TL), lambda n, l: (n, 0, l)),
                   pl.BlockSpec((1, 1, Cint, 2), lambda n, l: (n, l, 0, 0))),
        out_shape=(jax.ShapeDtypeStruct((N, Cint, HW), jnp.bfloat16),
                   jax.ShapeDtypeStruct((N, nL, Cint, 2), jnp.float32)),
        compiler_params=_cparams("parallel", "parallel"),
        cost_estimate=ce1,
    )(x2, w1m)
    sc1, sh1 = _finalize_bn(st1, params["g1"], params["b1"], M)

    # ---- stage 2: BN1+ReLU apply, in-VMEM halo + im2col slab, 3x3 conv, BN2 stats -
    ce2 = pl.CostEstimate(flops=2 * M * 9 * Cint * Cint, transcendentals=0,
                          bytes_accessed=2 * M * Cint * 2)
    kern2 = functools.partial(_bn_relu_conv3x3_stats_kernel,
                              H=H, W=W, Cint=Cint, Cpad=Cpad)
    y2, st2 = pl.pallas_call(
        kern2,
        grid=(N,),
        in_specs=[pl.BlockSpec((1, Cint, HW), lambda n: (n, 0, 0)),
                  pl.BlockSpec((Cint, 9 * Cpad), lambda n: (0, 0)),
                  pl.BlockSpec((Cint, 1), lambda n: (0, 0)),
                  pl.BlockSpec((Cint, 1), lambda n: (0, 0))],
        out_specs=(pl.BlockSpec((1, Cint, HW), lambda n: (n, 0, 0)),
                   pl.BlockSpec((1, 1, Cint, 2), lambda n: (n, 0, 0, 0))),
        out_shape=(jax.ShapeDtypeStruct((N, Cint, HW), jnp.bfloat16),
                   jax.ShapeDtypeStruct((N, 1, Cint, 2), jnp.float32)),
        scratch_shapes=[pltpu.VMEM((Cint, H + 2, W + 2), jnp.bfloat16),
                        pltpu.VMEM((9 * Cpad, HW), jnp.bfloat16)],
        compiler_params=_cparams("parallel"),
        cost_estimate=ce2,
    )(y1, w2m, sc1, sh1)
    sc2, sh2 = _finalize_bn(st2, params["g2"], params["b2"], M)

    # ---- stage 3: BN2+ReLU apply, conv3 (1x1), BN3 partial stats ------------------
    ce3 = pl.CostEstimate(flops=2 * M * Cint * C, transcendentals=0,
                          bytes_accessed=M * Cint * 2 + M * C * 2)
    y3, st3 = pl.pallas_call(
        _bn_relu_conv1x1_stats_kernel,
        grid=(N, nL),
        in_specs=[pl.BlockSpec((1, Cint, TL), lambda n, l: (n, 0, l)),
                  pl.BlockSpec((C, Cint), lambda n, l: (0, 0)),
                  pl.BlockSpec((Cint, 1), lambda n, l: (0, 0)),
                  pl.BlockSpec((Cint, 1), lambda n, l: (0, 0))],
        out_specs=(pl.BlockSpec((1, C, TL), lambda n, l: (n, 0, l)),
                   pl.BlockSpec((1, 1, C, 2), lambda n, l: (n, l, 0, 0))),
        out_shape=(jax.ShapeDtypeStruct((N, C, HW), jnp.bfloat16),
                   jax.ShapeDtypeStruct((N, nL, C, 2), jnp.float32)),
        compiler_params=_cparams("parallel", "parallel"),
        cost_estimate=ce3,
    )(y2, w3m, sc2, sh2)
    sc3, sh3 = _finalize_bn(st3, params["g3"], params["b3"], M)

    # ---- stage 4: BN3+ReLU apply, Dropout(p=0)=identity, residual add, final ReLU --
    ce4 = pl.CostEstimate(flops=4 * M * C, transcendentals=0,
                          bytes_accessed=M * C * (4 + 2 + 4))
    out2 = pl.pallas_call(
        _bn_relu_add_relu_kernel,
        grid=(N, nL),
        in_specs=[pl.BlockSpec((1, C, TL), lambda n, l: (n, 0, l)),
                  pl.BlockSpec((1, C, TL), lambda n, l: (n, 0, l)),
                  pl.BlockSpec((C, 1), lambda n, l: (0, 0)),
                  pl.BlockSpec((C, 1), lambda n, l: (0, 0))],
        out_specs=pl.BlockSpec((1, C, TL), lambda n, l: (n, 0, l)),
        out_shape=jax.ShapeDtypeStruct((N, C, HW), jnp.float32),
        compiler_params=_cparams("parallel", "parallel"),
        cost_estimate=ce4,
    )(y3, x2, sc3, sh3)

    return out2.reshape(N, C, H, W)


# ------------------------------ parameters -------------------------------------

def init_params(key, channels, internal_ratio=4):
    assert 1 < internal_ratio <= channels
    internal = channels // internal_ratio
    ks = jax.random.split(key, 9)
    return {
        "w1": 0.1 * jax.random.normal(ks[0], (internal, channels, 1, 1), jnp.float32),
        "g1": 1.0 + 0.1 * jax.random.normal(ks[1], (internal,), jnp.float32),
        "b1": 0.1 * jax.random.normal(ks[2], (internal,), jnp.float32),
        "w2": 0.1 * jax.random.normal(ks[3], (internal, internal, 3, 3), jnp.float32),
        "g2": 1.0 + 0.1 * jax.random.normal(ks[4], (internal,), jnp.float32),
        "b2": 0.1 * jax.random.normal(ks[5], (internal,), jnp.float32),
        "w3": 0.1 * jax.random.normal(ks[6], (channels, internal, 1, 1), jnp.float32),
        "g3": 1.0 + 0.1 * jax.random.normal(ks[7], (channels,), jnp.float32),
        "b3": 0.1 * jax.random.normal(ks[8], (channels,), jnp.float32),
    }


# ------------------------------ pure-JAX reference -----------------------------

def _ref_forward(x, params):
    def conv_bn_relu(inp, w, g, b, pad):
        y = jax.lax.conv_general_dilated(
            inp, w, (1, 1), pad,
            dimension_numbers=("NCHW", "OIHW", "NCHW"),
            precision=jax.lax.Precision.HIGHEST)
        mean = y.mean(axis=(0, 2, 3), keepdims=True)
        var = jnp.mean(jnp.square(y - mean), axis=(0, 2, 3), keepdims=True)
        yh = (y - mean) * jax.lax.rsqrt(var + _BN_EPS)
        return jnp.maximum(yh * g.reshape(1, -1, 1, 1) + b.reshape(1, -1, 1, 1), 0.0)

    ext = conv_bn_relu(x, params["w1"], params["g1"], params["b1"], "VALID")
    ext = conv_bn_relu(ext, params["w2"], params["g2"], params["b2"], [(1, 1), (1, 1)])
    ext = conv_bn_relu(ext, params["w3"], params["g3"], params["b3"], "VALID")
    return jnp.maximum(x + ext, 0.0)


# ------------------------------------ main --------------------------------------

if __name__ == "__main__":
    N, C, H, W = 2, 16, 16, 16          # internal_ratio=4 -> 4 internal channels

    key = jax.random.PRNGKey(0)
    kx, kp = jax.random.split(key)
    x = jax.random.normal(kx, (N, C, H, W), jnp.float32)
    params = init_params(kp, C, internal_ratio=4)

    out = regular_bottleneck_forward(x, params)
    out = jax.block_until_ready(out)

    ref = _ref_forward(x, params)
    assert out.shape == (N, C, H, W)
    np.testing.assert_allclose(np.asarray(out), np.asarray(ref),
                               atol=5e-2, rtol=5e-2)
    print("KERNEL_OK")
</pallas_src>

<mosaic_0001>
module attributes {stable_mosaic.version = 11 : i64} {
  func.func @_conv1x1_stats_kernel(%arg0: i32, %arg1: i32, %arg2: memref<1x16x256xf32, #tpu.memory_space<vmem>>, %arg3: memref<4x16xbf16, #tpu.memory_space<vmem>>, %arg4: memref<1x4x256xbf16, #tpu.memory_space<vmem>>, %arg5: memref<1x1x4x2xf32, #tpu.memory_space<vmem>>) attributes {dimension_semantics = [#tpu.dimension_semantics<parallel>, #tpu.dimension_semantics<parallel>], iteration_bounds = array<i64: 2, 1>, scalar_prefetch = 0 : i64, scratch_operands = 0 : i64, tpu.core_type = #tpu.core_type<tc>, window_params = [{transform_indices = @transform_0, window_bounds = array<i64: 1, 16, 256>}, {pipeline_mode = #tpu.pipeline_mode<synchronous>, transform_indices = @transform_1, window_bounds = array<i64: 4, 16>}, {transform_indices = @transform_2, window_bounds = array<i64: 1, 4, 256>}, {transform_indices = @transform_3, window_bounds = array<i64: 1, 1, 4, 2>}]} {
    %c0 = arith.constant 0 : index
    %c0_0 = arith.constant 0 : index
    %0 = vector.load %arg3[%c0, %c0_0] : memref<4x16xbf16, #tpu.memory_space<vmem>>, vector<4x16xbf16>
    %c0_1 = arith.constant 0 : index
    %c0_2 = arith.constant 0 : index
    %c0_3 = arith.constant 0 : index
    %1 = vector.load %arg2[%c0_1, %c0_2, %c0_3] : memref<1x16x256xf32, #tpu.memory_space<vmem>>, vector<1x16x256xf32>
    %2 = vector.shape_cast %1 : vector<1x16x256xf32> to vector<16x256xf32>
    %3 = arith.truncf %2 : vector<16x256xf32> to vector<16x256xbf16>
    %cst = arith.constant dense<0.000000e+00> : vector<4x256xf32>
    %4 = tpu.matmul %0, %3, %cst {dimension_numbers = #tpu.dot_dimension_numbers<[1], [0], [0], [1], [0, 0, 1, 1], [], []>} : vector<4x16xbf16>, vector<16x256xbf16>, vector<4x256xf32> -> vector<4x256xf32>
    %5 = arith.truncf %4 : vector<4x256xf32> to vector<4x256xbf16>
    %c0_4 = arith.constant 0 : index
    %c0_5 = arith.constant 0 : index
    %c0_6 = arith.constant 0 : index
    %6 = vector.load %arg4[%c0_4, %c0_5, %c0_6] : memref<1x4x256xbf16, #tpu.memory_space<vmem>>, vector<1x4x256xbf16>
    %7 = vector.shape_cast %6 : vector<1x4x256xbf16> to vector<4x256xbf16>
    %8 = vector.shape_cast %5 : vector<4x256xbf16> to vector<1x4x256xbf16>
    tpu.vector_store %arg4[%c0_4, %c0_5, %c0_6], %8 {strides = array<i32>} : memref<1x4x256xbf16, #tpu.memory_space<vmem>>, vector<1x4x256xbf16>,
    %cst_7 = arith.constant dense<0.000000e+00> : vector<4xf32>
    %9 = vector.multi_reduction <add>, %4, %cst_7 [1] : vector<4x256xf32> to vector<4xf32>
    %10 = vector.shape_cast %9 : vector<4xf32> to vector<4x1xf32>
    %c0_8 = arith.constant 0 : index
    %c0_9 = arith.constant 0 : index
    %c0_10 = arith.constant 0 : index
    %c0_11 = arith.constant 0 : index
    %11 = vector.load %arg5[%c0_8, %c0_9, %c0_10, %c0_11] : memref<1x1x4x2xf32, #tpu.memory_space<vmem>>, vector<1x1x4x1xf32>
    %12 = vector.shape_cast %11 : vector<1x1x4x1xf32> to vector<4x1xf32>
    %13 = vector.shape_cast %10 : vector<4x1xf32> to vector<1x1x4x1xf32>
    tpu.vector_store %arg5[%c0_8, %c0_9, %c0_10, %c0_11], %13 {strides = array<i32>} : memref<1x1x4x2xf32, #tpu.memory_space<vmem>>, vector<1x1x4x1xf32>,
    %14 = arith.mulf %4, %4 : vector<4x256xf32>
    %cst_12 = arith.constant dense<0.000000e+00> : vector<4xf32>
    %15 = vector.multi_reduction <add>, %14, %cst_12 [1] : vector<4x256xf32> to vector<4xf32>
    %16 = vector.shape_cast %15 : vector<4xf32> to vector<4x1xf32>
    %c0_13 = arith.constant 0 : index
    %c0_14 = arith.constant 0 : index
    %c0_15 = arith.constant 0 : index
    %c1 = arith.constant 1 : index
    %17 = vector.load %arg5[%c0_13, %c0_14, %c0_15, %c1] : memref<1x1x4x2xf32, #tpu.memory_space<vmem>>, vector<1x1x4x1xf32>
    %18 = vector.shape_cast %17 : vector<1x1x4x1xf32> to vector<4x1xf32>
    %19 = vector.shape_cast %16 : vector<4x1xf32> to vector<1x1x4x1xf32>
    tpu.vector_store %arg5[%c0_13, %c0_14, %c0_15, %c1], %19 {strides = array<i32>} : memref<1x1x4x2xf32, #tpu.memory_space<vmem>>, vector<1x1x4x1xf32>,
    return
  }
  func.func @transform_0(%arg0: i32, %arg1: i32) -> (i32, i32, i32) {
    %c0_i32 = arith.constant 0 : i32
    %c0_i32_0 = arith.constant 0 : i32
    return %arg0, %c0_i32, %arg1 : i32, i32, i32
  }
  func.func @transform_1(%arg0: i32, %arg1: i32) -> (i32, i32) {
    %c0_i32 = arith.constant 0 : i32
    %c0_i32_0 = arith.constant 0 : i32
    %c0_i32_1 = arith.constant 0 : i32
    return %c0_i32, %c0_i32_0 : i32, i32
  }
  func.func @transform_2(%arg0: i32, %arg1: i32) -> (i32, i32, i32) {
    %c0_i32 = arith.constant 0 : i32
    %c0_i32_0 = arith.constant 0 : i32
    return %arg0, %c0_i32, %arg1 : i32, i32, i32
  }
  func.func @transform_3(%arg0: i32, %arg1: i32) -> (i32, i32, i32, i32) {
    %c0_i32 = arith.constant 0 : i32
    %c0_i32_0 = arith.constant 0 : i32
    %c0_i32_1 = arith.constant 0 : i32
    return %arg0, %arg1, %c0_i32, %c0_i32_0 : i32, i32, i32, i32
  }
}

module attributes {stable_mosaic.version = 11 : i64} {
  func.func @_bn_relu_conv1x1_stats_kernel(%arg0: i32, %arg1: i32, %arg2: memref<1x4x256xbf16, #tpu.memory_space<vmem>>, %arg3: memref<16x4xbf16, #tpu.memory_space<vmem>>, %arg4: memref<4x1xf32, #tpu.memory_space<vmem>>, %arg5: memref<4x1xf32, #tpu.memory_space<vmem>>, %arg6: memref<1x16x256xbf16, #tpu.memory_space<vmem>>, %arg7: memref<1x1x16x2xf32, #tpu.memory_space<vmem>>) attributes {dimension_semantics = [#tpu.dimension_semantics<parallel>, #tpu.dimension_semantics<parallel>], iteration_bounds = array<i64: 2, 1>, scalar_prefetch = 0 : i64, scratch_operands = 0 : i64, tpu.core_type = #tpu.core_type<tc>, window_params = [{transform_indices = @transform_0, window_bounds = array<i64: 1, 4, 256>}, {pipeline_mode = #tpu.pipeline_mode<synchronous>, transform_indices = @transform_1, window_bounds = array<i64: 16, 4>}, {pipeline_mode = #tpu.pipeline_mode<synchronous>, transform_indices = @transform_2, window_bounds = array<i64: 4, 1>}, {pipeline_mode = #tpu.pipeline_mode<synchronous>, transform_indices = @transform_3, window_bounds = array<i64: 4, 1>}, {transform_indices = @transform_4, window_bounds = array<i64: 1, 16, 256>}, {transform_indices = @transform_5, window_bounds = array<i64: 1, 1, 16, 2>}]} {
    %c0 = arith.constant 0 : index
    %c0_0 = arith.constant 0 : index
    %c0_1 = arith.constant 0 : index
    %0 = vector.load %arg2[%c0, %c0_0, %c0_1] : memref<1x4x256xbf16, #tpu.memory_space<vmem>>, vector<1x4x256xbf16>
    %1 = vector.shape_cast %0 : vector<1x4x256xbf16> to vector<4x256xbf16>
    %2 = arith.extf %1 : vector<4x256xbf16> to vector<4x256xf32>
    %c0_2 = arith.constant 0 : index
    %c0_3 = arith.constant 0 : index
    %3 = vector.load %arg4[%c0_2, %c0_3] : memref<4x1xf32, #tpu.memory_space<vmem>>, vector<4x1xf32>
    %4 = vector.broadcast %3 : vector<4x1xf32> to vector<4x256xf32>
    %5 = arith.mulf %2, %4 : vector<4x256xf32>
    %c0_4 = arith.constant 0 : index
    %c0_5 = arith.constant 0 : index
    %6 = vector.load %arg5[%c0_4, %c0_5] : memref<4x1xf32, #tpu.memory_space<vmem>>, vector<4x1xf32>
    %7 = vector.broadcast %6 : vector<4x1xf32> to vector<4x256xf32>
    %8 = arith.addf %5, %7 : vector<4x256xf32>
    %cst = arith.constant 0.000000e+00 : f32
    %9 = vector.broadcast %cst : f32 to vector<4x256xf32>
    %10 = arith.maximumf %8, %9 : vector<4x256xf32>
    %c0_6 = arith.constant 0 : index
    %c0_7 = arith.constant 0 : index
    %11 = vector.load %arg3[%c0_6, %c0_7] : memref<16x4xbf16, #tpu.memory_space<vmem>>, vector<16x4xbf16>
    %12 = arith.truncf %10 : vector<4x256xf32> to vector<4x256xbf16>
    %cst_8 = arith.constant dense<0.000000e+00> : vector<16x256xf32>
    %13 = tpu.matmul %11, %12, %cst_8 {dimension_numbers = #tpu.dot_dimension_numbers<[1], [0], [0], [1], [0, 0, 1, 1], [], []>} : vector<16x4xbf16>, vector<4x256xbf16>, vector<16x256xf32> -> vector<16x256xf32>
    %14 = arith.truncf %13 : vector<16x256xf32> to vector<16x256xbf16>
    %c0_9 = arith.constant 0 : index
    %c0_10 = arith.constant 0 : index
    %c0_11 = arith.constant 0 : index
    %15 = vector.load %arg6[%c0_9, %c0_10, %c0_11] : memref<1x16x256xbf16, #tpu.memory_space<vmem>>, vector<1x16x256xbf16>
    %16 = vector.shape_cast %15 : vector<1x16x256xbf16> to vector<16x256xbf16>
    %17 = vector.shape_cast %14 : vector<16x256xbf16> to vector<1x16x256xbf16>
    tpu.vector_store %arg6[%c0_9, %c0_10, %c0_11], %17 {strides = array<i32>} : memref<1x16x256xbf16, #tpu.memory_space<vmem>>, vector<1x16x256xbf16>,
    %cst_12 = arith.constant dense<0.000000e+00> : vector<16xf32>
    %18 = vector.multi_reduction <add>, %13, %cst_12 [1] : vector<16x256xf32> to vector<16xf32>
    %19 = vector.shape_cast %18 : vector<16xf32> to vector<16x1xf32>
    %c0_13 = arith.constant 0 : index
    %c0_14 = arith.constant 0 : index
    %c0_15 = arith.constant 0 : index
    %c0_16 = arith.constant 0 : index
    %20 = vector.load %arg7[%c0_13, %c0_14, %c0_15, %c0_16] : memref<1x1x16x2xf32, #tpu.memory_space<vmem>>, vector<1x1x16x1xf32>
    %21 = vector.shape_cast %20 : vector<1x1x16x1xf32> to vector<16x1xf32>
    %22 = vector.shape_cast %19 : vector<16x1xf32> to vector<1x1x16x1xf32>
    tpu.vector_store %arg7[%c0_13, %c0_14, %c0_15, %c0_16], %22 {strides = array<i32>} : memref<1x1x16x2xf32, #tpu.memory_space<vmem>>, vector<1x1x16x1xf32>,
    %23 = arith.mulf %13, %13 : vector<16x256xf32>
    %cst_17 = arith.constant dense<0.000000e+00> : vector<16xf32>
    %24 = vector.multi_reduction <add>, %23, %cst_17 [1] : vector<16x256xf32> to vector<16xf32>
    %25 = vector.shape_cast %24 : vector<16xf32> to vector<16x1xf32>
    %c0_18 = arith.constant 0 : index
    %c0_19 = arith.constant 0 : index
    %c0_20 = arith.constant 0 : index
    %c1 = arith.constant 1 : index
    %26 = vector.load %arg7[%c0_18, %c0_19, %c0_20, %c1] : memref<1x1x16x2xf32, #tpu.memory_space<vmem>>, vector<1x1x16x1xf32>
    %27 = vector.shape_cast %26 : vector<1x1x16x1xf32> to vector<16x1xf32>
    %28 = vector.shape_cast %25 : vector<16x1xf32> to vector<1x1x16x1xf32>
    tpu.vector_store %arg7[%c0_18, %c0_19, %c0_20, %c1], %28 {strides = array<i32>} : memref<1x1x16x2xf32, #tpu.memory_space<vmem>>, vector<1x1x16x1xf32>,
    return
  }
  func.func @transform_0(%arg0: i32, %arg1: i32) -> (i32, i32, i32) {
    %c0_i32 = arith.constant 0 : i32
    %c0_i32_0 = arith.constant 0 : i32
    return %arg0, %c0_i32, %arg1 : i32, i32, i32
  }
  func.func @transform_1(%arg0: i32, %arg1: i32) -> (i32, i32) {
    %c0_i32 = arith.constant 0 : i32
    %c0_i32_0 = arith.constant 0 : i32
    %c0_i32_1 = arith.constant 0 : i32
    return %c0_i32, %c0_i32_0 : i32, i32
  }
  func.func @transform_2(%arg0: i32, %arg1: i32) -> (i32, i32) {
    %c0_i32 = arith.constant 0 : i32
    %c0_i32_0 = arith.constant 0 : i32
    %c0_i32_1 = arith.constant 0 : i32
    return %c0_i32, %c0_i32_0 : i32, i32
  }
  func.func @transform_3(%arg0: i32, %arg1: i32) -> (i32, i32) {
    %c0_i32 = arith.constant 0 : i32
    %c0_i32_0 = arith.constant 0 : i32
    %c0_i32_1 = arith.constant 0 : i32
    return %c0_i32, %c0_i32_0 : i32, i32
  }
  func.func @transform_4(%arg0: i32, %arg1: i32) -> (i32, i32, i32) {
    %c0_i32 = arith.constant 0 : i32
    %c0_i32_0 = arith.constant 0 : i32
    return %arg0, %c0_i32, %arg1 : i32, i32, i32
  }
  func.func @transform_5(%arg0: i32, %arg1: i32) -> (i32, i32, i32, i32) {
    %c0_i32 = arith.constant 0 : i32
    %c0_i32_0 = arith.constant 0 : i32
    %c0_i32_1 = arith.constant 0 : i32
    return %arg0, %arg1, %c0_i32, %c0_i32_0 : i32, i32, i32, i32
  }
}

module attributes {stable_mosaic.version = 11 : i64} {
  func.func @_bn_relu_conv3x3_stats_kernel(%arg0: i32, %arg1: memref<1x4x256xbf16, #tpu.memory_space<vmem>>, %arg2: memref<4x144xbf16, #tpu.memory_space<vmem>>, %arg3: memref<4x1xf32, #tpu.memory_space<vmem>>, %arg4: memref<4x1xf32, #tpu.memory_space<vmem>>, %arg5: memref<1x4x256xbf16, #tpu.memory_space<vmem>>, %arg6: memref<1x1x4x2xf32, #tpu.memory_space<vmem>>, %arg7: memref<4x18x18xbf16, #tpu.memory_space<vmem>>, %arg8: memref<144x256xbf16, #tpu.memory_space<vmem>>) attributes {dimension_semantics = [#tpu.dimension_semantics<parallel>], iteration_bounds = array<i64: 2>, scalar_prefetch = 0 : i64, scratch_operands = 2 : i64, tpu.core_type = #tpu.core_type<tc>, window_params = [{transform_indices = @transform_0, window_bounds = array<i64: 1, 4, 256>}, {pipeline_mode = #tpu.pipeline_mode<synchronous>, transform_indices = @transform_1, window_bounds = array<i64: 4, 144>}, {pipeline_mode = #tpu.pipeline_mode<synchronous>, transform_indices = @transform_2, window_bounds = array<i64: 4, 1>}, {pipeline_mode = #tpu.pipeline_mode<synchronous>, transform_indices = @transform_3, window_bounds = array<i64: 4, 1>}, {transform_indices = @transform_4, window_bounds = array<i64: 1, 4, 256>}, {transform_indices = @transform_5, window_bounds = array<i64: 1, 1, 4, 2>}]} {
    %c0 = arith.constant 0 : index
    %c0_0 = arith.constant 0 : index
    %c0_1 = arith.constant 0 : index
    %0 = vector.load %arg1[%c0, %c0_0, %c0_1] : memref<1x4x256xbf16, #tpu.memory_space<vmem>>, vector<1x4x256xbf16>
    %1 = vector.shape_cast %0 : vector<1x4x256xbf16> to vector<4x256xbf16>
    %2 = arith.extf %1 : vector<4x256xbf16> to vector<4x256xf32>
    %c0_2 = arith.constant 0 : index
    %c0_3 = arith.constant 0 : index
    %3 = vector.load %arg3[%c0_2, %c0_3] : memref<4x1xf32, #tpu.memory_space<vmem>>, vector<4x1xf32>
    %4 = vector.broadcast %3 : vector<4x1xf32> to vector<4x256xf32>
    %5 = arith.mulf %2, %4 : vector<4x256xf32>
    %c0_4 = arith.constant 0 : index
    %c0_5 = arith.constant 0 : index
    %6 = vector.load %arg4[%c0_4, %c0_5] : memref<4x1xf32, #tpu.memory_space<vmem>>, vector<4x1xf32>
    %7 = vector.broadcast %6 : vector<4x1xf32> to vector<4x256xf32>
    %8 = arith.addf %5, %7 : vector<4x256xf32>
    %cst = arith.constant 0.000000e+00 : f32
    %9 = vector.broadcast %cst : f32 to vector<4x256xf32>
    %10 = arith.maximumf %8, %9 : vector<4x256xf32>
    %11 = arith.truncf %10 : vector<4x256xf32> to vector<4x256xbf16>
    %12 = vector.shape_cast %11 : vector<4x256xbf16> to vector<4x16x16xbf16>
    %cst_6 = arith.constant 0.000000e+00 : bf16
    %13 = vector.broadcast %cst_6 : bf16 to vector<4x18x18xbf16>
    %c0_7 = arith.constant 0 : index
    %c0_8 = arith.constant 0 : index
    %c0_9 = arith.constant 0 : index
    %14 = vector.load %arg7[%c0_7, %c0_8, %c0_9] : memref<4x18x18xbf16, #tpu.memory_space<vmem>>, vector<4x18x18xbf16>
    tpu.vector_store %arg7[%c0_7, %c0_8, %c0_9], %13 {strides = array<i32>} : memref<4x18x18xbf16, #tpu.memory_space<vmem>>, vector<4x18x18xbf16>,
    %c0_10 = arith.constant 0 : index
    %c1 = arith.constant 1 : index
    %c1_11 = arith.constant 1 : index
    %15 = vector.load %arg7[%c0_10, %c1, %c1_11] : memref<4x18x18xbf16, #tpu.memory_space<vmem>>, vector<4x16x16xbf16>
    tpu.vector_store %arg7[%c0_10, %c1, %c1_11], %12 {strides = array<i32>} : memref<4x18x18xbf16, #tpu.memory_space<vmem>>, vector<4x16x16xbf16>,
    %cst_12 = arith.constant 0.000000e+00 : bf16
    %16 = vector.broadcast %cst_12 : bf16 to vector<144x256xbf16>
    %c0_13 = arith.constant 0 : index
    %c0_14 = arith.constant 0 : index
    %17 = vector.load %arg8[%c0_13, %c0_14] : memref<144x256xbf16, #tpu.memory_space<vmem>>, vector<144x256xbf16>
    tpu.vector_store %arg8[%c0_13, %c0_14], %16 {strides = array<i32>} : memref<144x256xbf16, #tpu.memory_space<vmem>>, vector<144x256xbf16>,
    %c0_15 = arith.constant 0 : index
    %c0_16 = arith.constant 0 : index
    %c0_17 = arith.constant 0 : index
    %18 = vector.load %arg7[%c0_15, %c0_16, %c0_17] : memref<4x18x18xbf16, #tpu.memory_space<vmem>>, vector<4x16x16xbf16>
    %19 = vector.shape_cast %18 : vector<4x16x16xbf16> to vector<4x256xbf16>
    %c0_18 = arith.constant 0 : index
    %c0_19 = arith.constant 0 : index
    %20 = vector.load %arg8[%c0_18, %c0_19] : memref<144x256xbf16, #tpu.memory_space<vmem>>, vector<4x256xbf16>
    tpu.vector_store %arg8[%c0_18, %c0_19], %19 {strides = array<i32>} : memref<144x256xbf16, #tpu.memory_space<vmem>>, vector<4x256xbf16>,
    %c0_20 = arith.constant 0 : index
    %c0_21 = arith.constant 0 : index
    %c1_22 = arith.constant 1 : index
    %21 = vector.load %arg7[%c0_20, %c0_21, %c1_22] : memref<4x18x18xbf16, #tpu.memory_space<vmem>>, vector<4x16x16xbf16>
    %22 = vector.shape_cast %21 : vector<4x16x16xbf16> to vector<4x256xbf16>
    %c16 = arith.constant 16 : index
    %c0_23 = arith.constant 0 : index
    %23 = vector.load %arg8[%c16, %c0_23] : memref<144x256xbf16, #tpu.memory_space<vmem>>, vector<4x256xbf16>
    tpu.vector_store %arg8[%c16, %c0_23], %22 {strides = array<i32>} : memref<144x256xbf16, #tpu.memory_space<vmem>>, vector<4x256xbf16>,
    %c0_24 = arith.constant 0 : index
    %c0_25 = arith.constant 0 : index
    %c2 = arith.constant 2 : index
    %24 = vector.load %arg7[%c0_24, %c0_25, %c2] : memref<4x18x18xbf16, #tpu.memory_space<vmem>>, vector<4x16x16xbf16>
    %25 = vector.shape_cast %24 : vector<4x16x16xbf16> to vector<4x256xbf16>
    %c32 = arith.constant 32 : index
    %c0_26 = arith.constant 0 : index
    %26 = vector.load %arg8[%c32, %c0_26] : memref<144x256xbf16, #tpu.memory_space<vmem>>, vector<4x256xbf16>
    tpu.vector_store %arg8[%c32, %c0_26], %25 {strides = array<i32>} : memref<144x256xbf16, #tpu.memory_space<vmem>>, vector<4x256xbf16>,
    %c0_27 = arith.constant 0 : index
    %c1_28 = arith.constant 1 : index
    %c0_29 = arith.constant 0 : index
    %27 = vector.load %arg7[%c0_27, %c1_28, %c0_29] : memref<4x18x18xbf16, #tpu.memory_space<vmem>>, vector<4x16x16xbf16>
    %28 = vector.shape_cast %27 : vector<4x16x16xbf16> to vector<4x256xbf16>
    %c48 = arith.constant 48 : index
    %c0_30 = arith.constant 0 : index
    %29 = vector.load %arg8[%c48, %c0_30] : memref<144x256xbf16, #tpu.memory_space<vmem>>, vector<4x256xbf16>
    tpu.vector_store %arg8[%c48, %c0_30], %28 {strides = array<i32>} : memref<144x256xbf16, #tpu.memory_space<vmem>>, vector<4x256xbf16>,
    %c0_31 = arith.constant 0 : index
    %c1_32 = arith.constant 1 : index
    %c1_33 = arith.constant 1 : index
    %30 = vector.load %arg7[%c0_31, %c1_32, %c1_33] : memref<4x18x18xbf16, #tpu.memory_space<vmem>>, vector<4x16x16xbf16>
    %31 = vector.shape_cast %30 : vector<4x16x16xbf16> to vector<4x256xbf16>
    %c64 = arith.constant 64 : index
    %c0_34 = arith.constant 0 : index
    %32 = vector.load %arg8[%c64, %c0_34] : memref<144x256xbf16, #tpu.memory_space<vmem>>, vector<4x256xbf16>
    tpu.vector_store %arg8[%c64, %c0_34], %31 {strides = array<i32>} : memref<144x256xbf16, #tpu.memory_space<vmem>>, vector<4x256xbf16>,
    %c0_35 = arith.constant 0 : index
    %c1_36 = arith.constant 1 : index
    %c2_37 = arith.constant 2 : index
    %33 = vector.load %arg7[%c0_35, %c1_36, %c2_37] : memref<4x18x18xbf16, #tpu.memory_space<vmem>>, vector<4x16x16xbf16>
    %34 = vector.shape_cast %33 : vector<4x16x16xbf16> to vector<4x256xbf16>
    %c80 = arith.constant 80 : index
    %c0_38 = arith.constant 0 : index
    %35 = vector.load %arg8[%c80, %c0_38] : memref<144x256xbf16, #tpu.memory_space<vmem>>, vector<4x256xbf16>
    tpu.vector_store %arg8[%c80, %c0_38], %34 {strides = array<i32>} : memref<144x256xbf16, #tpu.memory_space<vmem>>, vector<4x256xbf16>,
    %c0_39 = arith.constant 0 : index
    %c2_40 = arith.constant 2 : index
    %c0_41 = arith.constant 0 : index
    %36 = vector.load %arg7[%c0_39, %c2_40, %c0_41] : memref<4x18x18xbf16, #tpu.memory_space<vmem>>, vector<4x16x16xbf16>
    %37 = vector.shape_cast %36 : vector<4x16x16xbf16> to vector<4x256xbf16>
    %c96 = arith.constant 96 : index
    %c0_42 = arith.constant 0 : index
    %38 = vector.load %arg8[%c96, %c0_42] : memref<144x256xbf16, #tpu.memory_space<vmem>>, vector<4x256xbf16>
    tpu.vector_store %arg8[%c96, %c0_42], %37 {strides = array<i32>} : memref<144x256xbf16, #tpu.memory_space<vmem>>, vector<4x256xbf16>,
    %c0_43 = arith.constant 0 : index
    %c2_44 = arith.constant 2 : index
    %c1_45 = arith.constant 1 : index
    %39 = vector.load %arg7[%c0_43, %c2_44, %c1_45] : memref<4x18x18xbf16, #tpu.memory_space<vmem>>, vector<4x16x16xbf16>
    %40 = vector.shape_cast %39 : vector<4x16x16xbf16> to vector<4x256xbf16>
    %c112 = arith.constant 112 : index
    %c0_46 = arith.constant 0 : index
    %41 = vector.load %arg8[%c112, %c0_46] : memref<144x256xbf16, #tpu.memory_space<vmem>>, vector<4x256xbf16>
    tpu.vector_store %arg8[%c112, %c0_46], %40 {strides = array<i32>} : memref<144x256xbf16, #tpu.memory_space<vmem>>, vector<4x256xbf16>,
    %c0_47 = arith.constant 0 : index
    %c2_48 = arith.constant 2 : index
    %c2_49 = arith.constant 2 : index
    %42 = vector.load %arg7[%c0_47, %c2_48, %c2_49] : memref<4x18x18xbf16, #tpu.memory_space<vmem>>, vector<4x16x16xbf16>
    %43 = vector.shape_cast %42 : vector<4x16x16xbf16> to vector<4x256xbf16>
    %c128 = arith.constant 128 : index
    %c0_50 = arith.constant 0 : index
    %44 = vector.load %arg8[%c128, %c0_50] : memref<144x256xbf16, #tpu.memory_space<vmem>>, vector<4x256xbf16>
    tpu.vector_store %arg8[%c128, %c0_50], %43 {strides = array<i32>} : memref<144x256xbf16, #tpu.memory_space<vmem>>, vector<4x256xbf16>,
    %c0_51 = arith.constant 0 : index
    %c0_52 = arith.constant 0 : index
    %45 = vector.load %arg2[%c0_51, %c0_52] : memref<4x144xbf16, #tpu.memory_space<vmem>>, vector<4x144xbf16>
    %c0_53 = arith.constant 0 : index
    %c0_54 = arith.constant 0 : index
    %46 = vector.load %arg8[%c0_53, %c0_54] : memref<144x256xbf16, #tpu.memory_space<vmem>>, vector<144x256xbf16>
    %cst_55 = arith.constant dense<0.000000e+00> : vector<4x256xf32>
    %47 = tpu.matmul %45, %46, %cst_55 {dimension_numbers = #tpu.dot_dimension_numbers<[1], [0], [0], [1], [0, 0, 1, 1], [], []>} : vector<4x144xbf16>, vector<144x256xbf16>, vector<4x256xf32> -> vector<4x256xf32>
    %48 = arith.truncf %47 : vector<4x256xf32> to vector<4x256xbf16>
    %c0_56 = arith.constant 0 : index
    %c0_57 = arith.constant 0 : index
    %c0_58 = arith.constant 0 : index
    %49 = vector.load %arg5[%c0_56, %c0_57, %c0_58] : memref<1x4x256xbf16, #tpu.memory_space<vmem>>, vector<1x4x256xbf16>
    %50 = vector.shape_cast %49 : vector<1x4x256xbf16> to vector<4x256xbf16>
    %51 = vector.shape_cast %48 : vector<4x256xbf16> to vector<1x4x256xbf16>
    tpu.vector_store %arg5[%c0_56, %c0_57, %c0_58], %51 {strides = array<i32>} : memref<1x4x256xbf16, #tpu.memory_space<vmem>>, vector<1x4x256xbf16>,
    %cst_59 = arith.constant dense<0.000000e+00> : vector<4xf32>
    %52 = vector.multi_reduction <add>, %47, %cst_59 [1] : vector<4x256xf32> to vector<4xf32>
    %53 = vector.shape_cast %52 : vector<4xf32> to vector<4x1xf32>
    %c0_60 = arith.constant 0 : index
    %c0_61 = arith.constant 0 : index
    %c0_62 = arith.constant 0 : index
    %c0_63 = arith.constant 0 : index
    %54 = vector.load %arg6[%c0_60, %c0_61, %c0_62, %c0_63] : memref<1x1x4x2xf32, #tpu.memory_space<vmem>>, vector<1x1x4x1xf32>
    %55 = vector.shape_cast %54 : vector<1x1x4x1xf32> to vector<4x1xf32>
    %56 = vector.shape_cast %53 : vector<4x1xf32> to vector<1x1x4x1xf32>
    tpu.vector_store %arg6[%c0_60, %c0_61, %c0_62, %c0_63], %56 {strides = array<i32>} : memref<1x1x4x2xf32, #tpu.memory_space<vmem>>, vector<1x1x4x1xf32>,
    %57 = arith.mulf %47, %47 : vector<4x256xf32>
    %cst_64 = arith.constant dense<0.000000e+00> : vector<4xf32>
    %58 = vector.multi_reduction <add>, %57, %cst_64 [1] : vector<4x256xf32> to vector<4xf32>
    %59 = vector.shape_cast %58 : vector<4xf32> to vector<4x1xf32>
    %c0_65 = arith.constant 0 : index
    %c0_66 = arith.constant 0 : index
    %c0_67 = arith.constant 0 : index
    %c1_68 = arith.constant 1 : index
    %60 = vector.load %arg6[%c0_65, %c0_66, %c0_67, %c1_68] : memref<1x1x4x2xf32, #tpu.memory_space<vmem>>, vector<1x1x4x1xf32>
    %61 = vector.shape_cast %60 : vector<1x1x4x1xf32> to vector<4x1xf32>
    %62 = vector.shape_cast %59 : vector<4x1xf32> to vector<1x1x4x1xf32>
    tpu.vector_store %arg6[%c0_65, %c0_66, %c0_67, %c1_68], %62 {strides = array<i32>} : memref<1x1x4x2xf32, #tpu.memory_space<vmem>>, vector<1x1x4x1xf32>,
    return
  }
  func.func @transform_0(%arg0: i32) -> (i32, i32, i32) {
    %c0_i32 = arith.constant 0 : i32
    %c0_i32_0 = arith.constant 0 : i32
    %c0_i32_1 = arith.constant 0 : i32
    return %arg0, %c0_i32, %c0_i32_0 : i32, i32, i32
  }
  func.func @transform_1(%arg0: i32) -> (i32, i32) {
    %c0_i32 = arith.constant 0 : i32
    %c0_i32_0 = arith.constant 0 : i32
    %c0_i32_1 = arith.constant 0 : i32
    return %c0_i32, %c0_i32_0 : i32, i32
  }
  func.func @transform_2(%arg0: i32) -> (i32, i32) {
    %c0_i32 = arith.constant 0 : i32
    %c0_i32_0 = arith.constant 0 : i32
    %c0_i32_1 = arith.constant 0 : i32
    return %c0_i32, %c0_i32_0 : i32, i32
  }
  func.func @transform_3(%arg0: i32) -> (i32, i32) {
    %c0_i32 = arith.constant 0 : i32
    %c0_i32_0 = arith.constant 0 : i32
    %c0_i32_1 = arith.constant 0 : i32
    return %c0_i32, %c0_i32_0 : i32, i32
  }
  func.func @transform_4(%arg0: i32) -> (i32, i32, i32) {
    %c0_i32 = arith.constant 0 : i32
    %c0_i32_0 = arith.constant 0 : i32
    %c0_i32_1 = arith.constant 0 : i32
    return %arg0, %c0_i32, %c0_i32_0 : i32, i32, i32
  }
  func.func @transform_5(%arg0: i32) -> (i32, i32, i32, i32) {
    %c0_i32 = arith.constant 0 : i32
    %c0_i32_0 = arith.constant 0 : i32
    %c0_i32_1 = arith.constant 0 : i32
    %c0_i32_2 = arith.constant 0 : i32
    return %arg0, %c0_i32, %c0_i32_0, %c0_i32_1 : i32, i32, i32, i32
  }
}

module attributes {stable_mosaic.version = 11 : i64} {
  func.func @_bn_relu_add_relu_kernel(%arg0: i32, %arg1: i32, %arg2: memref<1x16x256xbf16, #tpu.memory_space<vmem>>, %arg3: memref<1x16x256xf32, #tpu.memory_space<vmem>>, %arg4: memref<16x1xf32, #tpu.memory_space<vmem>>, %arg5: memref<16x1xf32, #tpu.memory_space<vmem>>, %arg6: memref<1x16x256xf32, #tpu.memory_space<vmem>>) attributes {dimension_semantics = [#tpu.dimension_semantics<parallel>, #tpu.dimension_semantics<parallel>], iteration_bounds = array<i64: 2, 1>, scalar_prefetch = 0 : i64, scratch_operands = 0 : i64, tpu.core_type = #tpu.core_type<tc>, window_params = [{transform_indices = @transform_0, window_bounds = array<i64: 1, 16, 256>}, {transform_indices = @transform_1, window_bounds = array<i64: 1, 16, 256>}, {pipeline_mode = #tpu.pipeline_mode<synchronous>, transform_indices = @transform_2, window_bounds = array<i64: 16, 1>}, {pipeline_mode = #tpu.pipeline_mode<synchronous>, transform_indices = @transform_3, window_bounds = array<i64: 16, 1>}, {transform_indices = @transform_4, window_bounds = array<i64: 1, 16, 256>}]} {
    %c0 = arith.constant 0 : index
    %c0_0 = arith.constant 0 : index
    %c0_1 = arith.constant 0 : index
    %0 = vector.load %arg2[%c0, %c0_0, %c0_1] : memref<1x16x256xbf16, #tpu.memory_space<vmem>>, vector<1x16x256xbf16>
    %1 = vector.shape_cast %0 : vector<1x16x256xbf16> to vector<16x256xbf16>
    %2 = arith.extf %1 : vector<16x256xbf16> to vector<16x256xf32>
    %c0_2 = arith.constant 0 : index
    %c0_3 = arith.constant 0 : index
    %3 = vector.load %arg4[%c0_2, %c0_3] : memref<16x1xf32, #tpu.memory_space<vmem>>, vector<16x1xf32>
    %4 = vector.broadcast %3 : vector<16x1xf32> to vector<16x256xf32>
    %5 = arith.mulf %2, %4 : vector<16x256xf32>
    %c0_4 = arith.constant 0 : index
    %c0_5 = arith.constant 0 : index
    %6 = vector.load %arg5[%c0_4, %c0_5] : memref<16x1xf32, #tpu.memory_space<vmem>>, vector<16x1xf32>
    %7 = vector.broadcast %6 : vector<16x1xf32> to vector<16x256xf32>
    %8 = arith.addf %5, %7 : vector<16x256xf32>
    %cst = arith.constant 0.000000e+00 : f32
    %9 = vector.broadcast %cst : f32 to vector<16x256xf32>
    %10 = arith.maximumf %8, %9 : vector<16x256xf32>
    %c0_6 = arith.constant 0 : index
    %c0_7 = arith.constant 0 : index
    %c0_8 = arith.constant 0 : index
    %11 = vector.load %arg3[%c0_6, %c0_7, %c0_8] : memref<1x16x256xf32, #tpu.memory_space<vmem>>, vector<1x16x256xf32>
    %12 = vector.shape_cast %11 : vector<1x16x256xf32> to vector<16x256xf32>
    %13 = arith.addf %10, %12 : vector<16x256xf32>
    %cst_9 = arith.constant 0.000000e+00 : f32
    %14 = vector.broadcast %cst_9 : f32 to vector<16x256xf32>
    %15 = arith.maximumf %13, %14 : vector<16x256xf32>
    %c0_10 = arith.constant 0 : index
    %c0_11 = arith.constant 0 : index
    %c0_12 = arith.constant 0 : index
    %16 = vector.load %arg6[%c0_10, %c0_11, %c0_12] : memref<1x16x256xf32, #tpu.memory_space<vmem>>, vector<1x16x256xf32>
    %17 = vector.shape_cast %16 : vector<1x16x256xf32> to vector<16x256xf32>
    %18 = vector.shape_cast %15 : vector<16x256xf32> to vector<1x16x256xf32>
    tpu.vector_store %arg6[%c0_10, %c0_11, %c0_12], %18 {strides = array<i32>} : memref<1x16x256xf32, #tpu.memory_space<vmem>>, vector<1x16x256xf32>,
    return
  }
  func.func @transform_0(%arg0: i32, %arg1: i32) -> (i32, i32, i32) {
    %c0_i32 = arith.constant 0 : i32
    %c0_i32_0 = arith.constant 0 : i32
    return %arg0, %c0_i32, %arg1 : i32, i32, i32
  }
  func.func @transform_1(%arg0: i32, %arg1: i32) -> (i32, i32, i32) {
    %c0_i32 = arith.constant 0 : i32
    %c0_i32_0 = arith.constant 0 : i32
    return %arg0, %c0_i32, %arg1 : i32, i32, i32
  }
  func.func @transform_2(%arg0: i32, %arg1: i32) -> (i32, i32) {
    %c0_i32 = arith.constant 0 : i32
    %c0_i32_0 = arith.constant 0 : i32
    %c0_i32_1 = arith.constant 0 : i32
    return %c0_i32, %c0_i32_0 : i32, i32
  }
  func.func @transform_3(%arg0: i32, %arg1: i32) -> (i32, i32) {
    %c0_i32 = arith.constant 0 : i32
    %c0_i32_0 = arith.constant 0 : i32
    %c0_i32_1 = arith.constant 0 : i32
    return %c0_i32, %c0_i32_0 : i32, i32
  }
  func.func @transform_4(%arg0: i32, %arg1: i32) -> (i32, i32, i32) {
    %c0_i32 = arith.constant 0 : i32
    %c0_i32_0 = arith.constant 0 : i32
    return %arg0, %c0_i32, %arg1 : i32, i32, i32
  }
}

</mosaic_0001>

<llo_original>
// kernel: regular_bottleneck_forward.4
$region0: #{regular_bottleneck_forward.4}
  #allocation0 [shape = 'u32[]', space=smem, size = 0x4, offset = 0x4, fixed_abs, tag = 'smem constant byte address 0x4 - core index']
  #allocation1 [shape = 'u32[144,128]{1,0:T(1,128)}', space=vmem, size = 0x12000, scoped, tag = 'internal scratch']
  %s0 = inlined_call_operand.hbm [shape: f32[2,16,256], index: 0, kind: input, shape index: {}]
  %s1 = inlined_call_operand.hbm [shape: bf16[4,16], index: 1, kind: input, shape index: {}]
  %s2 = inlined_call_operand.hbm [shape: bf16[2,4,256], index: 2, kind: output, shape index: {0}]
  %s3 = inlined_call_operand.hbm [shape: f32[2,1,4,2], index: 3, kind: output, shape index: {1}]
  %4 = xla_tuple %s2, %s3
  %s5 = sld [smem:[#allocation0]]
  $region57: #{regular_bottleneck_forward.4} parent=0
    _
  %s7 = ssub.s32 1, %s5
  %s8 = scalar_select 0, %s7, %s5
  $region1: #{regular_bottleneck_forward.4} parent=0
    #allocation2 [shape = 'u8[32768]{0}', space=vmem, size = 0x8000, scoped, tag = 'input window, operand 0']
    #allocation3 [shape = 's32[2]{0}', space=sflag, size = 0x8, scoped, tag = 'scoped memory for regular_bottleneck_forward.4']
    #allocation4 [shape = 's32[2]{0}', space=sflag, size = 0x8, scoped, tag = 'scoped memory for regular_bottleneck_forward.4']
    #allocation5 [shape = 'u8[1024]{0}', space=vmem, size = 0x400, scoped, tag = 'input window, operand 1, single buffered']
    #allocation6 [shape = 's32[1]{0}', space=sflag, size = 0x4, scoped, tag = 'scoped memory for regular_bottleneck_forward.4']
    #allocation7 [shape = 'u8[4096]{0}', space=vmem, size = 0x1000, scoped, tag = 'output window, operand 0']
    #allocation8 [shape = 'u8[4096]{0}', space=vmem, size = 0x1000, scoped, tag = 'output window, operand 1']
    #allocation9 [shape = 's32[2]{0}', space=sflag, size = 0x8, scoped, tag = 'scoped memory for regular_bottleneck_forward.4']
    %9 = vsyncpa [#allocation3], 0
    %s10 = scalar_lea.sflag [#allocation3], 1
    %11 = vsyncpa %s10, 0
    %12 = vsyncpa [#allocation6], 0
    %13 = vsyncpa [#allocation4], 0
    %s14 = scalar_lea.sflag [#allocation4], 1
    %15 = vsyncpa %s14, 0
    %16 = vsyncpa [#allocation9], 0
    %s17 = scalar_lea.sflag [#allocation9], 1
    %18 = vsyncpa %s17, 0
    loop: start=0, step=1, limit=4
    $region2: #{regular_bottleneck_forward.4} parent=1 // loop_pre_header
      _
    $region3: #{regular_bottleneck_forward.4} parent=1 // loop_header
      %s20 = sphi 0, %s24
      %p21 = scmp.ge.s32.totalorder %s20, 4
      %s27 = sphi 0, %s39
      %s28 = sphi 0, %s35
      %s29 = sphi 0, %s27
      %s30 = sphi 0, %s28
      %s31 = sphi 0, %s29
      %s32 = sphi 0, %s30
      %s44 = sphi 0, %s46
      %s47 = sphi 0, %s44
      %s48 = sphi 0, %s47
      %s64 = sphi 0, %s48
      %s68 = sphi 0, %s68
      %s70 = sphi 0, %s68
      %s71 = sphi 0, %s70
      %s85 = sphi 0, %s71
      %s93 = sphi 0, %s95
      %s96 = sphi 0, %s93
      %s97 = sphi 0, %s96
      %s113 = sphi 0, %s97
      %s121 = sphi 0, %s123
      %s124 = sphi 0, %s121
      %s125 = sphi 0, %s124
      %s141 = sphi 0, %s125
    $region4: #{regular_bottleneck_forward.4} parent=1 // loop_header_branch
      %23 = sbr.rel (%p21) target = $region8
    $region5: #{regular_bottleneck_forward.4} parent=1 // loop_body
      %s25 = ssub.s32 %s20, 1
      %s26 = ssub.s32 %s20, 2
      %s33 = sadd.s32 1, %s28
      %p34 = scmp.ge.s32.totalorder %s33, 1
      %s35 = scalar_select %p34, 0, %s33
      %s36 = sadd.s32 1, %s27
      %s37 = scalar_select %p34, %s36, %s27
      %p38 = scmp.ge.s32.totalorder %s37, 2
      %s39 = scalar_select %p38, 0, %s37
      %s40 = ssub.s32 %s27, %s39
      %s41 = ssub.s32 %s28, %s35
      %s42 = sor.u32 %s40, %s41
      %p43 = scmp.eq.s32.totalorder %s42, 0
      %s45 = sadd.s32 %s44, 1
      %s46 = scalar_select %p43, %s44, %s45
      %p49 = pneg %p43
      %p50 = scmp.eq.s32.totalorder %s20, 1
      %p51 = por %p49, %p50
      %p52 = scmp.ne.s32.totalorder %s44, %s47
      %p53 = scmp.eq.s32.totalorder %s20, 0
      %p54 = por %p52, %p53
      %p55 = scmp.ne.s32.totalorder %s44, %s47
      %p56 = scmp.eq.s32.totalorder %s25, 1
      %p57 = por %p55, %p56
      %p58 = scmp.ne.s32.totalorder %s47, %s48
      %p59 = scmp.eq.s32.totalorder %s25, 0
      %p60 = por %p58, %p59
      %p61 = scmp.ne.s32.totalorder %s47, %s48
      %p62 = scmp.eq.s32.totalorder %s26, 1
      %p63 = por %p61, %p62
      %p65 = scmp.ne.s32.totalorder %s48, %s64
      %p66 = scmp.eq.s32.totalorder %s26, 0
      %p67 = por %p65, %p66
      %s69 = sadd.s32 %s68, 1
      %p72 = scmp.eq.s32.totalorder %s20, 1
      %p73 = scmp.ne.s32.totalorder %s68, %s70
      %p74 = scmp.eq.s32.totalorder %s20, 0
      %p75 = por %p73, %p74
      %p76 = scmp.ne.s32.totalorder %s68, %s70
      %p77 = scmp.eq.s32.totalorder %s25, 1
      %p78 = por %p76, %p77
      %p79 = scmp.ne.s32.totalorder %s70, %s71
      %p80 = scmp.eq.s32.totalorder %s25, 0
      %p81 = por %p79, %p80
      %p82 = scmp.ne.s32.totalorder %s70, %s71
      %p83 = scmp.eq.s32.totalorder %s26, 1
      %p84 = por %p82, %p83
      %p86 = scmp.ne.s32.totalorder %s71, %s85
      %p87 = scmp.eq.s32.totalorder %s26, 0
      %p88 = por %p86, %p87
      %s89 = ssub.s32 %s27, %s39
      %s90 = ssub.s32 %s28, %s35
      %s91 = sor.u32 %s89, %s90
      %p92 = scmp.eq.s32.totalorder %s91, 0
      %s94 = sadd.s32 %s93, 1
      %s95 = scalar_select %p92, %s93, %s94
      %p98 = pneg %p92
      %p99 = scmp.eq.s32.totalorder %s20, 1
      %p100 = por %p98, %p99
      %p101 = scmp.ne.s32.totalorder %s93, %s96
      %p102 = scmp.eq.s32.totalorder %s20, 0
      %p103 = por %p101, %p102
      %p104 = scmp.ne.s32.totalorder %s93, %s96
      %p105 = scmp.eq.s32.totalorder %s25, 1
      %p106 = por %p104, %p105
      %p107 = scmp.ne.s32.totalorder %s96, %s97
      %p108 = scmp.eq.s32.totalorder %s25, 0
      %p109 = por %p107, %p108
      %p110 = scmp.ne.s32.totalorder %s96, %s97
      %p111 = scmp.eq.s32.totalorder %s26, 1
      %p112 = por %p110, %p111
      %p114 = scmp.ne.s32.totalorder %s97, %s113
      %p115 = scmp.eq.s32.totalorder %s26, 0
      %p116 = por %p114, %p115
      %s117 = ssub.s32 %s27, %s39
      %s118 = ssub.s32 %s28, %s35
      %s119 = sor.u32 %s117, %s118
      %p120 = scmp.eq.s32.totalorder %s119, 0
      %s122 = sadd.s32 %s121, 1
      %s123 = scalar_select %p120, %s121, %s122
      %p126 = pneg %p120
      %p127 = scmp.eq.s32.totalorder %s20, 1
      %p128 = por %p126, %p127
      %p129 = scmp.ne.s32.totalorder %s121, %s124
      %p130 = scmp.eq.s32.totalorder %s20, 0
      %p131 = por %p129, %p130
      %p132 = scmp.ne.s32.totalorder %s121, %s124
      %p133 = scmp.eq.s32.totalorder %s25, 1
      %p134 = por %p132, %p133
      %p135 = scmp.ne.s32.totalorder %s124, %s125
      %p136 = scmp.eq.s32.totalorder %s25, 0
      %p137 = por %p135, %p136
      %p138 = scmp.ne.s32.totalorder %s124, %s125
      %p139 = scmp.eq.s32.totalorder %s26, 1
      %p140 = por %p138, %p139
      %p142 = scmp.ne.s32.totalorder %s125, %s141
      %p143 = scmp.eq.s32.totalorder %s26, 0
      %p144 = por %p142, %p143
      %p145 = scmp.le.s32.totalorder 1, %s20
      %p146 = scmp.lt.s32.totalorder %s20, 3
      %p147 = pnand %p145, %p146
      %p148 = pneg %p147
      // Predicated region
      $region9: #{regular_bottleneck_forward.4} parent=5 // pred_check
        _
      $region10: #{regular_bottleneck_forward.4} parent=5 // pred_check_branch
        %150 = sbr.rel (%p147) target = $region12
      $region11: #{regular_bottleneck_forward.4} parent=5 // pred_region
        %s151 = ssub.s32 %s20, 1
        // Predicated region
        $region13: #{regular_bottleneck_forward.4} parent=11 // pred_check
          %p152 = pneg %p81
        $region14: #{regular_bottleneck_forward.4} parent=11 // pred_check_branch
          %154 = sbr.rel (%p152) target = $region16
        $region15: #{regular_bottleneck_forward.4} parent=11 // pred_region
          %s156 = ssub.s32 32, 32
          %157 = vsyncadd [#allocation6], %s156
          %s159 = sshll.u32 [#allocation5], 4
          %s160 = int_to_ptr.vmem [resolvable:$true] %s159
          %162 = dma.hbm_to_vmem [thread:$0]  %s1, 32, %s160, [#allocation6]
        $region16: #{regular_bottleneck_forward.4} parent=11 // pred_fallthru
          _
      $region12: #{regular_bottleneck_forward.4} parent=5 // pred_fallthru
        _
      %p163 = scmp.lt.s32.totalorder %s20, 2
      // Predicated region
      $region17: #{regular_bottleneck_forward.4} parent=5 // pred_check
        %p164 = pneg %p163
      $region18: #{regular_bottleneck_forward.4} parent=5 // pred_check_branch
        %166 = sbr.rel (%p164) target = $region20
      $region19: #{regular_bottleneck_forward.4} parent=5 // pred_region
        // Predicated region
        $region21: #{regular_bottleneck_forward.4} parent=19 // pred_check
          %p167 = pneg %p54
        $region22: #{regular_bottleneck_forward.4} parent=19 // pred_check_branch
          %169 = sbr.rel (%p167) target = $region24
        $region23: #{regular_bottleneck_forward.4} parent=19 // pred_region
          %s170 = sand.u32 %s44, 1
          %s171 = scalar_lea.sflag [#allocation3], %s170
          %s172 = sand.u32 %s44, 1
          %s173 = smul.addr %s172, 32
          %s174 = scalar_lea.vmem [#allocation2], %s173
          %s175 = smul.u32 2, %s28
          %s177 = ssub.s32 512, 512
          %178 = vsyncadd %s171, %s177
          %s179 = smul.addr %s27, 4
          %s180 = sadd.s32 %s175, %s179
          %s181 = smul.addr %s180, 128
          %s182 = scalar_lea.hbm %s0, %s181
          %s183 = sshll.u32 %s174, 4
          %s184 = int_to_ptr.vmem [resolvable:$true] %s183
          %189 = dma.hbm_to_vmem [thread:$0]  %s182, 512, %s184, %s171, 256, 256, 16
        $region24: #{regular_bottleneck_forward.4} parent=19 // pred_fallthru
          _
      $region20: #{regular_bottleneck_forward.4} parent=5 // pred_fallthru
        _
      %p190 = scmp.le.s32.totalorder 1, %s20
      %p191 = scmp.lt.s32.totalorder %s20, 3
      %p192 = pnand %p190, %p191
      %p193 = pneg %p192
      // Predicated region
      $region25: #{regular_bottleneck_forward.4} parent=5 // pred_check
        _
      $region26: #{regular_bottleneck_forward.4} parent=5 // pred_check_branch
        %195 = sbr.rel (%p192) target = $region28
      $region27: #{regular_bottleneck_forward.4} parent=5 // pred_region
        %s196 = ssub.s32 %s20, 1
        %s197 = sand.u32 %s47, 1
        %s198 = scalar_lea.sflag [#allocation3], %s197
        %s199 = sand.u32 %s47, 1
        %s200 = smul.addr %s199, 32
        %s201 = scalar_lea.vmem [#allocation2], %s200
        // Predicated region
        $region29: #{regular_bottleneck_forward.4} parent=27 // pred_check
          %p202 = pneg %p60
        $region30: #{regular_bottleneck_forward.4} parent=27 // pred_check_branch
          %204 = sbr.rel (%p202) target = $region32
        $region31: #{regular_bottleneck_forward.4} parent=27 // pred_region
          %205 = dma.done %s198, 512
        $region32: #{regular_bottleneck_forward.4} parent=27 // pred_fallthru
          _
        // Predicated region
        $region33: #{regular_bottleneck_forward.4} parent=27 // pred_check
          %p206 = pneg %p81
        $region34: #{regular_bottleneck_forward.4} parent=27 // pred_check_branch
          %208 = sbr.rel (%p206) target = $region36
        $region35: #{regular_bottleneck_forward.4} parent=27 // pred_region
          %209 = dma.done [#allocation6], 32
        $region36: #{regular_bottleneck_forward.4} parent=27 // pred_fallthru
          _
        %s210 = sand.u32 %s47, 1
        %s211 = scalar_lea.sflag [#allocation3], %s210
        %s212 = sand.u32 %s47, 1
        %s213 = smul.addr %s212, 32
        %s214 = scalar_lea.vmem [#allocation2], %s213
        %p215 = pneg %p60
        %p216 = pneg %p57
        %p217 = pneg %p81
        %p218 = pneg %p78
        %p219 = pneg %p109
        %p220 = pneg %p106
        %s221 = sand.u32 %s96, 1
        %s222 = scalar_lea.sflag [#allocation4], %s221
        %s223 = sand.u32 %s96, 1
        %s224 = smul.addr %s223, 4
        %s225 = scalar_lea.vmem [#allocation7], %s224
        %p226 = pneg %p137
        %p227 = pneg %p134
        %s228 = sand.u32 %s124, 1
        %s229 = scalar_lea.sflag [#allocation9], %s228
        %s230 = sand.u32 %s124, 1
        %s231 = smul.addr %s230, 4
        %s232 = scalar_lea.vmem [#allocation8], %s231
        %s233 = smul.u32 2, %s30
        %s234 = smul.u32 2, %s30
        %v236 = vld [vmem:[#allocation5] sm:$0x3]
        %v237 = vld [vmem:[%s201] sm:$0xff]
        %v238 = vld [vmem:[%s201 + $0x8] sm:$0xff]
        %v239 = vld [vmem:[%s201 + $0x10] sm:$0xff]
        %v240 = vld [vmem:[%s201 + $0x18] sm:$0xff]
        %v241 = vpack.c.bf16 %v239, %v237
        %v242 = vpack.c.bf16 %v240, %v238
        %vm243 = vcmask 130048
        %v245 = vsel %vm243, %v236, 0
        %247 = vmatprep.subr.bf16.mxu0 %v242
        %248 = vmatpush1.bf16.msra.mxu0 %v241
        %249 = vmatprep.subr.bf16.mxu0 0
        %250 = vmatpush1.bf16.msra.mxu0 0
        %251 = vmatprep.subr.bf16.mxu0 0
        %252 = vmatpush1.bf16.msra.mxu0 0
        %253 = vmatprep.subr.bf16.mxu0 0
        %254 = vmatpush1.bf16.msra.mxu0 0
        %255 = vmatprep.subr.bf16.mxu0 0
        %256 = vmatpush1.bf16.msra.mxu0 0
        %257 = vmatprep.subr.bf16.mxu0 0
        %258 = vmatpush1.bf16.msra.mxu0 0
        %259 = vmatprep.subr.bf16.mxu0 0
        %260 = vmatpush1.bf16.msra.mxu0 0
        %261 = vmatprep.subr.bf16.mxu0 0
        %262 = vmatpush1.bf16.msra.mxu0 0
        %263 = vmatprep.subr.bf16.mxu0 0
        %264 = vmatpush1.bf16.msra.mxu0 0
        %265 = vmatprep.subr.bf16.mxu0 0
        %266 = vmatpush1.bf16.msra.mxu0 0
        %267 = vmatprep.subr.bf16.mxu0 0
        %268 = vmatpush1.bf16.msra.mxu0 0
        %269 = vmatprep.subr.bf16.mxu0 0
        %270 = vmatpush1.bf16.msra.mxu0 0
        %271 = vmatprep.subr.bf16.mxu0 0
        %272 = vmatpush1.bf16.msra.mxu0 0
        %273 = vmatprep.subr.bf16.mxu0 0
        %274 = vmatpush1.bf16.msra.mxu0 0
        %275 = vmatprep.subr.bf16.mxu0 0
        %276 = vmatpush1.bf16.msra.mxu0 0
        %277 = vmatprep.subr.bf16.mxu0 0
        %278 = vmatpush1.bf16.msra.mxu0 0
        %279 = vmatprep.mubr.bf16.mxu0 0
        %280 = vmatmul.mubr.bf16.gmra.mrb[0].mxu0 %v245
        %v281 = vpop.f32.mrb[0].mxu0
        %v282 = vadd.f32 0.0, %v281
        %v283 = vpop.f32.mrb[0].mxu0
        %v284 = vadd.f32 0.0, %v283
        %v285 = vpop.f32.mrb[0].mxu0
        %v286 = vpop.f32.mrb[0].mxu0
        %287 = vdwg.mxu0
        %v288 = vpack.c.bf16 %v282, %v282
        %v289 = vpack.c.bf16 %v284, %v284
        %v292 = vcombine.low %v288, %v289
        %v294 = vunpack.c.l.s4 1983009808
        %v295 = vunpack.c.0.s8 %v294
        %v296 = vlaneseq
        %v297 = vshrl.u32 %v296, 7
        %v298 = vsub.s32 %v295, %v297
        %v299 = vrot.slane %v292, %v298
        %301 = vst [vmem:[%s225] sm:$0xf] %v299
        %vm302 = vcmask 1043456
        %v303 = vsel %vm302, %v282, 0.0
        %v304 = vsel %vm302, %v284, 0.0
        %v305 = vadd.f32 %v303, %v304
        %306 = vadd.xlane.f32.xlu0 %v305
        %v307 = vpop.xlane.xlu0 %306
        %vm308 = vcmask 3072
        %309 = vst.msk [vmem:[%s232] sm:$0xf] %vm308, %v307
        %v310 = vmul.f32 %v282, %v282
        %v311 = vmul.f32 %v284, %v284
        %v312 = vsel %vm302, %v310, 0.0
        %v313 = vsel %vm302, %v311, 0.0
        %v314 = vadd.f32 %v312, %v313
        %315 = vadd.xlane.f32.xlu0 %v314
        %v316 = vpop.xlane.xlu0 %315
        %vm317 = vcmask 11272
        %318 = vst.msk [vmem:[%s232] sm:$0xf] %vm317, %v316
        %s319 = sand.u32 %s96, 1
        %s320 = scalar_lea.sflag [#allocation4], %s319
        %s321 = sand.u32 %s96, 1
        %s322 = smul.addr %s321, 4
        %s323 = scalar_lea.vmem [#allocation7], %s322
        %s324 = sand.u32 %s124, 1
        %s325 = scalar_lea.sflag [#allocation9], %s324
        %s326 = sand.u32 %s124, 1
        %s327 = smul.addr %s326, 4
        %s328 = scalar_lea.vmem [#allocation8], %s327
        // Predicated region
        $region37: #{regular_bottleneck_forward.4} parent=27 // pred_check
          %p329 = pneg %p106
        $region38: #{regular_bottleneck_forward.4} parent=27 // pred_check_branch
          %331 = sbr.rel (%p329) target = $region40
        $region39: #{regular_bottleneck_forward.4} parent=27 // pred_region
          %s332 = smul.u32 2, %s30
          %s334 = ssub.s32 64, 64
          %335 = vsyncadd %s320, %s334
          %s336 = smul.addr %s29, 2
          %s337 = sadd.s32 %s332, %s336
          %s338 = smul.addr %s337, 32
          %s339 = scalar_lea.hbm %s2, %s338
          %s341 = sshll.u32 %s323, 4
          %s342 = int_to_ptr.vmem [resolvable:$true] %s341
          %344 = dma.vmem_to_hbm [thread:$0]  %s342, 64, %s339, %s320
        $region40: #{regular_bottleneck_forward.4} parent=27 // pred_fallthru
          _
        // Predicated region
        $region41: #{regular_bottleneck_forward.4} parent=27 // pred_check
          %p345 = pneg %p134
        $region42: #{regular_bottleneck_forward.4} parent=27 // pred_check_branch
          %347 = sbr.rel (%p345) target = $region44
        $region43: #{regular_bottleneck_forward.4} parent=27 // pred_region
          %s349 = ssub.s32 64, 64
          %350 = vsyncadd %s325, %s349
          %s351 = sadd.s32 %s30, %s29
          %s352 = smul.addr %s351, 64
          %s353 = scalar_lea.hbm %s3, %s352
          %s355 = sshll.u32 %s328, 4
          %s356 = int_to_ptr.vmem [resolvable:$true] %s355
          %358 = dma.vmem_to_hbm [thread:$0]  %s356, 64, %s353, %s325
        $region44: #{regular_bottleneck_forward.4} parent=27 // pred_fallthru
          _
      $region28: #{regular_bottleneck_forward.4} parent=5 // pred_fallthru
        _
      %p359 = scmp.le.s32.totalorder 2, %s20
      // Predicated region
      $region45: #{regular_bottleneck_forward.4} parent=5 // pred_check
        %p360 = pneg %p359
      $region46: #{regular_bottleneck_forward.4} parent=5 // pred_check_branch
        %362 = sbr.rel (%p360) target = $region48
      $region47: #{regular_bottleneck_forward.4} parent=5 // pred_region
        %s363 = ssub.s32 %s20, 2
        // Predicated region
        $region49: #{regular_bottleneck_forward.4} parent=47 // pred_check
          %p364 = pneg %p112
        $region50: #{regular_bottleneck_forward.4} parent=47 // pred_check_branch
          %366 = sbr.rel (%p364) target = $region52
        $region51: #{regular_bottleneck_forward.4} parent=47 // pred_region
          %s367 = sand.u32 %s97, 1
          %s368 = scalar_lea.sflag [#allocation4], %s367
          %s369 = sand.u32 %s97, 1
          %s370 = smul.addr %s369, 4
          %s371 = scalar_lea.vmem [#allocation7], %s370
          %372 = dma.done %s368, 64
        $region52: #{regular_bottleneck_forward.4} parent=47 // pred_fallthru
          _
        // Predicated region
        $region53: #{regular_bottleneck_forward.4} parent=47 // pred_check
          %p373 = pneg %p140
        $region54: #{regular_bottleneck_forward.4} parent=47 // pred_check_branch
          %375 = sbr.rel (%p373) target = $region56
        $region55: #{regular_bottleneck_forward.4} parent=47 // pred_region
          %s376 = sand.u32 %s125, 1
          %s377 = scalar_lea.sflag [#allocation9], %s376
          %s378 = sand.u32 %s125, 1
          %s379 = smul.addr %s378, 4
          %s380 = scalar_lea.vmem [#allocation8], %s379
          %381 = dma.done %s377, 64
        $region56: #{regular_bottleneck_forward.4} parent=47 // pred_fallthru
          _
      $region48: #{regular_bottleneck_forward.4} parent=5 // pred_fallthru
        _
    $region6: #{regular_bottleneck_forward.4} parent=1 // loop_footer
      %s24 = sadd.s32 1, %s20
    $region7: #{regular_bottleneck_forward.4} parent=1 // loop_footer_branch
      %19 = sbr.rel target = $region3
    $region8: #{regular_bottleneck_forward.4} parent=1 // loop_exit
      _
    %382 = vsyncpa [#allocation3], 1
    %s383 = scalar_lea.sflag [#allocation3], 1
    %384 = vsyncpa %s383, 1
    %385 = vsyncpa [#allocation6], 1
    %386 = vsyncpa [#allocation4], 1
    %s387 = scalar_lea.sflag [#allocation4], 1
    %388 = vsyncpa %s387, 1
    %389 = vsyncpa [#allocation9], 1
    %s390 = scalar_lea.sflag [#allocation9], 1
    %391 = vsyncpa %s390, 1

// kernel: regular_bottleneck_forward.6
$region0: #{regular_bottleneck_forward.6}
  #allocation0 [shape = 'u32[]', space=smem, size = 0x4, offset = 0x4, fixed_abs, tag = 'smem constant byte address 0x4 - core index']
  #allocation1 [shape = 'u32[144,128]{1,0:T(1,128)}', space=vmem, size = 0x12000, scoped, tag = 'internal scratch']
  %s0 = inlined_call_operand.hbm [shape: bf16[2,4,256], index: 0, kind: input, shape index: {}]
  %s1 = inlined_call_operand.hbm [shape: bf16[16,4], index: 1, kind: input, shape index: {}]
  %s2 = inlined_call_operand.hbm [shape: f32[4,1], index: 2, kind: input, shape index: {}]
  %s3 = inlined_call_operand.hbm [shape: f32[4,1], index: 3, kind: input, shape index: {}]
  %s4 = inlined_call_operand.hbm [shape: bf16[2,16,256], index: 4, kind: output, shape index: {0}]
  %s5 = inlined_call_operand.hbm [shape: f32[2,1,16,2], index: 5, kind: output, shape index: {1}]
  %6 = xla_tuple %s4, %s5
  %s7 = sld [smem:[#allocation0]]
  $region73: #{regular_bottleneck_forward.6} parent=0
    _
  %s9 = ssub.s32 1, %s7
  %s10 = scalar_select 0, %s9, %s7
  $region1: #{regular_bottleneck_forward.6} parent=0
    #allocation2 [shape = 'u8[4096]{0}', space=vmem, size = 0x1000, scoped, tag = 'input window, operand 0']
    #allocation3 [shape = 's32[2]{0}', space=sflag, size = 0x8, scoped, tag = 'scoped memory for regular_bottleneck_forward.6']
    #allocation4 [shape = 's32[2]{0}', space=sflag, size = 0x8, scoped, tag = 'scoped memory for regular_bottleneck_forward.6']
    #allocation5 [shape = 'u8[4096]{0}', space=vmem, size = 0x1000, scoped, tag = 'input window, operand 1, single buffered']
    #allocation6 [shape = 's32[1]{0}', space=sflag, size = 0x4, scoped, tag = 'scoped memory for regular_bottleneck_forward.6']
    #allocation7 [shape = 'u8[2048]{0}', space=vmem, size = 0x800, scoped, tag = 'input window, operand 2, single buffered']
    #allocation8 [shape = 'u8[2048]{0}', space=vmem, size = 0x800, scoped, tag = 'input window, operand 3, single buffered']
    #allocation9 [shape = 's32[1]{0}', space=sflag, size = 0x4, scoped, tag = 'scoped memory for regular_bottleneck_forward.6']
    #allocation10 [shape = 'u8[16384]{0}', space=vmem, size = 0x4000, scoped, tag = 'output window, operand 0']
    #allocation11 [shape = 'u8[16384]{0}', space=vmem, size = 0x4000, scoped, tag = 'output window, operand 1']
    #allocation12 [shape = 's32[2]{0}', space=sflag, size = 0x8, scoped, tag = 'scoped memory for regular_bottleneck_forward.6']
    %11 = vsyncpa [#allocation3], 0
    %s12 = scalar_lea.sflag [#allocation3], 1
    %13 = vsyncpa %s12, 0
    %14 = vsyncpa [#allocation6], 0
    %15 = vsyncpa [#allocation9], 0
    %16 = vsyncpa [#allocation4], 0
    %s17 = scalar_lea.sflag [#allocation4], 1
    %18 = vsyncpa %s17, 0
    %19 = vsyncpa [#allocation12], 0
    %s20 = scalar_lea.sflag [#allocation12], 1
    %21 = vsyncpa %s20, 0
    loop: start=0, step=1, limit=4
    $region2: #{regular_bottleneck_forward.6} parent=1 // loop_pre_header
      _
    $region3: #{regular_bottleneck_forward.6} parent=1 // loop_header
      %s23 = sphi 0, %s27
      %p24 = scmp.ge.s32.totalorder %s23, 4
      %s30 = sphi 0, %s42
      %s31 = sphi 0, %s38
      %s32 = sphi 0, %s30
      %s33 = sphi 0, %s31
      %s34 = sphi 0, %s32
      %s35 = sphi 0, %s33
      %s47 = sphi 0, %s49
      %s50 = sphi 0, %s47
      %s51 = sphi 0, %s50
      %s67 = sphi 0, %s51
      %s71 = sphi 0, %s71
      %s73 = sphi 0, %s71
      %s74 = sphi 0, %s73
      %s88 = sphi 0, %s74
      %s92 = sphi 0, %s92
      %s94 = sphi 0, %s92
      %s95 = sphi 0, %s94
      %s109 = sphi 0, %s95
      %s113 = sphi 0, %s113
      %s115 = sphi 0, %s113
      %s116 = sphi 0, %s115
      %s130 = sphi 0, %s116
      %s138 = sphi 0, %s140
      %s141 = sphi 0, %s138
      %s142 = sphi 0, %s141
      %s158 = sphi 0, %s142
      %s166 = sphi 0, %s168
      %s169 = sphi 0, %s166
      %s170 = sphi 0, %s169
      %s186 = sphi 0, %s170
    $region4: #{regular_bottleneck_forward.6} parent=1 // loop_header_branch
      %26 = sbr.rel (%p24) target = $region8
    $region5: #{regular_bottleneck_forward.6} parent=1 // loop_body
      %s28 = ssub.s32 %s23, 1
      %s29 = ssub.s32 %s23, 2
      %s36 = sadd.s32 1, %s31
      %p37 = scmp.ge.s32.totalorder %s36, 1
      %s38 = scalar_select %p37, 0, %s36
      %s39 = sadd.s32 1, %s30
      %s40 = scalar_select %p37, %s39, %s30
      %p41 = scmp.ge.s32.totalorder %s40, 2
      %s42 = scalar_select %p41, 0, %s40
      %s43 = ssub.s32 %s30, %s42
      %s44 = ssub.s32 %s31, %s38
      %s45 = sor.u32 %s43, %s44
      %p46 = scmp.eq.s32.totalorder %s45, 0
      %s48 = sadd.s32 %s47, 1
      %s49 = scalar_select %p46, %s47, %s48
      %p52 = pneg %p46
      %p53 = scmp.eq.s32.totalorder %s23, 1
      %p54 = por %p52, %p53
      %p55 = scmp.ne.s32.totalorder %s47, %s50
      %p56 = scmp.eq.s32.totalorder %s23, 0
      %p57 = por %p55, %p56
      %p58 = scmp.ne.s32.totalorder %s47, %s50
      %p59 = scmp.eq.s32.totalorder %s28, 1
      %p60 = por %p58, %p59
      %p61 = scmp.ne.s32.totalorder %s50, %s51
      %p62 = scmp.eq.s32.totalorder %s28, 0
      %p63 = por %p61, %p62
      %p64 = scmp.ne.s32.totalorder %s50, %s51
      %p65 = scmp.eq.s32.totalorder %s29, 1
      %p66 = por %p64, %p65
      %p68 = scmp.ne.s32.totalorder %s51, %s67
      %p69 = scmp.eq.s32.totalorder %s29, 0
      %p70 = por %p68, %p69
      %s72 = sadd.s32 %s71, 1
      %p75 = scmp.eq.s32.totalorder %s23, 1
      %p76 = scmp.ne.s32.totalorder %s71, %s73
      %p77 = scmp.eq.s32.totalorder %s23, 0
      %p78 = por %p76, %p77
      %p79 = scmp.ne.s32.totalorder %s71, %s73
      %p80 = scmp.eq.s32.totalorder %s28, 1
      %p81 = por %p79, %p80
      %p82 = scmp.ne.s32.totalorder %s73, %s74
      %p83 = scmp.eq.s32.totalorder %s28, 0
      %p84 = por %p82, %p83
      %p85 = scmp.ne.s32.totalorder %s73, %s74
      %p86 = scmp.eq.s32.totalorder %s29, 1
      %p87 = por %p85, %p86
      %p89 = scmp.ne.s32.totalorder %s74, %s88
      %p90 = scmp.eq.s32.totalorder %s29, 0
      %p91 = por %p89, %p90
      %s93 = sadd.s32 %s92, 1
      %p96 = scmp.eq.s32.totalorder %s23, 1
      %p97 = scmp.ne.s32.totalorder %s92, %s94
      %p98 = scmp.eq.s32.totalorder %s23, 0
      %p99 = por %p97, %p98
      %p100 = scmp.ne.s32.totalorder %s92, %s94
      %p101 = scmp.eq.s32.totalorder %s28, 1
      %p102 = por %p100, %p101
      %p103 = scmp.ne.s32.totalorder %s94, %s95
      %p104 = scmp.eq.s32.totalorder %s28, 0
      %p105 = por %p103, %p104
      %p106 = scmp.ne.s32.totalorder %s94, %s95
      %p107 = scmp.eq.s32.totalorder %s29, 1
      %p108 = por %p106, %p107
      %p110 = scmp.ne.s32.totalorder %s95, %s109
      %p111 = scmp.eq.s32.totalorder %s29, 0
      %p112 = por %p110, %p111
      %s114 = sadd.s32 %s113, 1
      %p117 = scmp.eq.s32.totalorder %s23, 1
      %p118 = scmp.ne.s32.totalorder %s113, %s115
      %p119 = scmp.eq.s32.totalorder %s23, 0
      %p120 = por %p118, %p119
      %p121 = scmp.ne.s32.totalorder %s113, %s115
      %p122 = scmp.eq.s32.totalorder %s28, 1
      %p123 = por %p121, %p122
      %p124 = scmp.ne.s32.totalorder %s115, %s116
      %p125 = scmp.eq.s32.totalorder %s28, 0
      %p126 = por %p124, %p125
      %p127 = scmp.ne.s32.totalorder %s115, %s116
      %p128 = scmp.eq.s32.totalorder %s29, 1
      %p129 = por %p127, %p128
      %p131 = scmp.ne.s32.totalorder %s116, %s130
      %p132 = scmp.eq.s32.totalorder %s29, 0
      %p133 = por %p131, %p132
      %s134 = ssub.s32 %s30, %s42
      %s135 = ssub.s32 %s31, %s38
      %s136 = sor.u32 %s134, %s135
      %p137 = scmp.eq.s32.totalorder %s136, 0
      %s139 = sadd.s32 %s138, 1
      %s140 = scalar_select %p137, %s138, %s139
      %p143 = pneg %p137
      %p144 = scmp.eq.s32.totalorder %s23, 1
      %p145 = por %p143, %p144
      %p146 = scmp.ne.s32.totalorder %s138, %s141
      %p147 = scmp.eq.s32.totalorder %s23, 0
      %p148 = por %p146, %p147
      %p149 = scmp.ne.s32.totalorder %s138, %s141
      %p150 = scmp.eq.s32.totalorder %s28, 1
      %p151 = por %p149, %p150
      %p152 = scmp.ne.s32.totalorder %s141, %s142
      %p153 = scmp.eq.s32.totalorder %s28, 0
      %p154 = por %p152, %p153
      %p155 = scmp.ne.s32.totalorder %s141, %s142
      %p156 = scmp.eq.s32.totalorder %s29, 1
      %p157 = por %p155, %p156
      %p159 = scmp.ne.s32.totalorder %s142, %s158
      %p160 = scmp.eq.s32.totalorder %s29, 0
      %p161 = por %p159, %p160
      %s162 = ssub.s32 %s30, %s42
      %s163 = ssub.s32 %s31, %s38
      %s164 = sor.u32 %s162, %s163
      %p165 = scmp.eq.s32.totalorder %s164, 0
      %s167 = sadd.s32 %s166, 1
      %s168 = scalar_select %p165, %s166, %s167
      %p171 = pneg %p165
      %p172 = scmp.eq.s32.totalorder %s23, 1
      %p173 = por %p171, %p172
      %p174 = scmp.ne.s32.totalorder %s166, %s169
      %p175 = scmp.eq.s32.totalorder %s23, 0
      %p176 = por %p174, %p175
      %p177 = scmp.ne.s32.totalorder %s166, %s169
      %p178 = scmp.eq.s32.totalorder %s28, 1
      %p179 = por %p177, %p178
      %p180 = scmp.ne.s32.totalorder %s169, %s170
      %p181 = scmp.eq.s32.totalorder %s28, 0
      %p182 = por %p180, %p181
      %p183 = scmp.ne.s32.totalorder %s169, %s170
      %p184 = scmp.eq.s32.totalorder %s29, 1
      %p185 = por %p183, %p184
      %p187 = scmp.ne.s32.totalorder %s170, %s186
      %p188 = scmp.eq.s32.totalorder %s29, 0
      %p189 = por %p187, %p188
      %p190 = scmp.le.s32.totalorder 1, %s23
      %p191 = scmp.lt.s32.totalorder %s23, 3
      %p192 = pnand %p190, %p191
      %p193 = pneg %p192
      // Predicated region
      $region9: #{regular_bottleneck_forward.6} parent=5 // pred_check
        _
      $region10: #{regular_bottleneck_forward.6} parent=5 // pred_check_branch
        %195 = sbr.rel (%p192) target = $region12
      $region11: #{regular_bottleneck_forward.6} parent=5 // pred_region
        %s196 = ssub.s32 %s23, 1
        // Predicated region
        $region13: #{regular_bottleneck_forward.6} parent=11 // pred_check
          %p197 = pneg %p84
        $region14: #{regular_bottleneck_forward.6} parent=11 // pred_check_branch
          %199 = sbr.rel (%p197) target = $region16
        $region15: #{regular_bottleneck_forward.6} parent=11 // pred_region
          %s201 = ssub.s32 128, 128
          %202 = vsyncadd [#allocation6], %s201
          %s203 = sshll.u32 [#allocation5], 4
          %s204 = int_to_ptr.vmem [resolvable:$true] %s203
          %209 = dma.hbm_to_vmem [thread:$0]  %s1, 128, %s204, [#allocation6], 64, 64, 4
        $region16: #{regular_bottleneck_forward.6} parent=11 // pred_fallthru
          _
        // Predicated region
        $region17: #{regular_bottleneck_forward.6} parent=11 // pred_check
          %p210 = pneg %p105
        $region18: #{regular_bottleneck_forward.6} parent=11 // pred_check_branch
          %212 = sbr.rel (%p210) target = $region20
        $region19: #{regular_bottleneck_forward.6} parent=11 // pred_region
          %s214 = ssub.s32 64, 64
          %215 = vsyncadd [#allocation6], %s214
          %s217 = sshll.u32 [#allocation7], 4
          %s218 = int_to_ptr.vmem [resolvable:$true] %s217
          %220 = dma.hbm_to_vmem [thread:$0]  %s2, 64, %s218, [#allocation6]
        $region20: #{regular_bottleneck_forward.6} parent=11 // pred_fallthru
          _
        // Predicated region
        $region21: #{regular_bottleneck_forward.6} parent=11 // pred_check
          %p221 = pneg %p126
        $region22: #{regular_bottleneck_forward.6} parent=11 // pred_check_branch
          %223 = sbr.rel (%p221) target = $region24
        $region23: #{regular_bottleneck_forward.6} parent=11 // pred_region
          %s225 = ssub.s32 64, 64
          %226 = vsyncadd [#allocation9], %s225
          %s228 = sshll.u32 [#allocation8], 4
          %s229 = int_to_ptr.vmem [resolvable:$true] %s228
          %231 = dma.hbm_to_vmem [thread:$0]  %s3, 64, %s229, [#allocation9]
        $region24: #{regular_bottleneck_forward.6} parent=11 // pred_fallthru
          _
      $region12: #{regular_bottleneck_forward.6} parent=5 // pred_fallthru
        _
      %p232 = scmp.lt.s32.totalorder %s23, 2
      // Predicated region
      $region25: #{regular_bottleneck_forward.6} parent=5 // pred_check
        %p233 = pneg %p232
      $region26: #{regular_bottleneck_forward.6} parent=5 // pred_check_branch
        %235 = sbr.rel (%p233) target = $region28
      $region27: #{regular_bottleneck_forward.6} parent=5 // pred_region
        // Predicated region
        $region29: #{regular_bottleneck_forward.6} parent=27 // pred_check
          %p236 = pneg %p57
        $region30: #{regular_bottleneck_forward.6} parent=27 // pred_check_branch
          %238 = sbr.rel (%p236) target = $region32
        $region31: #{regular_bottleneck_forward.6} parent=27 // pred_region
          %s239 = sand.u32 %s47, 1
          %s240 = scalar_lea.sflag [#allocation3], %s239
          %s241 = sand.u32 %s47, 1
          %s242 = smul.addr %s241, 4
          %s243 = scalar_lea.vmem [#allocation2], %s242
          %s244 = smul.u32 2, %s31
          %s246 = ssub.s32 64, 64
          %247 = vsyncadd %s240, %s246
          %s248 = smul.addr %s30, 2
          %s249 = sadd.s32 %s244, %s248
          %s250 = smul.addr %s249, 32
          %s251 = scalar_lea.hbm %s0, %s250
          %s253 = sshll.u32 %s243, 4
          %s254 = int_to_ptr.vmem [resolvable:$true] %s253
          %256 = dma.hbm_to_vmem [thread:$0]  %s251, 64, %s254, %s240
        $region32: #{regular_bottleneck_forward.6} parent=27 // pred_fallthru
          _
      $region28: #{regular_bottleneck_forward.6} parent=5 // pred_fallthru
        _
      %p257 = scmp.le.s32.totalorder 1, %s23
      %p258 = scmp.lt.s32.totalorder %s23, 3
      %p259 = pnand %p257, %p258
      %p260 = pneg %p259
      // Predicated region
      $region33: #{regular_bottleneck_forward.6} parent=5 // pred_check
        _
      $region34: #{regular_bottleneck_forward.6} parent=5 // pred_check_branch
        %262 = sbr.rel (%p259) target = $region36
      $region35: #{regular_bottleneck_forward.6} parent=5 // pred_region
        %s263 = ssub.s32 %s23, 1
        %s264 = sand.u32 %s50, 1
        %s265 = scalar_lea.sflag [#allocation3], %s264
        %s266 = sand.u32 %s50, 1
        %s267 = smul.addr %s266, 4
        %s268 = scalar_lea.vmem [#allocation2], %s267
        // Predicated region
        $region37: #{regular_bottleneck_forward.6} parent=35 // pred_check
          %p269 = pneg %p63
        $region38: #{regular_bottleneck_forward.6} parent=35 // pred_check_branch
          %271 = sbr.rel (%p269) target = $region40
        $region39: #{regular_bottleneck_forward.6} parent=35 // pred_region
          %272 = dma.done %s265, 64
        $region40: #{regular_bottleneck_forward.6} parent=35 // pred_fallthru
          _
        // Predicated region
        $region41: #{regular_bottleneck_forward.6} parent=35 // pred_check
          %p273 = pneg %p84
        $region42: #{regular_bottleneck_forward.6} parent=35 // pred_check_branch
          %275 = sbr.rel (%p273) target = $region44
        $region43: #{regular_bottleneck_forward.6} parent=35 // pred_region
          %276 = dma.done [#allocation6], 128
        $region44: #{regular_bottleneck_forward.6} parent=35 // pred_fallthru
          _
        // Predicated region
        $region45: #{regular_bottleneck_forward.6} parent=35 // pred_check
          %p277 = pneg %p105
        $region46: #{regular_bottleneck_forward.6} parent=35 // pred_check_branch
          %279 = sbr.rel (%p277) target = $region48
        $region47: #{regular_bottleneck_forward.6} parent=35 // pred_region
          %280 = dma.done [#allocation6], 64
        $region48: #{regular_bottleneck_forward.6} parent=35 // pred_fallthru
          _
        // Predicated region
        $region49: #{regular_bottleneck_forward.6} parent=35 // pred_check
          %p281 = pneg %p126
        $region50: #{regular_bottleneck_forward.6} parent=35 // pred_check_branch
          %283 = sbr.rel (%p281) target = $region52
        $region51: #{regular_bottleneck_forward.6} parent=35 // pred_region
          %284 = dma.done [#allocation9], 64
        $region52: #{regular_bottleneck_forward.6} parent=35 // pred_fallthru
          _
        %s285 = sand.u32 %s50, 1
        %s286 = scalar_lea.sflag [#allocation3], %s285
        %s287 = sand.u32 %s50, 1
        %s288 = smul.addr %s287, 4
        %s289 = scalar_lea.vmem [#allocation2], %s288
        %p290 = pneg %p63
        %p291 = pneg %p60
        %p292 = pneg %p84
        %p293 = pneg %p81
        %p294 = pneg %p105
        %p295 = pneg %p102
        %p296 = pneg %p126
        %p297 = pneg %p123
        %p298 = pneg %p154
        %p299 = pneg %p151
        %s300 = sand.u32 %s141, 1
        %s301 = scalar_lea.sflag [#allocation4], %s300
        %s302 = sand.u32 %s141, 1
        %s303 = smul.addr %s302, 16
        %s304 = scalar_lea.vmem [#allocation10], %s303
        %p305 = pneg %p182
        %p306 = pneg %p179
        %s307 = sand.u32 %s169, 1
        %s308 = scalar_lea.sflag [#allocation12], %s307
        %s309 = sand.u32 %s169, 1
        %s310 = smul.addr %s309, 16
        %s311 = scalar_lea.vmem [#allocation11], %s310
        %s312 = smul.u32 2, %s33
        %s313 = smul.u32 2, %s33
        %v315 = vld [vmem:[%s268] sm:$0xf]
        %v316 = vunpack.c.l.bf16 %v315
        %v317 = vld [vmem:[#allocation7] sm:$0xf]
        %319 = vset.pattern.permute.xlu0 0
        %320 = vperm.xlu0 %319, %v317
        %v321 = vpop.permute.xlu0 %320
        %v323 = vunpack.c.l.s4 839922192
        %v324 = vunpack.c.0.s8 %v323
        %v325 = vlaneseq
        %v326 = vshrl.u32 %v325, 7
        %v327 = vsub.s32 %v324, %v326
        %v328 = vrot.slane %v321, %v327
        %v330 = vmul.f32 %v316, %v328
        %v331 = vld [vmem:[#allocation8] sm:$0xf]
        %333 = vset.pattern.permute.xlu0 0
        %334 = vperm.xlu0 %333, %v331
        %v335 = vpop.permute.xlu0 %334
        %v337 = vunpack.c.l.s4 839922192
        %v338 = vunpack.c.0.s8 %v337
        %v339 = vlaneseq
        %v340 = vshrl.u32 %v339, 7
        %v341 = vsub.s32 %v338, %v340
        %v342 = vrot.slane %v335, %v341
        %v344 = vadd.f32 %v330, %v342
        %v345 = vmax.f32 %v344, 0.0
        %v346 = vld [vmem:[#allocation5] sm:$0xf]
        %v347 = vld [vmem:[#allocation5 + $0x4] sm:$0xf]
        %v349 = vcombine.high %v345, %v345
        %v351 = vpack.c.bf16 %v345, %v345
        %v352 = vpack.c.bf16 %v349, %v349
        %v355 = vunpack.c.l.b16 %v346
        %v356 = vunpack.c.l.b16 %v347
        %v357 = vpack.c.b16 %v356, %v355
        %vm358 = vcmask 31744
        %v360 = vsel %vm358, %v357, 0
        %vm362 = vcmask 1041408
        %v364 = vsel %vm362, %v351, 0
        %v367 = vsel %vm362, %v352, 0
        %369 = vmatprep.subr.bf16.mxu0 %v367
        %370 = vmatpush1.bf16.msra.mxu0 %v364
        %371 = vmatprep.subr.bf16.mxu0 0
        %372 = vmatpush1.bf16.msra.mxu0 0
        %373 = vmatprep.subr.bf16.mxu0 0
        %374 = vmatpush1.bf16.msra.mxu0 0
        %375 = vmatprep.subr.bf16.mxu0 0
        %376 = vmatpush1.bf16.msra.mxu0 0
        %377 = vmatprep.subr.bf16.mxu0 0
        %378 = vmatpush1.bf16.msra.mxu0 0
        %379 = vmatprep.subr.bf16.mxu0 0
        %380 = vmatpush1.bf16.msra.mxu0 0
        %381 = vmatprep.subr.bf16.mxu0 0
        %382 = vmatpush1.bf16.msra.mxu0 0
        %383 = vmatprep.subr.bf16.mxu0 0
        %384 = vmatpush1.bf16.msra.mxu0 0
        %385 = vmatprep.subr.bf16.mxu0 0
        %386 = vmatpush1.bf16.msra.mxu0 0
        %387 = vmatprep.subr.bf16.mxu0 0
        %388 = vmatpush1.bf16.msra.mxu0 0
        %389 = vmatprep.subr.bf16.mxu0 0
        %390 = vmatpush1.bf16.msra.mxu0 0
        %391 = vmatprep.subr.bf16.mxu0 0
        %392 = vmatpush1.bf16.msra.mxu0 0
        %393 = vmatprep.subr.bf16.mxu0 0
        %394 = vmatpush1.bf16.msra.mxu0 0
        %395 = vmatprep.subr.bf16.mxu0 0
        %396 = vmatpush1.bf16.msra.mxu0 0
        %397 = vmatprep.subr.bf16.mxu0 0
        %398 = vmatpush1.bf16.msra.mxu0 0
        %399 = vmatprep.subr.bf16.mxu0 0
        %400 = vmatpush1.bf16.msra.mxu0 0
        %401 = vmatprep.mubr.bf16.mxu0 0
        %402 = vmatmul.mubr.bf16.gmra.mrb[0].mxu0 %v360
        %v403 = vpop.f32.mrb[0].mxu0
        %v404 = vadd.f32 0.0, %v403
        %v405 = vpop.f32.mrb[0].mxu0
        %v406 = vadd.f32 0.0, %v405
        %v407 = vpop.f32.mrb[0].mxu0
        %v408 = vadd.f32 0.0, %v407
        %v409 = vpop.f32.mrb[0].mxu0
        %v410 = vadd.f32 0.0, %v409
        %411 = vdwg.mxu0
        %v412 = vpack.c.bf16 %v408, %v404
        %v413 = vpack.c.bf16 %v410, %v406
        %v416 = vunpack.c.l.b16 %v412
        %v417 = vunpack.c.l.b16 %v413
        %v418 = vunpack.c.h.b16 %v412
        %v419 = vunpack.c.h.b16 %v413
        %v420 = vpack.c.b16 %v417, %v416
        %v421 = vpack.c.b16 %v419, %v418
        %424 = vst [vmem:[%s304] sm:$0xff] %v420
        %425 = vst [vmem:[%s304 + $0x8] sm:$0xff] %v421
        %v426 = vadd.f32 %v404, %v406
        %427 = vadd.xlane.f32.xlu0 %v426
        %v428 = vpop.xlane.xlu0 %427
        %v429 = vadd.f32 %v408, %v410
        %430 = vadd.xlane.f32.xlu0 %v429
        %v431 = vpop.xlane.xlu0 %430
        %vm432 = vcmask 7168
        %433 = vst.msk [vmem:[%s311] sm:$0xff] %vm432, %v428
        %434 = vst.msk [vmem:[%s311 + $0x8] sm:$0xff] %vm432, %v431
        %v435 = vmul.f32 %v404, %v404
        %v436 = vmul.f32 %v406, %v406
        %v437 = vmul.f32 %v408, %v408
        %v438 = vmul.f32 %v410, %v410
        %v439 = vadd.f32 %v435, %v436
        %440 = vadd.xlane.f32.xlu0 %v439
        %v441 = vpop.xlane.xlu0 %440
        %v442 = vadd.f32 %v437, %v438
        %443 = vadd.xlane.f32.xlu0 %v442
        %v444 = vpop.xlane.xlu0 %443
        %vm445 = vcmask 15368
        %446 = vst.msk [vmem:[%s311] sm:$0xff] %vm445, %v441
        %447 = vst.msk [vmem:[%s311 + $0x8] sm:$0xff] %vm445, %v444
        %s448 = sand.u32 %s141, 1
        %s449 = scalar_lea.sflag [#allocation4], %s448
        %s450 = sand.u32 %s141, 1
        %s451 = smul.addr %s450, 16
        %s452 = scalar_lea.vmem [#allocation10], %s451
        %s453 = sand.u32 %s169, 1
        %s454 = scalar_lea.sflag [#allocation12], %s453
        %s455 = sand.u32 %s169, 1
        %s456 = smul.addr %s455, 16
        %s457 = scalar_lea.vmem [#allocation11], %s456
        // Predicated region
        $region53: #{regular_bottleneck_forward.6} parent=35 // pred_check
          %p458 = pneg %p151
        $region54: #{regular_bottleneck_forward.6} parent=35 // pred_check_branch
          %460 = sbr.rel (%p458) target = $region56
        $region55: #{regular_bottleneck_forward.6} parent=35 // pred_region
          %s461 = smul.u32 2, %s33
          %s463 = ssub.s32 256, 256
          %464 = vsyncadd %s449, %s463
          %s465 = smul.addr %s32, 4
          %s466 = sadd.s32 %s461, %s465
          %s467 = smul.addr %s466, 64
          %s468 = scalar_lea.hbm %s4, %s467
          %s469 = sshll.u32 %s452, 4
          %s470 = int_to_ptr.vmem [resolvable:$true] %s469
          %475 = dma.vmem_to_hbm [thread:$0]  %s470, 256, %s468, %s449, 128, 128, 8
        $region56: #{regular_bottleneck_forward.6} parent=35 // pred_fallthru
          _
        // Predicated region
        $region57: #{regular_bottleneck_forward.6} parent=35 // pred_check
          %p476 = pneg %p179
        $region58: #{regular_bottleneck_forward.6} parent=35 // pred_check_branch
          %478 = sbr.rel (%p476) target = $region60
        $region59: #{regular_bottleneck_forward.6} parent=35 // pred_region
          %s480 = ssub.s32 256, 256
          %481 = vsyncadd %s454, %s480
          %s482 = smul.addr %s33, 2
          %s483 = smul.addr %s32, 2
          %s484 = sadd.s32 %s482, %s483
          %s485 = smul.addr %s484, 128
          %s486 = scalar_lea.hbm %s5, %s485
          %s487 = sshll.u32 %s457, 4
          %s488 = int_to_ptr.vmem [resolvable:$true] %s487
          %493 = dma.vmem_to_hbm [thread:$0]  %s488, 256, %s486, %s454, 128, 128, 8
        $region60: #{regular_bottleneck_forward.6} parent=35 // pred_fallthru
          _
      $region36: #{regular_bottleneck_forward.6} parent=5 // pred_fallthru
        _
      %p494 = scmp.le.s32.totalorder 2, %s23
      // Predicated region
      $region61: #{regular_bottleneck_forward.6} parent=5 // pred_check
        %p495 = pneg %p494
      $region62: #{regular_bottleneck_forward.6} parent=5 // pred_check_branch
        %497 = sbr.rel (%p495) target = $region64
      $region63: #{regular_bottleneck_forward.6} parent=5 // pred_region
        %s498 = ssub.s32 %s23, 2
        // Predicated region
        $region65: #{regular_bottleneck_forward.6} parent=63 // pred_check
          %p499 = pneg %p157
        $region66: #{regular_bottleneck_forward.6} parent=63 // pred_check_branch
          %501 = sbr.rel (%p499) target = $region68
        $region67: #{regular_bottleneck_forward.6} parent=63 // pred_region
          %s502 = sand.u32 %s142, 1
          %s503 = scalar_lea.sflag [#allocation4], %s502
          %s504 = sand.u32 %s142, 1
          %s505 = smul.addr %s504, 16
          %s506 = scalar_lea.vmem [#allocation10], %s505
          %507 = dma.done %s503, 256
        $region68: #{regular_bottleneck_forward.6} parent=63 // pred_fallthru
          _
        // Predicated region
        $region69: #{regular_bottleneck_forward.6} parent=63 // pred_check
          %p508 = pneg %p185
        $region70: #{regular_bottleneck_forward.6} parent=63 // pred_check_branch
          %510 = sbr.rel (%p508) target = $region72
        $region71: #{regular_bottleneck_forward.6} parent=63 // pred_region
          %s511 = sand.u32 %s170, 1
          %s512 = scalar_lea.sflag [#allocation12], %s511
          %s513 = sand.u32 %s170, 1
          %s514 = smul.addr %s513, 16
          %s515 = scalar_lea.vmem [#allocation11], %s514
          %516 = dma.done %s512, 256
        $region72: #{regular_bottleneck_forward.6} parent=63 // pred_fallthru
          _
      $region64: #{regular_bottleneck_forward.6} parent=5 // pred_fallthru
        _
    $region6: #{regular_bottleneck_forward.6} parent=1 // loop_footer
      %s27 = sadd.s32 1, %s23
    $region7: #{regular_bottleneck_forward.6} parent=1 // loop_footer_branch
      %22 = sbr.rel target = $region3
    $region8: #{regular_bottleneck_forward.6} parent=1 // loop_exit
      _
    %517 = vsyncpa [#allocation3], 1
    %s518 = scalar_lea.sflag [#allocation3], 1
    %519 = vsyncpa %s518, 1
    %520 = vsyncpa [#allocation6], 1
    %521 = vsyncpa [#allocation9], 1
    %522 = vsyncpa [#allocation4], 1
    %s523 = scalar_lea.sflag [#allocation4], 1
    %524 = vsyncpa %s523, 1
    %525 = vsyncpa [#allocation12], 1
    %s526 = scalar_lea.sflag [#allocation12], 1
    %527 = vsyncpa %s526, 1

// kernel: regular_bottleneck_forward.7
$region0: #{regular_bottleneck_forward.7}
  #allocation0 [shape = 'u32[]', space=smem, size = 0x4, offset = 0x4, fixed_abs, tag = 'smem constant byte address 0x4 - core index']
  #allocation1 [shape = 'u32[144,128]{1,0:T(1,128)}', space=vmem, size = 0x12000, scoped, tag = 'internal scratch']
  %s0 = inlined_call_operand.hbm [shape: bf16[2,16,256], index: 0, kind: input, shape index: {}]
  %s1 = inlined_call_operand.hbm [shape: f32[2,16,256], index: 1, kind: input, shape index: {}]
  %s2 = inlined_call_operand.hbm [shape: f32[16,1], index: 2, kind: input, shape index: {}]
  %s3 = inlined_call_operand.hbm [shape: f32[16,1], index: 3, kind: input, shape index: {}]
  %s4 = inlined_call_operand.hbm [shape: f32[2,16,256], index: 4, kind: output, shape index: {}]
  %s5 = sld [smem:[#allocation0]]
  $region65: #{regular_bottleneck_forward.7} parent=0
    _
  %s7 = ssub.s32 1, %s5
  %s8 = scalar_select 0, %s7, %s5
  $region1: #{regular_bottleneck_forward.7} parent=0
    #allocation2 [shape = 'u8[16384]{0}', space=vmem, size = 0x4000, scoped, tag = 'input window, operand 0']
    #allocation3 [shape = 's32[2]{0}', space=sflag, size = 0x8, scoped, tag = 'scoped memory for regular_bottleneck_forward.7']
    #allocation4 [shape = 's32[2]{0}', space=sflag, size = 0x8, scoped, tag = 'scoped memory for regular_bottleneck_forward.7']
    #allocation5 [shape = 'u8[32768]{0}', space=vmem, size = 0x8000, scoped, tag = 'input window, operand 1']
    #allocation6 [shape = 's32[2]{0}', space=sflag, size = 0x8, scoped, tag = 'scoped memory for regular_bottleneck_forward.7']
    #allocation7 [shape = 'u8[8192]{0}', space=vmem, size = 0x2000, scoped, tag = 'input window, operand 2, single buffered']
    #allocation8 [shape = 'u8[8192]{0}', space=vmem, size = 0x2000, scoped, tag = 'input window, operand 3, single buffered']
    #allocation9 [shape = 's32[1]{0}', space=sflag, size = 0x4, scoped, tag = 'scoped memory for regular_bottleneck_forward.7']
    #allocation10 [shape = 'u8[32768]{0}', space=vmem, size = 0x8000, scoped, tag = 'output window, operand 0']
    %9 = vsyncpa [#allocation3], 0
    %s10 = scalar_lea.sflag [#allocation3], 1
    %11 = vsyncpa %s10, 0
    %12 = vsyncpa [#allocation6], 0
    %s13 = scalar_lea.sflag [#allocation6], 1
    %14 = vsyncpa %s13, 0
    %15 = vsyncpa [#allocation9], 0
    %16 = vsyncpa [#allocation4], 0
    %s17 = scalar_lea.sflag [#allocation4], 1
    %18 = vsyncpa %s17, 0
    loop: start=0, step=1, limit=4
    $region2: #{regular_bottleneck_forward.7} parent=1 // loop_pre_header
      _
    $region3: #{regular_bottleneck_forward.7} parent=1 // loop_header
      %s20 = sphi 0, %s24
      %p21 = scmp.ge.s32.totalorder %s20, 4
      %s27 = sphi 0, %s39
      %s28 = sphi 0, %s35
      %s29 = sphi 0, %s27
      %s30 = sphi 0, %s28
      %s31 = sphi 0, %s29
      %s32 = sphi 0, %s30
      %s44 = sphi 0, %s46
      %s47 = sphi 0, %s44
      %s48 = sphi 0, %s47
      %s64 = sphi 0, %s48
      %s72 = sphi 0, %s74
      %s75 = sphi 0, %s72
      %s76 = sphi 0, %s75
      %s92 = sphi 0, %s76
      %s96 = sphi 0, %s96
      %s98 = sphi 0, %s96
      %s99 = sphi 0, %s98
      %s113 = sphi 0, %s99
      %s117 = sphi 0, %s117
      %s119 = sphi 0, %s117
      %s120 = sphi 0, %s119
      %s134 = sphi 0, %s120
      %s142 = sphi 0, %s144
      %s145 = sphi 0, %s142
      %s146 = sphi 0, %s145
      %s162 = sphi 0, %s146
    $region4: #{regular_bottleneck_forward.7} parent=1 // loop_header_branch
      %23 = sbr.rel (%p21) target = $region8
    $region5: #{regular_bottleneck_forward.7} parent=1 // loop_body
      %s25 = ssub.s32 %s20, 1
      %s26 = ssub.s32 %s20, 2
      %s33 = sadd.s32 1, %s28
      %p34 = scmp.ge.s32.totalorder %s33, 1
      %s35 = scalar_select %p34, 0, %s33
      %s36 = sadd.s32 1, %s27
      %s37 = scalar_select %p34, %s36, %s27
      %p38 = scmp.ge.s32.totalorder %s37, 2
      %s39 = scalar_select %p38, 0, %s37
      %s40 = ssub.s32 %s27, %s39
      %s41 = ssub.s32 %s28, %s35
      %s42 = sor.u32 %s40, %s41
      %p43 = scmp.eq.s32.totalorder %s42, 0
      %s45 = sadd.s32 %s44, 1
      %s46 = scalar_select %p43, %s44, %s45
      %p49 = pneg %p43
      %p50 = scmp.eq.s32.totalorder %s20, 1
      %p51 = por %p49, %p50
      %p52 = scmp.ne.s32.totalorder %s44, %s47
      %p53 = scmp.eq.s32.totalorder %s20, 0
      %p54 = por %p52, %p53
      %p55 = scmp.ne.s32.totalorder %s44, %s47
      %p56 = scmp.eq.s32.totalorder %s25, 1
      %p57 = por %p55, %p56
      %p58 = scmp.ne.s32.totalorder %s47, %s48
      %p59 = scmp.eq.s32.totalorder %s25, 0
      %p60 = por %p58, %p59
      %p61 = scmp.ne.s32.totalorder %s47, %s48
      %p62 = scmp.eq.s32.totalorder %s26, 1
      %p63 = por %p61, %p62
      %p65 = scmp.ne.s32.totalorder %s48, %s64
      %p66 = scmp.eq.s32.totalorder %s26, 0
      %p67 = por %p65, %p66
      %s68 = ssub.s32 %s27, %s39
      %s69 = ssub.s32 %s28, %s35
      %s70 = sor.u32 %s68, %s69
      %p71 = scmp.eq.s32.totalorder %s70, 0
      %s73 = sadd.s32 %s72, 1
      %s74 = scalar_select %p71, %s72, %s73
      %p77 = pneg %p71
      %p78 = scmp.eq.s32.totalorder %s20, 1
      %p79 = por %p77, %p78
      %p80 = scmp.ne.s32.totalorder %s72, %s75
      %p81 = scmp.eq.s32.totalorder %s20, 0
      %p82 = por %p80, %p81
      %p83 = scmp.ne.s32.totalorder %s72, %s75
      %p84 = scmp.eq.s32.totalorder %s25, 1
      %p85 = por %p83, %p84
      %p86 = scmp.ne.s32.totalorder %s75, %s76
      %p87 = scmp.eq.s32.totalorder %s25, 0
      %p88 = por %p86, %p87
      %p89 = scmp.ne.s32.totalorder %s75, %s76
      %p90 = scmp.eq.s32.totalorder %s26, 1
      %p91 = por %p89, %p90
      %p93 = scmp.ne.s32.totalorder %s76, %s92
      %p94 = scmp.eq.s32.totalorder %s26, 0
      %p95 = por %p93, %p94
      %s97 = sadd.s32 %s96, 1
      %p100 = scmp.eq.s32.totalorder %s20, 1
      %p101 = scmp.ne.s32.totalorder %s96, %s98
      %p102 = scmp.eq.s32.totalorder %s20, 0
      %p103 = por %p101, %p102
      %p104 = scmp.ne.s32.totalorder %s96, %s98
      %p105 = scmp.eq.s32.totalorder %s25, 1
      %p106 = por %p104, %p105
      %p107 = scmp.ne.s32.totalorder %s98, %s99
      %p108 = scmp.eq.s32.totalorder %s25, 0
      %p109 = por %p107, %p108
      %p110 = scmp.ne.s32.totalorder %s98, %s99
      %p111 = scmp.eq.s32.totalorder %s26, 1
      %p112 = por %p110, %p111
      %p114 = scmp.ne.s32.totalorder %s99, %s113
      %p115 = scmp.eq.s32.totalorder %s26, 0
      %p116 = por %p114, %p115
      %s118 = sadd.s32 %s117, 1
      %p121 = scmp.eq.s32.totalorder %s20, 1
      %p122 = scmp.ne.s32.totalorder %s117, %s119
      %p123 = scmp.eq.s32.totalorder %s20, 0
      %p124 = por %p122, %p123
      %p125 = scmp.ne.s32.totalorder %s117, %s119
      %p126 = scmp.eq.s32.totalorder %s25, 1
      %p127 = por %p125, %p126
      %p128 = scmp.ne.s32.totalorder %s119, %s120
      %p129 = scmp.eq.s32.totalorder %s25, 0
      %p130 = por %p128, %p129
      %p131 = scmp.ne.s32.totalorder %s119, %s120
      %p132 = scmp.eq.s32.totalorder %s26, 1
      %p133 = por %p131, %p132
      %p135 = scmp.ne.s32.totalorder %s120, %s134
      %p136 = scmp.eq.s32.totalorder %s26, 0
      %p137 = por %p135, %p136
      %s138 = ssub.s32 %s27, %s39
      %s139 = ssub.s32 %s28, %s35
      %s140 = sor.u32 %s138, %s139
      %p141 = scmp.eq.s32.totalorder %s140, 0
      %s143 = sadd.s32 %s142, 1
      %s144 = scalar_select %p141, %s142, %s143
      %p147 = pneg %p141
      %p148 = scmp.eq.s32.totalorder %s20, 1
      %p149 = por %p147, %p148
      %p150 = scmp.ne.s32.totalorder %s142, %s145
      %p151 = scmp.eq.s32.totalorder %s20, 0
      %p152 = por %p150, %p151
      %p153 = scmp.ne.s32.totalorder %s142, %s145
      %p154 = scmp.eq.s32.totalorder %s25, 1
      %p155 = por %p153, %p154
      %p156 = scmp.ne.s32.totalorder %s145, %s146
      %p157 = scmp.eq.s32.totalorder %s25, 0
      %p158 = por %p156, %p157
      %p159 = scmp.ne.s32.totalorder %s145, %s146
      %p160 = scmp.eq.s32.totalorder %s26, 1
      %p161 = por %p159, %p160
      %p163 = scmp.ne.s32.totalorder %s146, %s162
      %p164 = scmp.eq.s32.totalorder %s26, 0
      %p165 = por %p163, %p164
      %p166 = scmp.le.s32.totalorder 1, %s20
      %p167 = scmp.lt.s32.totalorder %s20, 3
      %p168 = pnand %p166, %p167
      %p169 = pneg %p168
      // Predicated region
      $region9: #{regular_bottleneck_forward.7} parent=5 // pred_check
        _
      $region10: #{regular_bottleneck_forward.7} parent=5 // pred_check_branch
        %171 = sbr.rel (%p168) target = $region12
      $region11: #{regular_bottleneck_forward.7} parent=5 // pred_region
        %s172 = ssub.s32 %s20, 1
        // Predicated region
        $region13: #{regular_bottleneck_forward.7} parent=11 // pred_check
          %p173 = pneg %p109
        $region14: #{regular_bottleneck_forward.7} parent=11 // pred_check_branch
          %175 = sbr.rel (%p173) target = $region16
        $region15: #{regular_bottleneck_forward.7} parent=11 // pred_region
          %s177 = ssub.s32 256, 256
          %178 = vsyncadd [#allocation6], %s177
          %s179 = sshll.u32 [#allocation7], 4
          %s180 = int_to_ptr.vmem [resolvable:$true] %s179
          %185 = dma.hbm_to_vmem [thread:$0]  %s2, 256, %s180, [#allocation6], 128, 128, 8
        $region16: #{regular_bottleneck_forward.7} parent=11 // pred_fallthru
          _
        // Predicated region
        $region17: #{regular_bottleneck_forward.7} parent=11 // pred_check
          %p186 = pneg %p130
        $region18: #{regular_bottleneck_forward.7} parent=11 // pred_check_branch
          %188 = sbr.rel (%p186) target = $region20
        $region19: #{regular_bottleneck_forward.7} parent=11 // pred_region
          %s190 = ssub.s32 256, 256
          %191 = vsyncadd [#allocation9], %s190
          %s192 = sshll.u32 [#allocation8], 4
          %s193 = int_to_ptr.vmem [resolvable:$true] %s192
          %198 = dma.hbm_to_vmem [thread:$0]  %s3, 256, %s193, [#allocation9], 128, 128, 8
        $region20: #{regular_bottleneck_forward.7} parent=11 // pred_fallthru
          _
      $region12: #{regular_bottleneck_forward.7} parent=5 // pred_fallthru
        _
      %p199 = scmp.lt.s32.totalorder %s20, 2
      // Predicated region
      $region21: #{regular_bottleneck_forward.7} parent=5 // pred_check
        %p200 = pneg %p199
      $region22: #{regular_bottleneck_forward.7} parent=5 // pred_check_branch
        %202 = sbr.rel (%p200) target = $region24
      $region23: #{regular_bottleneck_forward.7} parent=5 // pred_region
        // Predicated region
        $region25: #{regular_bottleneck_forward.7} parent=23 // pred_check
          %p203 = pneg %p54
        $region26: #{regular_bottleneck_forward.7} parent=23 // pred_check_branch
          %205 = sbr.rel (%p203) target = $region28
        $region27: #{regular_bottleneck_forward.7} parent=23 // pred_region
          %s206 = sand.u32 %s44, 1
          %s207 = scalar_lea.sflag [#allocation3], %s206
          %s208 = sand.u32 %s44, 1
          %s209 = smul.addr %s208, 16
          %s210 = scalar_lea.vmem [#allocation2], %s209
          %s211 = smul.u32 2, %s28
          %s213 = ssub.s32 256, 256
          %214 = vsyncadd %s207, %s213
          %s215 = smul.addr %s27, 4
          %s216 = sadd.s32 %s211, %s215
          %s217 = smul.addr %s216, 64
          %s218 = scalar_lea.hbm %s0, %s217
          %s219 = sshll.u32 %s210, 4
          %s220 = int_to_ptr.vmem [resolvable:$true] %s219
          %225 = dma.hbm_to_vmem [thread:$0]  %s218, 256, %s220, %s207, 128, 128, 8
        $region28: #{regular_bottleneck_forward.7} parent=23 // pred_fallthru
          _
        // Predicated region
        $region29: #{regular_bottleneck_forward.7} parent=23 // pred_check
          %p226 = pneg %p82
        $region30: #{regular_bottleneck_forward.7} parent=23 // pred_check_branch
          %228 = sbr.rel (%p226) target = $region32
        $region31: #{regular_bottleneck_forward.7} parent=23 // pred_region
          %s229 = sand.u32 %s20, 1
          %s230 = scalar_lea.sflag [#allocation6], %s229
          %s231 = sand.u32 %s72, 1
          %s232 = smul.addr %s231, 32
          %s233 = scalar_lea.vmem [#allocation5], %s232
          %s234 = smul.u32 2, %s28
          %s236 = ssub.s32 512, 512
          %237 = vsyncadd %s230, %s236
          %s238 = smul.addr %s27, 4
          %s239 = sadd.s32 %s234, %s238
          %s240 = smul.addr %s239, 128
          %s241 = scalar_lea.hbm %s1, %s240
          %s242 = sshll.u32 %s233, 4
          %s243 = int_to_ptr.vmem [resolvable:$true] %s242
          %248 = dma.hbm_to_vmem [thread:$0]  %s241, 512, %s243, %s230, 256, 256, 16
        $region32: #{regular_bottleneck_forward.7} parent=23 // pred_fallthru
          _
      $region24: #{regular_bottleneck_forward.7} parent=5 // pred_fallthru
        _
      %p249 = scmp.le.s32.totalorder 1, %s20
      %p250 = scmp.lt.s32.totalorder %s20, 3
      %p251 = pnand %p249, %p250
      %p252 = pneg %p251
      // Predicated region
      $region33: #{regular_bottleneck_forward.7} parent=5 // pred_check
        _
      $region34: #{regular_bottleneck_forward.7} parent=5 // pred_check_branch
        %254 = sbr.rel (%p251) target = $region36
      $region35: #{regular_bottleneck_forward.7} parent=5 // pred_region
        %s255 = ssub.s32 %s20, 1
        %s256 = sand.u32 %s47, 1
        %s257 = scalar_lea.sflag [#allocation3], %s256
        %s258 = sand.u32 %s47, 1
        %s259 = smul.addr %s258, 16
        %s260 = scalar_lea.vmem [#allocation2], %s259
        // Predicated region
        $region37: #{regular_bottleneck_forward.7} parent=35 // pred_check
          %p261 = pneg %p60
        $region38: #{regular_bottleneck_forward.7} parent=35 // pred_check_branch
          %263 = sbr.rel (%p261) target = $region40
        $region39: #{regular_bottleneck_forward.7} parent=35 // pred_region
          %264 = dma.done %s257, 256
        $region40: #{regular_bottleneck_forward.7} parent=35 // pred_fallthru
          _
        %s265 = sand.u32 %s25, 1
        %s266 = scalar_lea.sflag [#allocation6], %s265
        %s267 = sand.u32 %s75, 1
        %s268 = smul.addr %s267, 32
        %s269 = scalar_lea.vmem [#allocation5], %s268
        // Predicated region
        $region41: #{regular_bottleneck_forward.7} parent=35 // pred_check
          %p270 = pneg %p88
        $region42: #{regular_bottleneck_forward.7} parent=35 // pred_check_branch
          %272 = sbr.rel (%p270) target = $region44
        $region43: #{regular_bottleneck_forward.7} parent=35 // pred_region
          %273 = dma.done %s266, 512
        $region44: #{regular_bottleneck_forward.7} parent=35 // pred_fallthru
          _
        // Predicated region
        $region45: #{regular_bottleneck_forward.7} parent=35 // pred_check
          %p274 = pneg %p109
        $region46: #{regular_bottleneck_forward.7} parent=35 // pred_check_branch
          %276 = sbr.rel (%p274) target = $region48
        $region47: #{regular_bottleneck_forward.7} parent=35 // pred_region
          %277 = dma.done [#allocation6], 256
        $region48: #{regular_bottleneck_forward.7} parent=35 // pred_fallthru
          _
        // Predicated region
        $region49: #{regular_bottleneck_forward.7} parent=35 // pred_check
          %p278 = pneg %p130
        $region50: #{regular_bottleneck_forward.7} parent=35 // pred_check_branch
          %280 = sbr.rel (%p278) target = $region52
        $region51: #{regular_bottleneck_forward.7} parent=35 // pred_region
          %281 = dma.done [#allocation9], 256
        $region52: #{regular_bottleneck_forward.7} parent=35 // pred_fallthru
          _
        %s282 = sand.u32 %s47, 1
        %s283 = scalar_lea.sflag [#allocation3], %s282
        %s284 = sand.u32 %s47, 1
        %s285 = smul.addr %s284, 16
        %s286 = scalar_lea.vmem [#allocation2], %s285
        %p287 = pneg %p60
        %p288 = pneg %p57
        %s289 = sand.u32 %s25, 1
        %s290 = scalar_lea.sflag [#allocation6], %s289
        %s291 = sand.u32 %s75, 1
        %s292 = smul.addr %s291, 32
        %s293 = scalar_lea.vmem [#allocation5], %s292
        %p294 = pneg %p88
        %p295 = pneg %p85
        %p296 = pneg %p109
        %p297 = pneg %p106
        %p298 = pneg %p130
        %p299 = pneg %p127
        %p300 = pneg %p158
        %p301 = pneg %p155
        %s302 = sand.u32 %s145, 1
        %s303 = scalar_lea.sflag [#allocation4], %s302
        %s304 = sand.u32 %s145, 1
        %s305 = smul.addr %s304, 32
        %s306 = scalar_lea.vmem [#allocation10], %s305
        %s307 = smul.u32 2, %s30
        %s308 = smul.u32 2, %s30
        %s309 = smul.u32 2, %s30
        %v310 = vld [vmem:[%s260] sm:$0xff]
        %v311 = vld [vmem:[%s260 + $0x8] sm:$0xff]
        %v312 = vunpack.c.l.bf16 %v310
        %v313 = vunpack.c.h.bf16 %v310
        %v314 = vunpack.c.l.bf16 %v311
        %v315 = vunpack.c.h.bf16 %v311
        %v316 = vld [vmem:[#allocation7] sm:$0xff]
        %v317 = vld [vmem:[#allocation7 + $0x8] sm:$0xff]
        %319 = vset.pattern.permute.xlu0 0
        %320 = vperm.xlu0 %319, %v316
        %v321 = vpop.permute.xlu0 %320
        %324 = vset.pattern.permute.xlu0 0
        %325 = vperm.xlu0 %324, %v317
        %v326 = vpop.permute.xlu0 %325
        %v328 = vmul.f32 %v312, %v321
        %v329 = vmul.f32 %v313, %v321
        %v330 = vmul.f32 %v314, %v326
        %v331 = vmul.f32 %v315, %v326
        %v332 = vld [vmem:[#allocation8] sm:$0xff]
        %v333 = vld [vmem:[#allocation8 + $0x8] sm:$0xff]
        %335 = vset.pattern.permute.xlu0 0
        %336 = vperm.xlu0 %335, %v332
        %v337 = vpop.permute.xlu0 %336
        %340 = vset.pattern.permute.xlu0 0
        %341 = vperm.xlu0 %340, %v333
        %v342 = vpop.permute.xlu0 %341
        %v344 = vadd.f32 %v328, %v337
        %v345 = vadd.f32 %v329, %v337
        %v346 = vadd.f32 %v330, %v342
        %v347 = vadd.f32 %v331, %v342
        %v348 = vmax.f32 %v344, 0.0
        %v349 = vmax.f32 %v345, 0.0
        %v350 = vmax.f32 %v346, 0.0
        %v351 = vmax.f32 %v347, 0.0
        %v352 = vld [vmem:[%s269] sm:$0xff]
        %v353 = vld [vmem:[%s269 + $0x8] sm:$0xff]
        %v354 = vld [vmem:[%s269 + $0x10] sm:$0xff]
        %v355 = vld [vmem:[%s269 + $0x18] sm:$0xff]
        %v356 = vadd.f32 %v348, %v352
        %v357 = vadd.f32 %v349, %v353
        %v358 = vadd.f32 %v350, %v354
        %v359 = vadd.f32 %v351, %v355
        %v360 = vmax.f32 %v356, 0.0
        %v361 = vmax.f32 %v357, 0.0
        %v362 = vmax.f32 %v358, 0.0
        %v363 = vmax.f32 %v359, 0.0
        %364 = vst [vmem:[%s306] sm:$0xff] %v360
        %365 = vst [vmem:[%s306 + $0x8] sm:$0xff] %v361
        %366 = vst [vmem:[%s306 + $0x10] sm:$0xff] %v362
        %367 = vst [vmem:[%s306 + $0x18] sm:$0xff] %v363
        %s368 = sand.u32 %s145, 1
        %s369 = scalar_lea.sflag [#allocation4], %s368
        %s370 = sand.u32 %s145, 1
        %s371 = smul.addr %s370, 32
        %s372 = scalar_lea.vmem [#allocation10], %s371
        // Predicated region
        $region53: #{regular_bottleneck_forward.7} parent=35 // pred_check
          %p373 = pneg %p155
        $region54: #{regular_bottleneck_forward.7} parent=35 // pred_check_branch
          %375 = sbr.rel (%p373) target = $region56
        $region55: #{regular_bottleneck_forward.7} parent=35 // pred_region
          %s376 = smul.u32 2, %s30
          %s378 = ssub.s32 512, 512
          %379 = vsyncadd %s369, %s378
          %s380 = smul.addr %s29, 4
          %s381 = sadd.s32 %s376, %s380
          %s382 = smul.addr %s381, 128
          %s383 = scalar_lea.hbm %s4, %s382
          %s384 = sshll.u32 %s372, 4
          %s385 = int_to_ptr.vmem [resolvable:$true] %s384
          %390 = dma.vmem_to_hbm [thread:$0]  %s385, 512, %s383, %s369, 256, 256, 16
        $region56: #{regular_bottleneck_forward.7} parent=35 // pred_fallthru
          _
      $region36: #{regular_bottleneck_forward.7} parent=5 // pred_fallthru
        _
      %p391 = scmp.le.s32.totalorder 2, %s20
      // Predicated region
      $region57: #{regular_bottleneck_forward.7} parent=5 // pred_check
        %p392 = pneg %p391
      $region58: #{regular_bottleneck_forward.7} parent=5 // pred_check_branch
        %394 = sbr.rel (%p392) target = $region60
      $region59: #{regular_bottleneck_forward.7} parent=5 // pred_region
        %s395 = ssub.s32 %s20, 2
        // Predicated region
        $region61: #{regular_bottleneck_forward.7} parent=59 // pred_check
          %p396 = pneg %p161
        $region62: #{regular_bottleneck_forward.7} parent=59 // pred_check_branch
          %398 = sbr.rel (%p396) target = $region64
        $region63: #{regular_bottleneck_forward.7} parent=59 // pred_region
          %s399 = sand.u32 %s146, 1
          %s400 = scalar_lea.sflag [#allocation4], %s399
          %s401 = sand.u32 %s146, 1
          %s402 = smul.addr %s401, 32
          %s403 = scalar_lea.vmem [#allocation10], %s402
          %404 = dma.done %s400, 512
        $region64: #{regular_bottleneck_forward.7} parent=59 // pred_fallthru
          _
      $region60: #{regular_bottleneck_forward.7} parent=5 // pred_fallthru
        _
    $region6: #{regular_bottleneck_forward.7} parent=1 // loop_footer
      %s24 = sadd.s32 1, %s20
    $region7: #{regular_bottleneck_forward.7} parent=1 // loop_footer_branch
      %19 = sbr.rel target = $region3
    $region8: #{regular_bottleneck_forward.7} parent=1 // loop_exit
      _
    %405 = vsyncpa [#allocation3], 1
    %s406 = scalar_lea.sflag [#allocation3], 1
    %407 = vsyncpa %s406, 1
    %408 = vsyncpa [#allocation6], 1
    %s409 = scalar_lea.sflag [#allocation6], 1
    %410 = vsyncpa %s409, 1
    %411 = vsyncpa [#allocation9], 1
    %412 = vsyncpa [#allocation4], 1
    %s413 = scalar_lea.sflag [#allocation4], 1
    %414 = vsyncpa %s413, 1

// kernel: regular_bottleneck_forward.5
$region0: #{regular_bottleneck_forward.5}
  #allocation0 [shape = 'u32[]', space=smem, size = 0x4, offset = 0x4, fixed_abs, tag = 'smem constant byte address 0x4 - core index']
  #allocation1 [shape = 'u32[144,128]{1,0:T(1,128)}', space=vmem, size = 0x12000, scoped, tag = 'internal scratch']
  #allocation2 [shape = 'bf16[4,18,18]{2,1,0:T(8,128)(2,1)}', space=vmem, size = 0x6000, scoped, tag = 'scratch operand']
  #allocation3 [shape = 'bf16[144,256]{1,0:T(16,128)(2,1)}', space=vmem, size = 0x12000, scoped, tag = 'scratch operand']
  %s0 = inlined_call_operand.hbm [shape: bf16[2,4,256], index: 0, kind: input, shape index: {}]
  %s1 = inlined_call_operand.hbm [shape: bf16[4,144], index: 1, kind: input, shape index: {}]
  %s2 = inlined_call_operand.hbm [shape: f32[4,1], index: 2, kind: input, shape index: {}]
  %s3 = inlined_call_operand.hbm [shape: f32[4,1], index: 3, kind: input, shape index: {}]
  %s4 = inlined_call_operand.hbm [shape: bf16[2,4,256], index: 4, kind: output, shape index: {0}]
  %s5 = inlined_call_operand.hbm [shape: f32[2,1,4,2], index: 5, kind: output, shape index: {1}]
  %6 = xla_tuple %s4, %s5
  %s7 = sld [smem:[#allocation0]]
  $region73: #{regular_bottleneck_forward.5} parent=0
    _
  %s9 = ssub.s32 1, %s7
  %s10 = scalar_select 0, %s9, %s7
  $region1: #{regular_bottleneck_forward.5} parent=0
    #allocation4 [shape = 'u8[4096]{0}', space=vmem, size = 0x1000, scoped, tag = 'input window, operand 0']
    #allocation5 [shape = 's32[2]{0}', space=sflag, size = 0x8, scoped, tag = 'scoped memory for regular_bottleneck_forward.5']
    #allocation6 [shape = 's32[2]{0}', space=sflag, size = 0x8, scoped, tag = 'scoped memory for regular_bottleneck_forward.5']
    #allocation7 [shape = 'u8[2048]{0}', space=vmem, size = 0x800, scoped, tag = 'input window, operand 1, single buffered']
    #allocation8 [shape = 's32[1]{0}', space=sflag, size = 0x4, scoped, tag = 'scoped memory for regular_bottleneck_forward.5']
    #allocation9 [shape = 'u8[2048]{0}', space=vmem, size = 0x800, scoped, tag = 'input window, operand 2, single buffered']
    #allocation10 [shape = 'u8[2048]{0}', space=vmem, size = 0x800, scoped, tag = 'input window, operand 3, single buffered']
    #allocation11 [shape = 's32[1]{0}', space=sflag, size = 0x4, scoped, tag = 'scoped memory for regular_bottleneck_forward.5']
    #allocation12 [shape = 'u8[4096]{0}', space=vmem, size = 0x1000, scoped, tag = 'output window, operand 0']
    #allocation13 [shape = 'u8[4096]{0}', space=vmem, size = 0x1000, scoped, tag = 'output window, operand 1']
    #allocation14 [shape = 's32[2]{0}', space=sflag, size = 0x8, scoped, tag = 'scoped memory for regular_bottleneck_forward.5']
    %11 = vsyncpa [#allocation5], 0
    %s12 = scalar_lea.sflag [#allocation5], 1
    %13 = vsyncpa %s12, 0
    %14 = vsyncpa [#allocation8], 0
    %15 = vsyncpa [#allocation11], 0
    %16 = vsyncpa [#allocation6], 0
    %s17 = scalar_lea.sflag [#allocation6], 1
    %18 = vsyncpa %s17, 0
    %19 = vsyncpa [#allocation14], 0
    %s20 = scalar_lea.sflag [#allocation14], 1
    %21 = vsyncpa %s20, 0
    loop: start=0, step=1, limit=4
    $region2: #{regular_bottleneck_forward.5} parent=1 // loop_pre_header
      _
    $region3: #{regular_bottleneck_forward.5} parent=1 // loop_header
      %s23 = sphi 0, %s27
      %p24 = scmp.ge.s32.totalorder %s23, 4
      %s33 = sphi 0, %s35
      %s36 = sphi 0, %s33
      %s37 = sphi 0, %s36
      %s53 = sphi 0, %s37
      %s57 = sphi 0, %s57
      %s59 = sphi 0, %s57
      %s60 = sphi 0, %s59
      %s74 = sphi 0, %s60
      %s78 = sphi 0, %s78
      %s80 = sphi 0, %s78
      %s81 = sphi 0, %s80
      %s95 = sphi 0, %s81
      %s99 = sphi 0, %s99
      %s101 = sphi 0, %s99
      %s102 = sphi 0, %s101
      %s116 = sphi 0, %s102
      %s122 = sphi 0, %s124
      %s125 = sphi 0, %s122
      %s126 = sphi 0, %s125
      %s142 = sphi 0, %s126
      %s148 = sphi 0, %s150
      %s151 = sphi 0, %s148
      %s152 = sphi 0, %s151
      %s168 = sphi 0, %s152
    $region4: #{regular_bottleneck_forward.5} parent=1 // loop_header_branch
      %26 = sbr.rel (%p24) target = $region8
    $region5: #{regular_bottleneck_forward.5} parent=1 // loop_body
      %s28 = ssub.s32 %s23, 1
      %s29 = ssub.s32 %s23, 2
      %s30 = sadd.s32 %s23, 1
      %s31 = ssub.s32 %s23, %s30
      %p32 = scmp.eq.s32.totalorder %s31, 0
      %s34 = sadd.s32 %s33, 1
      %s35 = scalar_select %p32, %s33, %s34
      %p38 = pneg %p32
      %p39 = scmp.eq.s32.totalorder %s23, 1
      %p40 = por %p38, %p39
      %p41 = scmp.ne.s32.totalorder %s33, %s36
      %p42 = scmp.eq.s32.totalorder %s23, 0
      %p43 = por %p41, %p42
      %p44 = scmp.ne.s32.totalorder %s33, %s36
      %p45 = scmp.eq.s32.totalorder %s28, 1
      %p46 = por %p44, %p45
      %p47 = scmp.ne.s32.totalorder %s36, %s37
      %p48 = scmp.eq.s32.totalorder %s28, 0
      %p49 = por %p47, %p48
      %p50 = scmp.ne.s32.totalorder %s36, %s37
      %p51 = scmp.eq.s32.totalorder %s29, 1
      %p52 = por %p50, %p51
      %p54 = scmp.ne.s32.totalorder %s37, %s53
      %p55 = scmp.eq.s32.totalorder %s29, 0
      %p56 = por %p54, %p55
      %s58 = sadd.s32 %s57, 1
      %p61 = scmp.eq.s32.totalorder %s23, 1
      %p62 = scmp.ne.s32.totalorder %s57, %s59
      %p63 = scmp.eq.s32.totalorder %s23, 0
      %p64 = por %p62, %p63
      %p65 = scmp.ne.s32.totalorder %s57, %s59
      %p66 = scmp.eq.s32.totalorder %s28, 1
      %p67 = por %p65, %p66
      %p68 = scmp.ne.s32.totalorder %s59, %s60
      %p69 = scmp.eq.s32.totalorder %s28, 0
      %p70 = por %p68, %p69
      %p71 = scmp.ne.s32.totalorder %s59, %s60
      %p72 = scmp.eq.s32.totalorder %s29, 1
      %p73 = por %p71, %p72
      %p75 = scmp.ne.s32.totalorder %s60, %s74
      %p76 = scmp.eq.s32.totalorder %s29, 0
      %p77 = por %p75, %p76
      %s79 = sadd.s32 %s78, 1
      %p82 = scmp.eq.s32.totalorder %s23, 1
      %p83 = scmp.ne.s32.totalorder %s78, %s80
      %p84 = scmp.eq.s32.totalorder %s23, 0
      %p85 = por %p83, %p84
      %p86 = scmp.ne.s32.totalorder %s78, %s80
      %p87 = scmp.eq.s32.totalorder %s28, 1
      %p88 = por %p86, %p87
      %p89 = scmp.ne.s32.totalorder %s80, %s81
      %p90 = scmp.eq.s32.totalorder %s28, 0
      %p91 = por %p89, %p90
      %p92 = scmp.ne.s32.totalorder %s80, %s81
      %p93 = scmp.eq.s32.totalorder %s29, 1
      %p94 = por %p92, %p93
      %p96 = scmp.ne.s32.totalorder %s81, %s95
      %p97 = scmp.eq.s32.totalorder %s29, 0
      %p98 = por %p96, %p97
      %s100 = sadd.s32 %s99, 1
      %p103 = scmp.eq.s32.totalorder %s23, 1
      %p104 = scmp.ne.s32.totalorder %s99, %s101
      %p105 = scmp.eq.s32.totalorder %s23, 0
      %p106 = por %p104, %p105
      %p107 = scmp.ne.s32.totalorder %s99, %s101
      %p108 = scmp.eq.s32.totalorder %s28, 1
      %p109 = por %p107, %p108
      %p110 = scmp.ne.s32.totalorder %s101, %s102
      %p111 = scmp.eq.s32.totalorder %s28, 0
      %p112 = por %p110, %p111
      %p113 = scmp.ne.s32.totalorder %s101, %s102
      %p114 = scmp.eq.s32.totalorder %s29, 1
      %p115 = por %p113, %p114
      %p117 = scmp.ne.s32.totalorder %s102, %s116
      %p118 = scmp.eq.s32.totalorder %s29, 0
      %p119 = por %p117, %p118
      %s120 = ssub.s32 %s23, %s30
      %p121 = scmp.eq.s32.totalorder %s120, 0
      %s123 = sadd.s32 %s122, 1
      %s124 = scalar_select %p121, %s122, %s123
      %p127 = pneg %p121
      %p128 = scmp.eq.s32.totalorder %s23, 1
      %p129 = por %p127, %p128
      %p130 = scmp.ne.s32.totalorder %s122, %s125
      %p131 = scmp.eq.s32.totalorder %s23, 0
      %p132 = por %p130, %p131
      %p133 = scmp.ne.s32.totalorder %s122, %s125
      %p134 = scmp.eq.s32.totalorder %s28, 1
      %p135 = por %p133, %p134
      %p136 = scmp.ne.s32.totalorder %s125, %s126
      %p137 = scmp.eq.s32.totalorder %s28, 0
      %p138 = por %p136, %p137
      %p139 = scmp.ne.s32.totalorder %s125, %s126
      %p140 = scmp.eq.s32.totalorder %s29, 1
      %p141 = por %p139, %p140
      %p143 = scmp.ne.s32.totalorder %s126, %s142
      %p144 = scmp.eq.s32.totalorder %s29, 0
      %p145 = por %p143, %p144
      %s146 = ssub.s32 %s23, %s30
      %p147 = scmp.eq.s32.totalorder %s146, 0
      %s149 = sadd.s32 %s148, 1
      %s150 = scalar_select %p147, %s148, %s149
      %p153 = pneg %p147
      %p154 = scmp.eq.s32.totalorder %s23, 1
      %p155 = por %p153, %p154
      %p156 = scmp.ne.s32.totalorder %s148, %s151
      %p157 = scmp.eq.s32.totalorder %s23, 0
      %p158 = por %p156, %p157
      %p159 = scmp.ne.s32.totalorder %s148, %s151
      %p160 = scmp.eq.s32.totalorder %s28, 1
      %p161 = por %p159, %p160
      %p162 = scmp.ne.s32.totalorder %s151, %s152
      %p163 = scmp.eq.s32.totalorder %s28, 0
      %p164 = por %p162, %p163
      %p165 = scmp.ne.s32.totalorder %s151, %s152
      %p166 = scmp.eq.s32.totalorder %s29, 1
      %p167 = por %p165, %p166
      %p169 = scmp.ne.s32.totalorder %s152, %s168
      %p170 = scmp.eq.s32.totalorder %s29, 0
      %p171 = por %p169, %p170
      %p172 = scmp.le.s32.totalorder 1, %s23
      %p173 = scmp.lt.s32.totalorder %s23, 3
      %p174 = pnand %p172, %p173
      %p175 = pneg %p174
      // Predicated region
      $region9: #{regular_bottleneck_forward.5} parent=5 // pred_check
        _
      $region10: #{regular_bottleneck_forward.5} parent=5 // pred_check_branch
        %177 = sbr.rel (%p174) target = $region12
      $region11: #{regular_bottleneck_forward.5} parent=5 // pred_region
        %s178 = ssub.s32 %s23, 1
        // Predicated region
        $region13: #{regular_bottleneck_forward.5} parent=11 // pred_check
          %p179 = pneg %p70
        $region14: #{regular_bottleneck_forward.5} parent=11 // pred_check_branch
          %181 = sbr.rel (%p179) target = $region16
        $region15: #{regular_bottleneck_forward.5} parent=11 // pred_region
          %s183 = ssub.s32 64, 64
          %184 = vsyncadd [#allocation8], %s183
          %s186 = sshll.u32 [#allocation7], 4
          %s187 = int_to_ptr.vmem [resolvable:$true] %s186
          %189 = dma.hbm_to_vmem [thread:$0]  %s1, 64, %s187, [#allocation8]
        $region16: #{regular_bottleneck_forward.5} parent=11 // pred_fallthru
          _
        // Predicated region
        $region17: #{regular_bottleneck_forward.5} parent=11 // pred_check
          %p190 = pneg %p91
        $region18: #{regular_bottleneck_forward.5} parent=11 // pred_check_branch
          %192 = sbr.rel (%p190) target = $region20
        $region19: #{regular_bottleneck_forward.5} parent=11 // pred_region
          %s194 = ssub.s32 64, 64
          %195 = vsyncadd [#allocation8], %s194
          %s197 = sshll.u32 [#allocation9], 4
          %s198 = int_to_ptr.vmem [resolvable:$true] %s197
          %200 = dma.hbm_to_vmem [thread:$0]  %s2, 64, %s198, [#allocation8]
        $region20: #{regular_bottleneck_forward.5} parent=11 // pred_fallthru
          _
        // Predicated region
        $region21: #{regular_bottleneck_forward.5} parent=11 // pred_check
          %p201 = pneg %p112
        $region22: #{regular_bottleneck_forward.5} parent=11 // pred_check_branch
          %203 = sbr.rel (%p201) target = $region24
        $region23: #{regular_bottleneck_forward.5} parent=11 // pred_region
          %s205 = ssub.s32 64, 64
          %206 = vsyncadd [#allocation11], %s205
          %s208 = sshll.u32 [#allocation10], 4
          %s209 = int_to_ptr.vmem [resolvable:$true] %s208
          %211 = dma.hbm_to_vmem [thread:$0]  %s3, 64, %s209, [#allocation11]
        $region24: #{regular_bottleneck_forward.5} parent=11 // pred_fallthru
          _
      $region12: #{regular_bottleneck_forward.5} parent=5 // pred_fallthru
        _
      %p212 = scmp.lt.s32.totalorder %s23, 2
      // Predicated region
      $region25: #{regular_bottleneck_forward.5} parent=5 // pred_check
        %p213 = pneg %p212
      $region26: #{regular_bottleneck_forward.5} parent=5 // pred_check_branch
        %215 = sbr.rel (%p213) target = $region28
      $region27: #{regular_bottleneck_forward.5} parent=5 // pred_region
        // Predicated region
        $region29: #{regular_bottleneck_forward.5} parent=27 // pred_check
          %p216 = pneg %p43
        $region30: #{regular_bottleneck_forward.5} parent=27 // pred_check_branch
          %218 = sbr.rel (%p216) target = $region32
        $region31: #{regular_bottleneck_forward.5} parent=27 // pred_region
          %s219 = sand.u32 %s33, 1
          %s220 = scalar_lea.sflag [#allocation5], %s219
          %s221 = sand.u32 %s33, 1
          %s222 = smul.addr %s221, 4
          %s223 = scalar_lea.vmem [#allocation4], %s222
          %s225 = ssub.s32 64, 64
          %226 = vsyncadd %s220, %s225
          %s227 = smul.addr %s23, 2
          %s228 = smul.addr %s227, 32
          %s229 = scalar_lea.hbm %s0, %s228
          %s231 = sshll.u32 %s223, 4
          %s232 = int_to_ptr.vmem [resolvable:$true] %s231
          %234 = dma.hbm_to_vmem [thread:$0]  %s229, 64, %s232, %s220
        $region32: #{regular_bottleneck_forward.5} parent=27 // pred_fallthru
          _
      $region28: #{regular_bottleneck_forward.5} parent=5 // pred_fallthru
        _
      %p235 = scmp.le.s32.totalorder 1, %s23
      %p236 = scmp.lt.s32.totalorder %s23, 3
      %p237 = pnand %p235, %p236
      %p238 = pneg %p237
      // Predicated region
      $region33: #{regular_bottleneck_forward.5} parent=5 // pred_check
        _
      $region34: #{regular_bottleneck_forward.5} parent=5 // pred_check_branch
        %240 = sbr.rel (%p237) target = $region36
      $region35: #{regular_bottleneck_forward.5} parent=5 // pred_region
        %s241 = ssub.s32 %s23, 1
        %s242 = sand.u32 %s36, 1
        %s243 = scalar_lea.sflag [#allocation5], %s242
        %s244 = sand.u32 %s36, 1
        %s245 = smul.addr %s244, 4
        %s246 = scalar_lea.vmem [#allocation4], %s245
        // Predicated region
        $region37: #{regular_bottleneck_forward.5} parent=35 // pred_check
          %p247 = pneg %p49
        $region38: #{regular_bottleneck_forward.5} parent=35 // pred_check_branch
          %249 = sbr.rel (%p247) target = $region40
        $region39: #{regular_bottleneck_forward.5} parent=35 // pred_region
          %250 = dma.done %s243, 64
        $region40: #{regular_bottleneck_forward.5} parent=35 // pred_fallthru
          _
        // Predicated region
        $region41: #{regular_bottleneck_forward.5} parent=35 // pred_check
          %p251 = pneg %p70
        $region42: #{regular_bottleneck_forward.5} parent=35 // pred_check_branch
          %253 = sbr.rel (%p251) target = $region44
        $region43: #{regular_bottleneck_forward.5} parent=35 // pred_region
          %254 = dma.done [#allocation8], 64
        $region44: #{regular_bottleneck_forward.5} parent=35 // pred_fallthru
          _
        // Predicated region
        $region45: #{regular_bottleneck_forward.5} parent=35 // pred_check
          %p255 = pneg %p91
        $region46: #{regular_bottleneck_forward.5} parent=35 // pred_check_branch
          %257 = sbr.rel (%p255) target = $region48
        $region47: #{regular_bottleneck_forward.5} parent=35 // pred_region
          %258 = dma.done [#allocation8], 64
        $region48: #{regular_bottleneck_forward.5} parent=35 // pred_fallthru
          _
        // Predicated region
        $region49: #{regular_bottleneck_forward.5} parent=35 // pred_check
          %p259 = pneg %p112
        $region50: #{regular_bottleneck_forward.5} parent=35 // pred_check_branch
          %261 = sbr.rel (%p259) target = $region52
        $region51: #{regular_bottleneck_forward.5} parent=35 // pred_region
          %262 = dma.done [#allocation11], 64
        $region52: #{regular_bottleneck_forward.5} parent=35 // pred_fallthru
          _
        %s263 = sand.u32 %s36, 1
        %s264 = scalar_lea.sflag [#allocation5], %s263
        %s265 = sand.u32 %s36, 1
        %s266 = smul.addr %s265, 4
        %s267 = scalar_lea.vmem [#allocation4], %s266
        %p268 = pneg %p49
        %p269 = pneg %p46
        %p270 = pneg %p70
        %p271 = pneg %p67
        %p272 = pneg %p91
        %p273 = pneg %p88
        %p274 = pneg %p112
        %p275 = pneg %p109
        %p276 = pneg %p138
        %p277 = pneg %p135
        %s278 = sand.u32 %s125, 1
        %s279 = scalar_lea.sflag [#allocation6], %s278
        %s280 = sand.u32 %s125, 1
        %s281 = smul.addr %s280, 4
        %s282 = scalar_lea.vmem [#allocation12], %s281
        %p283 = pneg %p164
        %p284 = pneg %p161
        %s285 = sand.u32 %s151, 1
        %s286 = scalar_lea.sflag [#allocation14], %s285
        %s287 = sand.u32 %s151, 1
        %s288 = smul.addr %s287, 4
        %s289 = scalar_lea.vmem [#allocation13], %s288
        %v291 = vld [vmem:[%s246] sm:$0xf]
        %v292 = vunpack.c.l.bf16 %v291
        %v293 = vld [vmem:[#allocation9] sm:$0xf]
        %295 = vset.pattern.permute.xlu0 0
        %296 = vperm.xlu0 %295, %v293
        %v297 = vpop.permute.xlu0 %296
        %v299 = vunpack.c.l.s4 839922192
        %v300 = vunpack.c.0.s8 %v299
        %v301 = vlaneseq
        %v302 = vshrl.u32 %v301, 7
        %v303 = vsub.s32 %v300, %v302
        %v304 = vrot.slane %v297, %v303
        %v306 = vmul.f32 %v292, %v304
        %v307 = vld [vmem:[#allocation10] sm:$0xf]
        %309 = vset.pattern.permute.xlu0 0
        %310 = vperm.xlu0 %309, %v307
        %v311 = vpop.permute.xlu0 %310
        %v313 = vunpack.c.l.s4 839922192
        %v314 = vunpack.c.0.s8 %v313
        %v315 = vlaneseq
        %v316 = vshrl.u32 %v315, 7
        %v317 = vsub.s32 %v314, %v316
        %v318 = vrot.slane %v311, %v317
        %v320 = vadd.f32 %v306, %v318
        %v321 = vmax.f32 %v320, 0.0
        %v323 = vcombine.high %v321, %v321
        %v325 = vpack.c.bf16 %v321, %v321
        %v326 = vpack.c.bf16 %v323, %v323
        %328 = vrot.lane.b32.xlu0 %v325, 112
        %v329 = vpop.permute.xlu0 %328
        %331 = vrot.lane.b32.xlu0 %v325, 96
        %v332 = vpop.permute.xlu0 %331
        %334 = vrot.lane.b32.xlu0 %v325, 80
        %v335 = vpop.permute.xlu0 %334
        %337 = vrot.lane.b32.xlu0 %v325, 64
        %v338 = vpop.permute.xlu0 %337
        %340 = vrot.lane.b32.xlu0 %v325, 48
        %v341 = vpop.permute.xlu0 %340
        %343 = vrot.lane.b32.xlu0 %v325, 32
        %v344 = vpop.permute.xlu0 %343
        %346 = vrot.lane.b32.xlu0 %v325, 16
        %v347 = vpop.permute.xlu0 %346
        %350 = vrot.lane.b32.xlu0 %v326, 112
        %v351 = vpop.permute.xlu0 %350
        %353 = vrot.lane.b32.xlu0 %v326, 96
        %v354 = vpop.permute.xlu0 %353
        %356 = vrot.lane.b32.xlu0 %v326, 80
        %v357 = vpop.permute.xlu0 %356
        %359 = vrot.lane.b32.xlu0 %v326, 64
        %v360 = vpop.permute.xlu0 %359
        %362 = vrot.lane.b32.xlu0 %v326, 48
        %v363 = vpop.permute.xlu0 %362
        %365 = vrot.lane.b32.xlu0 %v326, 32
        %v366 = vpop.permute.xlu0 %365
        %368 = vrot.lane.b32.xlu0 %v326, 16
        %v369 = vpop.permute.xlu0 %368
        %v371 = vcombine.low %v325, %v338
        %v373 = vunpack.c.l.s4 1983009808
        %v374 = vunpack.c.0.s8 %v373
        %v375 = vlaneseq
        %v376 = vshrl.u32 %v375, 7
        %v377 = vsub.s32 %v374, %v376
        %v378 = vrot.slane %v371, %v377
        %v379 = vcombine.low %v332, %v344
        %v381 = vunpack.c.l.s4 1983009808
        %v382 = vunpack.c.0.s8 %v381
        %v383 = vlaneseq
        %v384 = vshrl.u32 %v383, 7
        %v385 = vsub.s32 %v382, %v384
        %v386 = vrot.slane %v379, %v385
        %v387 = vcombine.low %v326, %v360
        %v389 = vunpack.c.l.s4 1983009808
        %v390 = vunpack.c.0.s8 %v389
        %v391 = vlaneseq
        %v392 = vshrl.u32 %v391, 7
        %v393 = vsub.s32 %v390, %v392
        %v394 = vrot.slane %v387, %v393
        %v395 = vcombine.low %v354, %v366
        %v397 = vunpack.c.l.s4 1983009808
        %v398 = vunpack.c.0.s8 %v397
        %v399 = vlaneseq
        %v400 = vshrl.u32 %v399, 7
        %v401 = vsub.s32 %v398, %v400
        %v402 = vrot.slane %v395, %v401
        %v403 = vcombine.low %v378, %v386
        %v405 = vunpack.c.l.s4 1934713408
        %v406 = vunpack.c.0.s8 %v405
        %v407 = vlaneseq
        %v408 = vshrl.u32 %v407, 7
        %v409 = vsub.s32 %v406, %v408
        %v410 = vrot.slane %v403, %v409
        %v411 = vcombine.low %v394, %v402
        %v413 = vunpack.c.l.s4 1934713408
        %v414 = vunpack.c.0.s8 %v413
        %v415 = vlaneseq
        %v416 = vshrl.u32 %v415, 7
        %v417 = vsub.s32 %v414, %v416
        %v418 = vrot.slane %v411, %v417
        %v419 = vcombine.low %v410, %v418
        %v420 = vcombine.high %v410, %v418
        %v421 = vcombine.low %v329, %v341
        %v423 = vunpack.c.l.s4 1983009808
        %v424 = vunpack.c.0.s8 %v423
        %v425 = vlaneseq
        %v426 = vshrl.u32 %v425, 7
        %v427 = vsub.s32 %v424, %v426
        %v428 = vrot.slane %v421, %v427
        %v429 = vcombine.low %v335, %v347
        %v431 = vunpack.c.l.s4 1983009808
        %v432 = vunpack.c.0.s8 %v431
        %v433 = vlaneseq
        %v434 = vshrl.u32 %v433, 7
        %v435 = vsub.s32 %v432, %v434
        %v436 = vrot.slane %v429, %v435
        %v437 = vcombine.low %v351, %v363
        %v439 = vunpack.c.l.s4 1983009808
        %v440 = vunpack.c.0.s8 %v439
        %v441 = vlaneseq
        %v442 = vshrl.u32 %v441, 7
        %v443 = vsub.s32 %v440, %v442
        %v444 = vrot.slane %v437, %v443
        %v445 = vcombine.low %v357, %v369
        %v447 = vunpack.c.l.s4 1983009808
        %v448 = vunpack.c.0.s8 %v447
        %v449 = vlaneseq
        %v450 = vshrl.u32 %v449, 7
        %v451 = vsub.s32 %v448, %v450
        %v452 = vrot.slane %v445, %v451
        %v453 = vcombine.low %v428, %v436
        %v455 = vunpack.c.l.s4 1934713408
        %v456 = vunpack.c.0.s8 %v455
        %v457 = vlaneseq
        %v458 = vshrl.u32 %v457, 7
        %v459 = vsub.s32 %v456, %v458
        %v460 = vrot.slane %v453, %v459
        %v461 = vcombine.low %v444, %v452
        %v463 = vunpack.c.l.s4 1934713408
        %v464 = vunpack.c.0.s8 %v463
        %v465 = vlaneseq
        %v466 = vshrl.u32 %v465, 7
        %v467 = vsub.s32 %v464, %v466
        %v468 = vrot.slane %v461, %v467
        %v469 = vcombine.low %v460, %v468
        %v470 = vcombine.high %v460, %v468
        %v473 = vpack.i.b16 %v469, %v419
        %v474 = vshrl.u32 %v419, 16
        %v475 = vshrl.u32 %v469, 16
        %v476 = vpack.i.b16 %v475, %v474
        %v479 = vpack.i.b16 %v470, %v420
        %v480 = vshrl.u32 %v420, 16
        %v481 = vshrl.u32 %v470, 16
        %v482 = vpack.i.b16 %v481, %v480
        %vm483 = vcmask 142336
        %484 = vst.msk [vmem:[#allocation2] sm:$0xf] %vm483, 0
        %485 = vst.msk [vmem:[#allocation2 + $0x4] sm:$0xf] %vm483, 0
        %vm486 = vcmask 139264
        %487 = vst.msk [vmem:[#allocation2 + $0x8] sm:$0x1] %vm486, 0
        %488 = vst.msk [vmem:[#allocation2 + $0xc] sm:$0xf] %vm483, 0
        %489 = vst.msk [vmem:[#allocation2 + $0x10] sm:$0xf] %vm483, 0
        %490 = vst.msk [vmem:[#allocation2 + $0x14] sm:$0x1] %vm486, 0
        %491 = vst.msk [vmem:[#allocation2 + $0x18] sm:$0xf] %vm483, 0
        %492 = vst.msk [vmem:[#allocation2 + $0x1c] sm:$0xf] %vm483, 0
        %493 = vst.msk [vmem:[#allocation2 + $0x20] sm:$0x1] %vm486, 0
        %494 = vst.msk [vmem:[#allocation2 + $0x24] sm:$0xf] %vm483, 0
        %495 = vst.msk [vmem:[#allocation2 + $0x28] sm:$0xf] %vm483, 0
        %496 = vst.msk [vmem:[#allocation2 + $0x2c] sm:$0x1] %vm486, 0
        %v497 = vunpack.c.l.b16 %v473
        %v498 = vunpack.c.h.b16 %v473
        %v499 = vunpack.c.l.b16 %v476
        %v500 = vunpack.c.h.b16 %v476
        %v501 = vunpack.c.l.b16 %v479
        %v502 = vunpack.c.h.b16 %v479
        %v503 = vunpack.c.l.b16 %v482
        %v504 = vunpack.c.h.b16 %v482
        %v505 = vpack.c.b16 %v497, %v497
        %v506 = vpack.c.b16 %v498, %v498
        %v507 = vpack.c.b16 %v499, %v499
        %v508 = vpack.c.b16 %v500, %v500
        %v509 = vpack.c.b16 %v501, %v501
        %v510 = vpack.c.b16 %v502, %v502
        %v511 = vpack.c.b16 %v503, %v503
        %v512 = vpack.c.b16 %v504, %v504
        %vm513 = vsmask.f32 256
        %vm514 = vsmask.f32 4368
        %vm515 = vmor %vm513, %vm514
        %v517 = vshrl.u32 %v505, 16
        %v519 = vrot.slane %v517, 7
        %v520 = vshll.u32 %v505, 16
        %v522 = vor.u32 %v519, %v520
        %v523 = vrot.slane %v519, 4
        %v525 = vshrl.u32 %v506, 16
        %v527 = vrot.slane %v525, 7
        %v528 = vshll.u32 %v506, 16
        %v530 = vor.u32 %v527, %v528
        %v531 = vsel %vm515, %v523, %v530
        %v532 = vrot.slane %v527, 4
        %v534 = vshrl.u32 %v507, 16
        %v536 = vrot.slane %v534, 7
        %v537 = vshll.u32 %v507, 16
        %v539 = vor.u32 %v536, %v537
        %v540 = vrot.slane %v536, 4
        %v542 = vshrl.u32 %v508, 16
        %v544 = vrot.slane %v542, 7
        %v545 = vshll.u32 %v508, 16
        %v547 = vor.u32 %v544, %v545
        %v548 = vsel %vm515, %v540, %v547
        %v549 = vrot.slane %v544, 4
        %v551 = vshrl.u32 %v509, 16
        %v553 = vrot.slane %v551, 7
        %v554 = vshll.u32 %v509, 16
        %v556 = vor.u32 %v553, %v554
        %v557 = vrot.slane %v553, 4
        %v559 = vshrl.u32 %v510, 16
        %v561 = vrot.slane %v559, 7
        %v562 = vshll.u32 %v510, 16
        %v564 = vor.u32 %v561, %v562
        %v565 = vsel %vm515, %v557, %v564
        %v566 = vrot.slane %v561, 4
        %v568 = vshrl.u32 %v511, 16
        %v570 = vrot.slane %v568, 7
        %v571 = vshll.u32 %v511, 16
        %v573 = vor.u32 %v570, %v571
        %v574 = vrot.slane %v570, 4
        %v576 = vshrl.u32 %v512, 16
        %v578 = vrot.slane %v576, 7
        %v579 = vshll.u32 %v512, 16
        %v581 = vor.u32 %v578, %v579
        %v582 = vsel %vm515, %v574, %v581
        %v583 = vrot.slane %v578, 4
        %584 = vrot.lane.b32.xlu0 %v522, 1
        %v585 = vpop.permute.xlu0 %584
        %586 = vrot.lane.b32.xlu0 %v531, 1
        %v587 = vpop.permute.xlu0 %586
        %588 = vrot.lane.b32.xlu0 %v532, 1
        %v589 = vpop.permute.xlu0 %588
        %590 = vrot.lane.b32.xlu0 %v539, 1
        %v591 = vpop.permute.xlu0 %590
        %592 = vrot.lane.b32.xlu0 %v548, 1
        %v593 = vpop.permute.xlu0 %592
        %594 = vrot.lane.b32.xlu0 %v549, 1
        %v595 = vpop.permute.xlu0 %594
        %596 = vrot.lane.b32.xlu0 %v556, 1
        %v597 = vpop.permute.xlu0 %596
        %598 = vrot.lane.b32.xlu0 %v565, 1
        %v599 = vpop.permute.xlu0 %598
        %600 = vrot.lane.b32.xlu0 %v566, 1
        %v601 = vpop.permute.xlu0 %600
        %602 = vrot.lane.b32.xlu0 %v573, 1
        %v603 = vpop.permute.xlu0 %602
        %604 = vrot.lane.b32.xlu0 %v582, 1
        %v605 = vpop.permute.xlu0 %604
        %606 = vrot.lane.b32.xlu0 %v583, 1
        %v607 = vpop.permute.xlu0 %606
        %vm620 = vcmask 134152
        %vm621 = vsmask.f32 7938
        %vm622 = vmand %vm620, %vm621
        %v623 = vld [vmem:[#allocation2] sm:$0xf]
        %v624 = vsel %vm622, %v585, %v623
        %625 = vst [vmem:[#allocation2] sm:$0xf] %v624
        %vm626 = vcmask 134152
        %627 = vst.msk [vmem:[#allocation2 + $0x4] sm:$0xf] %vm626, %v587
        %vm628 = vcmask 131080
        %vm629 = vmand %vm628, %vm513
        %v630 = vld [vmem:[#allocation2 + $0x8] sm:$0x1]
        %v631 = vsel %vm629, %v589, %v630
        %632 = vst [vmem:[#allocation2 + $0x8] sm:$0x1] %v631
        %v633 = vld [vmem:[#allocation2 + $0xc] sm:$0xf]
        %v634 = vsel %vm622, %v591, %v633
        %635 = vst [vmem:[#allocation2 + $0xc] sm:$0xf] %v634
        %636 = vst.msk [vmem:[#allocation2 + $0x10] sm:$0xf] %vm626, %v593
        %v637 = vld [vmem:[#allocation2 + $0x14] sm:$0x1]
        %v638 = vsel %vm629, %v595, %v637
        %639 = vst [vmem:[#allocation2 + $0x14] sm:$0x1] %v638
        %v640 = vld [vmem:[#allocation2 + $0x18] sm:$0xf]
        %v641 = vsel %vm622, %v597, %v640
        %642 = vst [vmem:[#allocation2 + $0x18] sm:$0xf] %v641
        %643 = vst.msk [vmem:[#allocation2 + $0x1c] sm:$0xf] %vm626, %v599
        %v644 = vld [vmem:[#allocation2 + $0x20] sm:$0x1]
        %v645 = vsel %vm629, %v601, %v644
        %646 = vst [vmem:[#allocation2 + $0x20] sm:$0x1] %v645
        %v647 = vld [vmem:[#allocation2 + $0x24] sm:$0xf]
        %v648 = vsel %vm622, %v603, %v647
        %649 = vst [vmem:[#allocation2 + $0x24] sm:$0xf] %v648
        %650 = vst.msk [vmem:[#allocation2 + $0x28] sm:$0xf] %vm626, %v605
        %v651 = vld [vmem:[#allocation2 + $0x2c] sm:$0x1]
        %v652 = vsel %vm629, %v607, %v651
        %653 = vst [vmem:[#allocation2 + $0x2c] sm:$0x1] %v652
        %654 = vst [vmem:[#allocation3] sm:$0xff] 0
        %655 = vst [vmem:[#allocation3 + $0x8] sm:$0xff] 0
        %656 = vst [vmem:[#allocation3 + $0x10] sm:$0xff] 0
        %657 = vst [vmem:[#allocation3 + $0x18] sm:$0xff] 0
        %658 = vst [vmem:[#allocation3 + $0x20] sm:$0xff] 0
        %659 = vst [vmem:[#allocation3 + $0x28] sm:$0xff] 0
        %660 = vst [vmem:[#allocation3 + $0x30] sm:$0xff] 0
        %661 = vst [vmem:[#allocation3 + $0x38] sm:$0xff] 0
        %662 = vst [vmem:[#allocation3 + $0x40] sm:$0xff] 0
        %663 = vst [vmem:[#allocation3 + $0x48] sm:$0xff] 0
        %664 = vst [vmem:[#allocation3 + $0x50] sm:$0xff] 0
        %665 = vst [vmem:[#allocation3 + $0x58] sm:$0xff] 0
        %666 = vst [vmem:[#allocation3 + $0x60] sm:$0xff] 0
        %667 = vst [vmem:[#allocation3 + $0x68] sm:$0xff] 0
        %668 = vst [vmem:[#allocation3 + $0x70] sm:$0xff] 0
        %669 = vst [vmem:[#allocation3 + $0x78] sm:$0xff] 0
        %670 = vst [vmem:[#allocation3 + $0x80] sm:$0xff] 0
        %671 = vst [vmem:[#allocation3 + $0x88] sm:$0xff] 0
        %v672 = vld [vmem:[#allocation2] sm:$0xf]
        %v673 = vld [vmem:[#allocation2 + $0x4] sm:$0xf]
        %v674 = vld [vmem:[#allocation2 + $0xc] sm:$0xf]
        %v675 = vld [vmem:[#allocation2 + $0x10] sm:$0xf]
        %v676 = vld [vmem:[#allocation2 + $0x18] sm:$0xf]
        %v677 = vld [vmem:[#allocation2 + $0x1c] sm:$0xf]
        %v678 = vld [vmem:[#allocation2 + $0x24] sm:$0xf]
        %v679 = vld [vmem:[#allocation2 + $0x28] sm:$0xf]
        %v682 = vpack.i.b16 %v674, %v672
        %v683 = vshrl.u32 %v672, 16
        %v684 = vshrl.u32 %v674, 16
        %v685 = vpack.i.b16 %v684, %v683
        %v688 = vpack.i.b16 %v678, %v676
        %v689 = vshrl.u32 %v676, 16
        %v690 = vshrl.u32 %v678, 16
        %v691 = vpack.i.b16 %v690, %v689
        %v694 = vpack.i.b16 %v675, %v673
        %v695 = vshrl.u32 %v673, 16
        %v696 = vshrl.u32 %v675, 16
        %v697 = vpack.i.b16 %v696, %v695
        %v700 = vpack.i.b16 %v679, %v677
        %v701 = vshrl.u32 %v677, 16
        %v702 = vshrl.u32 %v679, 16
        %v703 = vpack.i.b16 %v702, %v701
        %v706 = vunpack.c.l.s4 1983009808
        %v707 = vunpack.c.0.s8 %v706
        %v708 = vlaneseq
        %v709 = vshrl.u32 %v708, 7
        %v710 = vsub.s32 %v707, %v709
        %v711 = vrot.slane %v682, %v710
        %v714 = vunpack.c.l.s4 1983009808
        %v715 = vunpack.c.0.s8 %v714
        %v716 = vlaneseq
        %v717 = vshrl.u32 %v716, 7
        %v718 = vsub.s32 %v715, %v717
        %v719 = vrot.slane %v688, %v718
        %v720 = vcombine.low %v711, %v719
        %v721 = vcombine.high %v711, %v719
        %v723 = vunpack.c.l.s4 1934713408
        %v724 = vunpack.c.0.s8 %v723
        %v725 = vlaneseq
        %v726 = vshrl.u32 %v725, 7
        %v727 = vsub.s32 %v724, %v726
        %v728 = vrot.slane %v720, %v727
        %v730 = vunpack.c.l.s4 1934713408
        %v731 = vunpack.c.0.s8 %v730
        %v732 = vlaneseq
        %v733 = vshrl.u32 %v732, 7
        %v734 = vsub.s32 %v731, %v733
        %v735 = vrot.slane %v721, %v734
        %v736 = vcombine.high %v728, 0
        %v737 = vcombine.high %v735, 0
        %v740 = vunpack.c.l.s4 1983009808
        %v741 = vunpack.c.0.s8 %v740
        %v742 = vlaneseq
        %v743 = vshrl.u32 %v742, 7
        %v744 = vsub.s32 %v741, %v743
        %v745 = vrot.slane %v685, %v744
        %v748 = vunpack.c.l.s4 1983009808
        %v749 = vunpack.c.0.s8 %v748
        %v750 = vlaneseq
        %v751 = vshrl.u32 %v750, 7
        %v752 = vsub.s32 %v749, %v751
        %v753 = vrot.slane %v691, %v752
        %v754 = vcombine.low %v745, %v753
        %v755 = vcombine.high %v745, %v753
        %v757 = vunpack.c.l.s4 1934713408
        %v758 = vunpack.c.0.s8 %v757
        %v759 = vlaneseq
        %v760 = vshrl.u32 %v759, 7
        %v761 = vsub.s32 %v758, %v760
        %v762 = vrot.slane %v754, %v761
        %v764 = vunpack.c.l.s4 1934713408
        %v765 = vunpack.c.0.s8 %v764
        %v766 = vlaneseq
        %v767 = vshrl.u32 %v766, 7
        %v768 = vsub.s32 %v765, %v767
        %v769 = vrot.slane %v755, %v768
        %v770 = vcombine.high %v762, 0
        %v771 = vcombine.high %v769, 0
        %v774 = vunpack.c.l.s4 1983009808
        %v775 = vunpack.c.0.s8 %v774
        %v776 = vlaneseq
        %v777 = vshrl.u32 %v776, 7
        %v778 = vsub.s32 %v775, %v777
        %v779 = vrot.slane %v694, %v778
        %v782 = vunpack.c.l.s4 1983009808
        %v783 = vunpack.c.0.s8 %v782
        %v784 = vlaneseq
        %v785 = vshrl.u32 %v784, 7
        %v786 = vsub.s32 %v783, %v785
        %v787 = vrot.slane %v700, %v786
        %v788 = vcombine.low %v779, %v787
        %v789 = vcombine.high %v779, %v787
        %v791 = vunpack.c.l.s4 1934713408
        %v792 = vunpack.c.0.s8 %v791
        %v793 = vlaneseq
        %v794 = vshrl.u32 %v793, 7
        %v795 = vsub.s32 %v792, %v794
        %v796 = vrot.slane %v788, %v795
        %v798 = vunpack.c.l.s4 1934713408
        %v799 = vunpack.c.0.s8 %v798
        %v800 = vlaneseq
        %v801 = vshrl.u32 %v800, 7
        %v802 = vsub.s32 %v799, %v801
        %v803 = vrot.slane %v789, %v802
        %v804 = vcombine.high %v796, 0
        %v805 = vcombine.high %v803, 0
        %v808 = vunpack.c.l.s4 1983009808
        %v809 = vunpack.c.0.s8 %v808
        %v810 = vlaneseq
        %v811 = vshrl.u32 %v810, 7
        %v812 = vsub.s32 %v809, %v811
        %v813 = vrot.slane %v697, %v812
        %v816 = vunpack.c.l.s4 1983009808
        %v817 = vunpack.c.0.s8 %v816
        %v818 = vlaneseq
        %v819 = vshrl.u32 %v818, 7
        %v820 = vsub.s32 %v817, %v819
        %v821 = vrot.slane %v703, %v820
        %v822 = vcombine.low %v813, %v821
        %v823 = vcombine.high %v813, %v821
        %v825 = vunpack.c.l.s4 1934713408
        %v826 = vunpack.c.0.s8 %v825
        %v827 = vlaneseq
        %v828 = vshrl.u32 %v827, 7
        %v829 = vsub.s32 %v826, %v828
        %v830 = vrot.slane %v822, %v829
        %v832 = vunpack.c.l.s4 1934713408
        %v833 = vunpack.c.0.s8 %v832
        %v834 = vlaneseq
        %v835 = vshrl.u32 %v834, 7
        %v836 = vsub.s32 %v833, %v835
        %v837 = vrot.slane %v823, %v836
        %v838 = vcombine.high %v830, 0
        %v839 = vcombine.high %v837, 0
        %v841 = vunpack.c.l.b16 %v762
        %v842 = vpack.c.b16 %v841, %v841
        %843 = vrot.lane.b32.xlu0 %v842, 16
        %v844 = vpop.permute.xlu0 %843
        %v846 = vunpack.c.l.b16 %v736
        %v847 = vpack.c.b16 %v846, %v846
        %848 = vrot.lane.b32.xlu0 %v847, 32
        %v849 = vpop.permute.xlu0 %848
        %v851 = vunpack.c.l.b16 %v770
        %v852 = vpack.c.b16 %v851, %v851
        %853 = vrot.lane.b32.xlu0 %v852, 48
        %v854 = vpop.permute.xlu0 %853
        %v856 = vunpack.c.l.b16 %v735
        %v857 = vpack.c.b16 %v856, %v856
        %858 = vrot.lane.b32.xlu0 %v857, 64
        %v859 = vpop.permute.xlu0 %858
        %v861 = vunpack.c.l.b16 %v769
        %v862 = vpack.c.b16 %v861, %v861
        %863 = vrot.lane.b32.xlu0 %v862, 80
        %v864 = vpop.permute.xlu0 %863
        %v866 = vunpack.c.l.b16 %v737
        %v867 = vpack.c.b16 %v866, %v866
        %868 = vrot.lane.b32.xlu0 %v867, 96
        %v869 = vpop.permute.xlu0 %868
        %v871 = vunpack.c.l.b16 %v771
        %v872 = vpack.c.b16 %v871, %v871
        %873 = vrot.lane.b32.xlu0 %v872, 112
        %v874 = vpop.permute.xlu0 %873
        %v876 = vunpack.c.l.b16 %v830
        %v877 = vpack.c.b16 %v876, %v876
        %878 = vrot.lane.b32.xlu0 %v877, 16
        %v879 = vpop.permute.xlu0 %878
        %v881 = vunpack.c.l.b16 %v804
        %v882 = vpack.c.b16 %v881, %v881
        %883 = vrot.lane.b32.xlu0 %v882, 32
        %v884 = vpop.permute.xlu0 %883
        %v886 = vunpack.c.l.b16 %v838
        %v887 = vpack.c.b16 %v886, %v886
        %888 = vrot.lane.b32.xlu0 %v887, 48
        %v889 = vpop.permute.xlu0 %888
        %v891 = vunpack.c.l.b16 %v803
        %v892 = vpack.c.b16 %v891, %v891
        %893 = vrot.lane.b32.xlu0 %v892, 64
        %v894 = vpop.permute.xlu0 %893
        %v896 = vunpack.c.l.b16 %v837
        %v897 = vpack.c.b16 %v896, %v896
        %898 = vrot.lane.b32.xlu0 %v897, 80
        %v899 = vpop.permute.xlu0 %898
        %v901 = vunpack.c.l.b16 %v805
        %v902 = vpack.c.b16 %v901, %v901
        %903 = vrot.lane.b32.xlu0 %v902, 96
        %v904 = vpop.permute.xlu0 %903
        %v906 = vunpack.c.l.b16 %v839
        %v907 = vpack.c.b16 %v906, %v906
        %908 = vrot.lane.b32.xlu0 %v907, 112
        %v909 = vpop.permute.xlu0 %908
        %vm910 = vcmask 130048
        %v913 = vsel %vm910, %v728, %v844
        %vm914 = vcmask 261120
        %v916 = vsel %vm914, %v913, %v849
        %vm917 = vcmask 392192
        %v919 = vsel %vm917, %v916, %v854
        %vm920 = vcmask 523264
        %v922 = vsel %vm920, %v919, %v859
        %vm923 = vcmask 654336
        %v925 = vsel %vm923, %v922, %v864
        %vm926 = vcmask 785408
        %v928 = vsel %vm926, %v925, %v869
        %vm929 = vcmask 916480
        %v931 = vsel %vm929, %v928, %v874
        %v935 = vsel %vm910, %v796, %v879
        %v937 = vsel %vm914, %v935, %v884
        %v939 = vsel %vm917, %v937, %v889
        %v941 = vsel %vm920, %v939, %v894
        %v943 = vsel %vm923, %v941, %v899
        %v945 = vsel %vm926, %v943, %v904
        %v947 = vsel %vm929, %v945, %v909
        %949 = vst [vmem:[#allocation3] sm:$0x3] %v931
        %950 = vst [vmem:[#allocation3 + $0x8] sm:$0x3] %v947
        %v951 = vld [vmem:[#allocation2] sm:$0xf]
        %v952 = vld [vmem:[#allocation2 + $0x4] sm:$0xf]
        %v953 = vld [vmem:[#allocation2 + $0xc] sm:$0xf]
        %v954 = vld [vmem:[#allocation2 + $0x10] sm:$0xf]
        %v955 = vld [vmem:[#allocation2 + $0x18] sm:$0xf]
        %v956 = vld [vmem:[#allocation2 + $0x1c] sm:$0xf]
        %v957 = vld [vmem:[#allocation2 + $0x24] sm:$0xf]
        %v958 = vld [vmem:[#allocation2 + $0x28] sm:$0xf]
        %967 = vrot.lane.b32.xlu0 %v951, 127
        %v968 = vpop.permute.xlu0 %967
        %969 = vrot.lane.b32.xlu0 %v952, 127
        %v970 = vpop.permute.xlu0 %969
        %971 = vrot.lane.b32.xlu0 %v953, 127
        %v972 = vpop.permute.xlu0 %971
        %973 = vrot.lane.b32.xlu0 %v954, 127
        %v974 = vpop.permute.xlu0 %973
        %975 = vrot.lane.b32.xlu0 %v955, 127
        %v976 = vpop.permute.xlu0 %975
        %977 = vrot.lane.b32.xlu0 %v956, 127
        %v978 = vpop.permute.xlu0 %977
        %979 = vrot.lane.b32.xlu0 %v957, 127
        %v980 = vpop.permute.xlu0 %979
        %981 = vrot.lane.b32.xlu0 %v958, 127
        %v982 = vpop.permute.xlu0 %981
        %v985 = vpack.i.b16 %v972, %v968
        %v986 = vshrl.u32 %v968, 16
        %v987 = vshrl.u32 %v972, 16
        %v988 = vpack.i.b16 %v987, %v986
        %v991 = vpack.i.b16 %v980, %v976
        %v992 = vshrl.u32 %v976, 16
        %v993 = vshrl.u32 %v980, 16
        %v994 = vpack.i.b16 %v993, %v992
        %v997 = vpack.i.b16 %v974, %v970
        %v998 = vshrl.u32 %v970, 16
        %v999 = vshrl.u32 %v974, 16
        %v1000 = vpack.i.b16 %v999, %v998
        %v1003 = vpack.i.b16 %v982, %v978
        %v1004 = vshrl.u32 %v978, 16
        %v1005 = vshrl.u32 %v982, 16
        %v1006 = vpack.i.b16 %v1005, %v1004
        %v1009 = vunpack.c.l.s4 1983009808
        %v1010 = vunpack.c.0.s8 %v1009
        %v1011 = vlaneseq
        %v1012 = vshrl.u32 %v1011, 7
        %v1013 = vsub.s32 %v1010, %v1012
        %v1014 = vrot.slane %v985, %v1013
        %v1017 = vunpack.c.l.s4 1983009808
        %v1018 = vunpack.c.0.s8 %v1017
        %v1019 = vlaneseq
        %v1020 = vshrl.u32 %v1019, 7
        %v1021 = vsub.s32 %v1018, %v1020
        %v1022 = vrot.slane %v991, %v1021
        %v1023 = vcombine.low %v1014, %v1022
        %v1024 = vcombine.high %v1014, %v1022
        %v1026 = vunpack.c.l.s4 1934713408
        %v1027 = vunpack.c.0.s8 %v1026
        %v1028 = vlaneseq
        %v1029 = vshrl.u32 %v1028, 7
        %v1030 = vsub.s32 %v1027, %v1029
        %v1031 = vrot.slane %v1023, %v1030
        %v1033 = vunpack.c.l.s4 1934713408
        %v1034 = vunpack.c.0.s8 %v1033
        %v1035 = vlaneseq
        %v1036 = vshrl.u32 %v1035, 7
        %v1037 = vsub.s32 %v1034, %v1036
        %v1038 = vrot.slane %v1024, %v1037
        %v1039 = vcombine.high %v1031, 0
        %v1040 = vcombine.high %v1038, 0
        %v1043 = vunpack.c.l.s4 1983009808
        %v1044 = vunpack.c.0.s8 %v1043
        %v1045 = vlaneseq
        %v1046 = vshrl.u32 %v1045, 7
        %v1047 = vsub.s32 %v1044, %v1046
        %v1048 = vrot.slane %v988, %v1047
        %v1051 = vunpack.c.l.s4 1983009808
        %v1052 = vunpack.c.0.s8 %v1051
        %v1053 = vlaneseq
        %v1054 = vshrl.u32 %v1053, 7
        %v1055 = vsub.s32 %v1052, %v1054
        %v1056 = vrot.slane %v994, %v1055
        %v1057 = vcombine.low %v1048, %v1056
        %v1058 = vcombine.high %v1048, %v1056
        %v1060 = vunpack.c.l.s4 1934713408
        %v1061 = vunpack.c.0.s8 %v1060
        %v1062 = vlaneseq
        %v1063 = vshrl.u32 %v1062, 7
        %v1064 = vsub.s32 %v1061, %v1063
        %v1065 = vrot.slane %v1057, %v1064
        %v1067 = vunpack.c.l.s4 1934713408
        %v1068 = vunpack.c.0.s8 %v1067
        %v1069 = vlaneseq
        %v1070 = vshrl.u32 %v1069, 7
        %v1071 = vsub.s32 %v1068, %v1070
        %v1072 = vrot.slane %v1058, %v1071
        %v1073 = vcombine.high %v1065, 0
        %v1074 = vcombine.high %v1072, 0
        %v1077 = vunpack.c.l.s4 1983009808
        %v1078 = vunpack.c.0.s8 %v1077
        %v1079 = vlaneseq
        %v1080 = vshrl.u32 %v1079, 7
        %v1081 = vsub.s32 %v1078, %v1080
        %v1082 = vrot.slane %v997, %v1081
        %v1085 = vunpack.c.l.s4 1983009808
        %v1086 = vunpack.c.0.s8 %v1085
        %v1087 = vlaneseq
        %v1088 = vshrl.u32 %v1087, 7
        %v1089 = vsub.s32 %v1086, %v1088
        %v1090 = vrot.slane %v1003, %v1089
        %v1091 = vcombine.low %v1082, %v1090
        %v1092 = vcombine.high %v1082, %v1090
        %v1094 = vunpack.c.l.s4 1934713408
        %v1095 = vunpack.c.0.s8 %v1094
        %v1096 = vlaneseq
        %v1097 = vshrl.u32 %v1096, 7
        %v1098 = vsub.s32 %v1095, %v1097
        %v1099 = vrot.slane %v1091, %v1098
        %v1101 = vunpack.c.l.s4 1934713408
        %v1102 = vunpack.c.0.s8 %v1101
        %v1103 = vlaneseq
        %v1104 = vshrl.u32 %v1103, 7
        %v1105 = vsub.s32 %v1102, %v1104
        %v1106 = vrot.slane %v1092, %v1105
        %v1107 = vcombine.high %v1099, 0
        %v1108 = vcombine.high %v1106, 0
        %v1111 = vunpack.c.l.s4 1983009808
        %v1112 = vunpack.c.0.s8 %v1111
        %v1113 = vlaneseq
        %v1114 = vshrl.u32 %v1113, 7
        %v1115 = vsub.s32 %v1112, %v1114
        %v1116 = vrot.slane %v1000, %v1115
        %v1119 = vunpack.c.l.s4 1983009808
        %v1120 = vunpack.c.0.s8 %v1119
        %v1121 = vlaneseq
        %v1122 = vshrl.u32 %v1121, 7
        %v1123 = vsub.s32 %v1120, %v1122
        %v1124 = vrot.slane %v1006, %v1123
        %v1125 = vcombine.low %v1116, %v1124
        %v1126 = vcombine.high %v1116, %v1124
        %v1128 = vunpack.c.l.s4 1934713408
        %v1129 = vunpack.c.0.s8 %v1128
        %v1130 = vlaneseq
        %v1131 = vshrl.u32 %v1130, 7
        %v1132 = vsub.s32 %v1129, %v1131
        %v1133 = vrot.slane %v1125, %v1132
        %v1135 = vunpack.c.l.s4 1934713408
        %v1136 = vunpack.c.0.s8 %v1135
        %v1137 = vlaneseq
        %v1138 = vshrl.u32 %v1137, 7
        %v1139 = vsub.s32 %v1136, %v1138
        %v1140 = vrot.slane %v1126, %v1139
        %v1141 = vcombine.high %v1133, 0
        %v1142 = vcombine.high %v1140, 0
        %v1144 = vunpack.c.l.b16 %v1065
        %v1145 = vpack.c.b16 %v1144, %v1144
        %1146 = vrot.lane.b32.xlu0 %v1145, 16
        %v1147 = vpop.permute.xlu0 %1146
        %v1149 = vunpack.c.l.b16 %v1039
        %v1150 = vpack.c.b16 %v1149, %v1149
        %1151 = vrot.lane.b32.xlu0 %v1150, 32
        %v1152 = vpop.permute.xlu0 %1151
        %v1154 = vunpack.c.l.b16 %v1073
        %v1155 = vpack.c.b16 %v1154, %v1154
        %1156 = vrot.lane.b32.xlu0 %v1155, 48
        %v1157 = vpop.permute.xlu0 %1156
        %v1159 = vunpack.c.l.b16 %v1038
        %v1160 = vpack.c.b16 %v1159, %v1159
        %1161 = vrot.lane.b32.xlu0 %v1160, 64
        %v1162 = vpop.permute.xlu0 %1161
        %v1164 = vunpack.c.l.b16 %v1072
        %v1165 = vpack.c.b16 %v1164, %v1164
        %1166 = vrot.lane.b32.xlu0 %v1165, 80
        %v1167 = vpop.permute.xlu0 %1166
        %v1169 = vunpack.c.l.b16 %v1040
        %v1170 = vpack.c.b16 %v1169, %v1169
        %1171 = vrot.lane.b32.xlu0 %v1170, 96
        %v1172 = vpop.permute.xlu0 %1171
        %v1174 = vunpack.c.l.b16 %v1074
        %v1175 = vpack.c.b16 %v1174, %v1174
        %1176 = vrot.lane.b32.xlu0 %v1175, 112
        %v1177 = vpop.permute.xlu0 %1176
        %v1179 = vunpack.c.l.b16 %v1133
        %v1180 = vpack.c.b16 %v1179, %v1179
        %1181 = vrot.lane.b32.xlu0 %v1180, 16
        %v1182 = vpop.permute.xlu0 %1181
        %v1184 = vunpack.c.l.b16 %v1107
        %v1185 = vpack.c.b16 %v1184, %v1184
        %1186 = vrot.lane.b32.xlu0 %v1185, 32
        %v1187 = vpop.permute.xlu0 %1186
        %v1189 = vunpack.c.l.b16 %v1141
        %v1190 = vpack.c.b16 %v1189, %v1189
        %1191 = vrot.lane.b32.xlu0 %v1190, 48
        %v1192 = vpop.permute.xlu0 %1191
        %v1194 = vunpack.c.l.b16 %v1106
        %v1195 = vpack.c.b16 %v1194, %v1194
        %1196 = vrot.lane.b32.xlu0 %v1195, 64
        %v1197 = vpop.permute.xlu0 %1196
        %v1199 = vunpack.c.l.b16 %v1140
        %v1200 = vpack.c.b16 %v1199, %v1199
        %1201 = vrot.lane.b32.xlu0 %v1200, 80
        %v1202 = vpop.permute.xlu0 %1201
        %v1204 = vunpack.c.l.b16 %v1108
        %v1205 = vpack.c.b16 %v1204, %v1204
        %1206 = vrot.lane.b32.xlu0 %v1205, 96
        %v1207 = vpop.permute.xlu0 %1206
        %v1209 = vunpack.c.l.b16 %v1142
        %v1210 = vpack.c.b16 %v1209, %v1209
        %1211 = vrot.lane.b32.xlu0 %v1210, 112
        %v1212 = vpop.permute.xlu0 %1211
        %v1215 = vsel %vm910, %v1031, %v1147
        %v1217 = vsel %vm914, %v1215, %v1152
        %v1219 = vsel %vm917, %v1217, %v1157
        %v1221 = vsel %vm920, %v1219, %v1162
        %v1223 = vsel %vm923, %v1221, %v1167
        %v1225 = vsel %vm926, %v1223, %v1172
        %v1227 = vsel %vm929, %v1225, %v1177
        %v1231 = vsel %vm910, %v1099, %v1182
        %v1233 = vsel %vm914, %v1231, %v1187
        %v1235 = vsel %vm917, %v1233, %v1192
        %v1237 = vsel %vm920, %v1235, %v1197
        %v1239 = vsel %vm923, %v1237, %v1202
        %v1241 = vsel %vm926, %v1239, %v1207
        %v1243 = vsel %vm929, %v1241, %v1212
        %1245 = vst [vmem:[#allocation3 + $0x10] sm:$0x3] %v1227
        %1246 = vst [vmem:[#allocation3 + $0x18] sm:$0x3] %v1243
        %v1247 = vld [vmem:[#allocation2] sm:$0xf]
        %v1248 = vld [vmem:[#allocation2 + $0x4] sm:$0xf]
        %v1249 = vld [vmem:[#allocation2 + $0xc] sm:$0xf]
        %v1250 = vld [vmem:[#allocation2 + $0x10] sm:$0xf]
        %v1251 = vld [vmem:[#allocation2 + $0x18] sm:$0xf]
        %v1252 = vld [vmem:[#allocation2 + $0x1c] sm:$0xf]
        %v1253 = vld [vmem:[#allocation2 + $0x24] sm:$0xf]
        %v1254 = vld [vmem:[#allocation2 + $0x28] sm:$0xf]
        %1263 = vrot.lane.b32.xlu0 %v1247, 126
        %v1264 = vpop.permute.xlu0 %1263
        %1265 = vrot.lane.b32.xlu0 %v1248, 126
        %v1266 = vpop.permute.xlu0 %1265
        %1267 = vrot.lane.b32.xlu0 %v1249, 126
        %v1268 = vpop.permute.xlu0 %1267
        %1269 = vrot.lane.b32.xlu0 %v1250, 126
        %v1270 = vpop.permute.xlu0 %1269
        %1271 = vrot.lane.b32.xlu0 %v1251, 126
        %v1272 = vpop.permute.xlu0 %1271
        %1273 = vrot.lane.b32.xlu0 %v1252, 126
        %v1274 = vpop.permute.xlu0 %1273
        %1275 = vrot.lane.b32.xlu0 %v1253, 126
        %v1276 = vpop.permute.xlu0 %1275
        %1277 = vrot.lane.b32.xlu0 %v1254, 126
        %v1278 = vpop.permute.xlu0 %1277
        %v1281 = vpack.i.b16 %v1268, %v1264
        %v1282 = vshrl.u32 %v1264, 16
        %v1283 = vshrl.u32 %v1268, 16
        %v1284 = vpack.i.b16 %v1283, %v1282
        %v1287 = vpack.i.b16 %v1276, %v1272
        %v1288 = vshrl.u32 %v1272, 16
        %v1289 = vshrl.u32 %v1276, 16
        %v1290 = vpack.i.b16 %v1289, %v1288
        %v1293 = vpack.i.b16 %v1270, %v1266
        %v1294 = vshrl.u32 %v1266, 16
        %v1295 = vshrl.u32 %v1270, 16
        %v1296 = vpack.i.b16 %v1295, %v1294
        %v1299 = vpack.i.b16 %v1278, %v1274
        %v1300 = vshrl.u32 %v1274, 16
        %v1301 = vshrl.u32 %v1278, 16
        %v1302 = vpack.i.b16 %v1301, %v1300
        %v1305 = vunpack.c.l.s4 1983009808
        %v1306 = vunpack.c.0.s8 %v1305
        %v1307 = vlaneseq
        %v1308 = vshrl.u32 %v1307, 7
        %v1309 = vsub.s32 %v1306, %v1308
        %v1310 = vrot.slane %v1281, %v1309
        %v1313 = vunpack.c.l.s4 1983009808
        %v1314 = vunpack.c.0.s8 %v1313
        %v1315 = vlaneseq
        %v1316 = vshrl.u32 %v1315, 7
        %v1317 = vsub.s32 %v1314, %v1316
        %v1318 = vrot.slane %v1287, %v1317
        %v1319 = vcombine.low %v1310, %v1318
        %v1320 = vcombine.high %v1310, %v1318
        %v1322 = vunpack.c.l.s4 1934713408
        %v1323 = vunpack.c.0.s8 %v1322
        %v1324 = vlaneseq
        %v1325 = vshrl.u32 %v1324, 7
        %v1326 = vsub.s32 %v1323, %v1325
        %v1327 = vrot.slane %v1319, %v1326
        %v1329 = vunpack.c.l.s4 1934713408
        %v1330 = vunpack.c.0.s8 %v1329
        %v1331 = vlaneseq
        %v1332 = vshrl.u32 %v1331, 7
        %v1333 = vsub.s32 %v1330, %v1332
        %v1334 = vrot.slane %v1320, %v1333
        %v1335 = vcombine.high %v1327, 0
        %v1336 = vcombine.high %v1334, 0
        %v1339 = vunpack.c.l.s4 1983009808
        %v1340 = vunpack.c.0.s8 %v1339
        %v1341 = vlaneseq
        %v1342 = vshrl.u32 %v1341, 7
        %v1343 = vsub.s32 %v1340, %v1342
        %v1344 = vrot.slane %v1284, %v1343
        %v1347 = vunpack.c.l.s4 1983009808
        %v1348 = vunpack.c.0.s8 %v1347
        %v1349 = vlaneseq
        %v1350 = vshrl.u32 %v1349, 7
        %v1351 = vsub.s32 %v1348, %v1350
        %v1352 = vrot.slane %v1290, %v1351
        %v1353 = vcombine.low %v1344, %v1352
        %v1354 = vcombine.high %v1344, %v1352
        %v1356 = vunpack.c.l.s4 1934713408
        %v1357 = vunpack.c.0.s8 %v1356
        %v1358 = vlaneseq
        %v1359 = vshrl.u32 %v1358, 7
        %v1360 = vsub.s32 %v1357, %v1359
        %v1361 = vrot.slane %v1353, %v1360
        %v1363 = vunpack.c.l.s4 1934713408
        %v1364 = vunpack.c.0.s8 %v1363
        %v1365 = vlaneseq
        %v1366 = vshrl.u32 %v1365, 7
        %v1367 = vsub.s32 %v1364, %v1366
        %v1368 = vrot.slane %v1354, %v1367
        %v1369 = vcombine.high %v1361, 0
        %v1370 = vcombine.high %v1368, 0
        %v1373 = vunpack.c.l.s4 1983009808
        %v1374 = vunpack.c.0.s8 %v1373
        %v1375 = vlaneseq
        %v1376 = vshrl.u32 %v1375, 7
        %v1377 = vsub.s32 %v1374, %v1376
        %v1378 = vrot.slane %v1293, %v1377
        %v1381 = vunpack.c.l.s4 1983009808
        %v1382 = vunpack.c.0.s8 %v1381
        %v1383 = vlaneseq
        %v1384 = vshrl.u32 %v1383, 7
        %v1385 = vsub.s32 %v1382, %v1384
        %v1386 = vrot.slane %v1299, %v1385
        %v1387 = vcombine.low %v1378, %v1386
        %v1388 = vcombine.high %v1378, %v1386
        %v1390 = vunpack.c.l.s4 1934713408
        %v1391 = vunpack.c.0.s8 %v1390
        %v1392 = vlaneseq
        %v1393 = vshrl.u32 %v1392, 7
        %v1394 = vsub.s32 %v1391, %v1393
        %v1395 = vrot.slane %v1387, %v1394
        %v1397 = vunpack.c.l.s4 1934713408
        %v1398 = vunpack.c.0.s8 %v1397
        %v1399 = vlaneseq
        %v1400 = vshrl.u32 %v1399, 7
        %v1401 = vsub.s32 %v1398, %v1400
        %v1402 = vrot.slane %v1388, %v1401
        %v1403 = vcombine.high %v1395, 0
        %v1404 = vcombine.high %v1402, 0
        %v1407 = vunpack.c.l.s4 1983009808
        %v1408 = vunpack.c.0.s8 %v1407
        %v1409 = vlaneseq
        %v1410 = vshrl.u32 %v1409, 7
        %v1411 = vsub.s32 %v1408, %v1410
        %v1412 = vrot.slane %v1296, %v1411
        %v1415 = vunpack.c.l.s4 1983009808
        %v1416 = vunpack.c.0.s8 %v1415
        %v1417 = vlaneseq
        %v1418 = vshrl.u32 %v1417, 7
        %v1419 = vsub.s32 %v1416, %v1418
        %v1420 = vrot.slane %v1302, %v1419
        %v1421 = vcombine.low %v1412, %v1420
        %v1422 = vcombine.high %v1412, %v1420
        %v1424 = vunpack.c.l.s4 1934713408
        %v1425 = vunpack.c.0.s8 %v1424
        %v1426 = vlaneseq
        %v1427 = vshrl.u32 %v1426, 7
        %v1428 = vsub.s32 %v1425, %v1427
        %v1429 = vrot.slane %v1421, %v1428
        %v1431 = vunpack.c.l.s4 1934713408
        %v1432 = vunpack.c.0.s8 %v1431
        %v1433 = vlaneseq
        %v1434 = vshrl.u32 %v1433, 7
        %v1435 = vsub.s32 %v1432, %v1434
        %v1436 = vrot.slane %v1422, %v1435
        %v1437 = vcombine.high %v1429, 0
        %v1438 = vcombine.high %v1436, 0
        %v1440 = vunpack.c.l.b16 %v1361
        %v1441 = vpack.c.b16 %v1440, %v1440
        %1442 = vrot.lane.b32.xlu0 %v1441, 16
        %v1443 = vpop.permute.xlu0 %1442
        %v1445 = vunpack.c.l.b16 %v1335
        %v1446 = vpack.c.b16 %v1445, %v1445
        %1447 = vrot.lane.b32.xlu0 %v1446, 32
        %v1448 = vpop.permute.xlu0 %1447
        %v1450 = vunpack.c.l.b16 %v1369
        %v1451 = vpack.c.b16 %v1450, %v1450
        %1452 = vrot.lane.b32.xlu0 %v1451, 48
        %v1453 = vpop.permute.xlu0 %1452
        %v1455 = vunpack.c.l.b16 %v1334
        %v1456 = vpack.c.b16 %v1455, %v1455
        %1457 = vrot.lane.b32.xlu0 %v1456, 64
        %v1458 = vpop.permute.xlu0 %1457
        %v1460 = vunpack.c.l.b16 %v1368
        %v1461 = vpack.c.b16 %v1460, %v1460
        %1462 = vrot.lane.b32.xlu0 %v1461, 80
        %v1463 = vpop.permute.xlu0 %1462
        %v1465 = vunpack.c.l.b16 %v1336
        %v1466 = vpack.c.b16 %v1465, %v1465
        %1467 = vrot.lane.b32.xlu0 %v1466, 96
        %v1468 = vpop.permute.xlu0 %1467
        %v1470 = vunpack.c.l.b16 %v1370
        %v1471 = vpack.c.b16 %v1470, %v1470
        %1472 = vrot.lane.b32.xlu0 %v1471, 112
        %v1473 = vpop.permute.xlu0 %1472
        %v1475 = vunpack.c.l.b16 %v1429
        %v1476 = vpack.c.b16 %v1475, %v1475
        %1477 = vrot.lane.b32.xlu0 %v1476, 16
        %v1478 = vpop.permute.xlu0 %1477
        %v1480 = vunpack.c.l.b16 %v1403
        %v1481 = vpack.c.b16 %v1480, %v1480
        %1482 = vrot.lane.b32.xlu0 %v1481, 32
        %v1483 = vpop.permute.xlu0 %1482
        %v1485 = vunpack.c.l.b16 %v1437
        %v1486 = vpack.c.b16 %v1485, %v1485
        %1487 = vrot.lane.b32.xlu0 %v1486, 48
        %v1488 = vpop.permute.xlu0 %1487
        %v1490 = vunpack.c.l.b16 %v1402
        %v1491 = vpack.c.b16 %v1490, %v1490
        %1492 = vrot.lane.b32.xlu0 %v1491, 64
        %v1493 = vpop.permute.xlu0 %1492
        %v1495 = vunpack.c.l.b16 %v1436
        %v1496 = vpack.c.b16 %v1495, %v1495
        %1497 = vrot.lane.b32.xlu0 %v1496, 80
        %v1498 = vpop.permute.xlu0 %1497
        %v1500 = vunpack.c.l.b16 %v1404
        %v1501 = vpack.c.b16 %v1500, %v1500
        %1502 = vrot.lane.b32.xlu0 %v1501, 96
        %v1503 = vpop.permute.xlu0 %1502
        %v1505 = vunpack.c.l.b16 %v1438
        %v1506 = vpack.c.b16 %v1505, %v1505
        %1507 = vrot.lane.b32.xlu0 %v1506, 112
        %v1508 = vpop.permute.xlu0 %1507
        %v1511 = vsel %vm910, %v1327, %v1443
        %v1513 = vsel %vm914, %v1511, %v1448
        %v1515 = vsel %vm917, %v1513, %v1453
        %v1517 = vsel %vm920, %v1515, %v1458
        %v1519 = vsel %vm923, %v1517, %v1463
        %v1521 = vsel %vm926, %v1519, %v1468
        %v1523 = vsel %vm929, %v1521, %v1473
        %v1527 = vsel %vm910, %v1395, %v1478
        %v1529 = vsel %vm914, %v1527, %v1483
        %v1531 = vsel %vm917, %v1529, %v1488
        %v1533 = vsel %vm920, %v1531, %v1493
        %v1535 = vsel %vm923, %v1533, %v1498
        %v1537 = vsel %vm926, %v1535, %v1503
        %v1539 = vsel %vm929, %v1537, %v1508
        %1541 = vst [vmem:[#allocation3 + $0x20] sm:$0x3] %v1523
        %1542 = vst [vmem:[#allocation3 + $0x28] sm:$0x3] %v1539
        %v1543 = vld [vmem:[#allocation2] sm:$0xf]
        %v1544 = vld [vmem:[#allocation2 + $0x4] sm:$0xf]
        %v1545 = vld [vmem:[#allocation2 + $0x8] sm:$0x1]
        %v1546 = vld [vmem:[#allocation2 + $0xc] sm:$0xf]
        %v1547 = vld [vmem:[#allocation2 + $0x10] sm:$0xf]
        %v1548 = vld [vmem:[#allocation2 + $0x14] sm:$0x1]
        %v1549 = vld [vmem:[#allocation2 + $0x18] sm:$0xf]
        %v1550 = vld [vmem:[#allocation2 + $0x1c] sm:$0xf]
        %v1551 = vld [vmem:[#allocation2 + $0x20] sm:$0x1]
        %v1552 = vld [vmem:[#allocation2 + $0x24] sm:$0xf]
        %v1553 = vld [vmem:[#allocation2 + $0x28] sm:$0xf]
        %v1554 = vld [vmem:[#allocation2 + $0x2c] sm:$0x1]
        %vm1555 = vsmask.f32 3328
        %vm1556 = vsmask.f32 7440
        %vm1557 = vmor %vm1555, %vm1556
        %v1559 = vshrl.u32 %v1543, 16
        %v1561 = vrot.slane %v1559, 4
        %v1562 = vshll.u32 %v1543, 16
        %v1564 = vrot.slane %v1562, 5
        %v1565 = vor.u32 %v1561, %v1564
        %v1566 = vrot.slane %v1565, 4
        %v1568 = vshll.u32 %v1544, 16
        %v1570 = vrot.slane %v1568, 5
        %v1571 = vsel %vm1557, %v1566, %v1570
        %v1572 = vshrl.u32 %v1544, 16
        %v1574 = vrot.slane %v1572, 4
        %v1575 = vor.u32 %v1574, %v1570
        %v1576 = vrot.slane %v1575, 4
        %v1578 = vshll.u32 %v1545, 16
        %v1580 = vrot.slane %v1578, 5
        %v1581 = vsel %vm1557, %v1576, %v1580
        %v1583 = vshrl.u32 %v1546, 16
        %v1585 = vrot.slane %v1583, 4
        %v1586 = vshll.u32 %v1546, 16
        %v1588 = vrot.slane %v1586, 5
        %v1589 = vor.u32 %v1585, %v1588
        %v1590 = vrot.slane %v1589, 4
        %v1592 = vshll.u32 %v1547, 16
        %v1594 = vrot.slane %v1592, 5
        %v1595 = vsel %vm1557, %v1590, %v1594
        %v1596 = vshrl.u32 %v1547, 16
        %v1598 = vrot.slane %v1596, 4
        %v1599 = vor.u32 %v1598, %v1594
        %v1600 = vrot.slane %v1599, 4
        %v1602 = vshll.u32 %v1548, 16
        %v1604 = vrot.slane %v1602, 5
        %v1605 = vsel %vm1557, %v1600, %v1604
        %v1607 = vshrl.u32 %v1549, 16
        %v1609 = vrot.slane %v1607, 4
        %v1610 = vshll.u32 %v1549, 16
        %v1612 = vrot.slane %v1610, 5
        %v1613 = vor.u32 %v1609, %v1612
        %v1614 = vrot.slane %v1613, 4
        %v1616 = vshll.u32 %v1550, 16
        %v1618 = vrot.slane %v1616, 5
        %v1619 = vsel %vm1557, %v1614, %v1618
        %v1620 = vshrl.u32 %v1550, 16
        %v1622 = vrot.slane %v1620, 4
        %v1623 = vor.u32 %v1622, %v1618
        %v1624 = vrot.slane %v1623, 4
        %v1626 = vshll.u32 %v1551, 16
        %v1628 = vrot.slane %v1626, 5
        %v1629 = vsel %vm1557, %v1624, %v1628
        %v1631 = vshrl.u32 %v1552, 16
        %v1633 = vrot.slane %v1631, 4
        %v1634 = vshll.u32 %v1552, 16
        %v1636 = vrot.slane %v1634, 5
        %v1637 = vor.u32 %v1633, %v1636
        %v1638 = vrot.slane %v1637, 4
        %v1640 = vshll.u32 %v1553, 16
        %v1642 = vrot.slane %v1640, 5
        %v1643 = vsel %vm1557, %v1638, %v1642
        %v1644 = vshrl.u32 %v1553, 16
        %v1646 = vrot.slane %v1644, 4
        %v1647 = vor.u32 %v1646, %v1642
        %v1648 = vrot.slane %v1647, 4
        %v1650 = vshll.u32 %v1554, 16
        %v1652 = vrot.slane %v1650, 5
        %v1653 = vsel %vm1557, %v1648, %v1652
        %v1656 = vpack.i.b16 %v1595, %v1571
        %v1657 = vshrl.u32 %v1571, 16
        %v1658 = vshrl.u32 %v1595, 16
        %v1659 = vpack.i.b16 %v1658, %v1657
        %v1662 = vpack.i.b16 %v1643, %v1619
        %v1663 = vshrl.u32 %v1619, 16
        %v1664 = vshrl.u32 %v1643, 16
        %v1665 = vpack.i.b16 %v1664, %v1663
        %v1668 = vpack.i.b16 %v1605, %v1581
        %v1669 = vshrl.u32 %v1581, 16
        %v1670 = vshrl.u32 %v1605, 16
        %v1671 = vpack.i.b16 %v1670, %v1669
        %v1674 = vpack.i.b16 %v1653, %v1629
        %v1675 = vshrl.u32 %v1629, 16
        %v1676 = vshrl.u32 %v1653, 16
        %v1677 = vpack.i.b16 %v1676, %v1675
        %v1680 = vunpack.c.l.s4 1983009808
        %v1681 = vunpack.c.0.s8 %v1680
        %v1682 = vlaneseq
        %v1683 = vshrl.u32 %v1682, 7
        %v1684 = vsub.s32 %v1681, %v1683
        %v1685 = vrot.slane %v1656, %v1684
        %v1688 = vunpack.c.l.s4 1983009808
        %v1689 = vunpack.c.0.s8 %v1688
        %v1690 = vlaneseq
        %v1691 = vshrl.u32 %v1690, 7
        %v1692 = vsub.s32 %v1689, %v1691
        %v1693 = vrot.slane %v1662, %v1692
        %v1694 = vcombine.low %v1685, %v1693
        %v1695 = vcombine.high %v1685, %v1693
        %v1697 = vunpack.c.l.s4 1934713408
        %v1698 = vunpack.c.0.s8 %v1697
        %v1699 = vlaneseq
        %v1700 = vshrl.u32 %v1699, 7
        %v1701 = vsub.s32 %v1698, %v1700
        %v1702 = vrot.slane %v1694, %v1701
        %v1704 = vunpack.c.l.s4 1934713408
        %v1705 = vunpack.c.0.s8 %v1704
        %v1706 = vlaneseq
        %v1707 = vshrl.u32 %v1706, 7
        %v1708 = vsub.s32 %v1705, %v1707
        %v1709 = vrot.slane %v1695, %v1708
        %v1710 = vcombine.high %v1702, 0
        %v1711 = vcombine.high %v1709, 0
        %v1714 = vunpack.c.l.s4 1983009808
        %v1715 = vunpack.c.0.s8 %v1714
        %v1716 = vlaneseq
        %v1717 = vshrl.u32 %v1716, 7
        %v1718 = vsub.s32 %v1715, %v1717
        %v1719 = vrot.slane %v1659, %v1718
        %v1722 = vunpack.c.l.s4 1983009808
        %v1723 = vunpack.c.0.s8 %v1722
        %v1724 = vlaneseq
        %v1725 = vshrl.u32 %v1724, 7
        %v1726 = vsub.s32 %v1723, %v1725
        %v1727 = vrot.slane %v1665, %v1726
        %v1728 = vcombine.low %v1719, %v1727
        %v1729 = vcombine.high %v1719, %v1727
        %v1731 = vunpack.c.l.s4 1934713408
        %v1732 = vunpack.c.0.s8 %v1731
        %v1733 = vlaneseq
        %v1734 = vshrl.u32 %v1733, 7
        %v1735 = vsub.s32 %v1732, %v1734
        %v1736 = vrot.slane %v1728, %v1735
        %v1738 = vunpack.c.l.s4 1934713408
        %v1739 = vunpack.c.0.s8 %v1738
        %v1740 = vlaneseq
        %v1741 = vshrl.u32 %v1740, 7
        %v1742 = vsub.s32 %v1739, %v1741
        %v1743 = vrot.slane %v1729, %v1742
        %v1744 = vcombine.high %v1736, 0
        %v1745 = vcombine.high %v1743, 0
        %v1748 = vunpack.c.l.s4 1983009808
        %v1749 = vunpack.c.0.s8 %v1748
        %v1750 = vlaneseq
        %v1751 = vshrl.u32 %v1750, 7
        %v1752 = vsub.s32 %v1749, %v1751
        %v1753 = vrot.slane %v1668, %v1752
        %v1756 = vunpack.c.l.s4 1983009808
        %v1757 = vunpack.c.0.s8 %v1756
        %v1758 = vlaneseq
        %v1759 = vshrl.u32 %v1758, 7
        %v1760 = vsub.s32 %v1757, %v1759
        %v1761 = vrot.slane %v1674, %v1760
        %v1762 = vcombine.low %v1753, %v1761
        %v1763 = vcombine.high %v1753, %v1761
        %v1765 = vunpack.c.l.s4 1934713408
        %v1766 = vunpack.c.0.s8 %v1765
        %v1767 = vlaneseq
        %v1768 = vshrl.u32 %v1767, 7
        %v1769 = vsub.s32 %v1766, %v1768
        %v1770 = vrot.slane %v1762, %v1769
        %v1772 = vunpack.c.l.s4 1934713408
        %v1773 = vunpack.c.0.s8 %v1772
        %v1774 = vlaneseq
        %v1775 = vshrl.u32 %v1774, 7
        %v1776 = vsub.s32 %v1773, %v1775
        %v1777 = vrot.slane %v1763, %v1776
        %v1778 = vcombine.high %v1770, 0
        %v1779 = vcombine.high %v1777, 0
        %v1782 = vunpack.c.l.s4 1983009808
        %v1783 = vunpack.c.0.s8 %v1782
        %v1784 = vlaneseq
        %v1785 = vshrl.u32 %v1784, 7
        %v1786 = vsub.s32 %v1783, %v1785
        %v1787 = vrot.slane %v1671, %v1786
        %v1790 = vunpack.c.l.s4 1983009808
        %v1791 = vunpack.c.0.s8 %v1790
        %v1792 = vlaneseq
        %v1793 = vshrl.u32 %v1792, 7
        %v1794 = vsub.s32 %v1791, %v1793
        %v1795 = vrot.slane %v1677, %v1794
        %v1796 = vcombine.low %v1787, %v1795
        %v1797 = vcombine.high %v1787, %v1795
        %v1799 = vunpack.c.l.s4 1934713408
        %v1800 = vunpack.c.0.s8 %v1799
        %v1801 = vlaneseq
        %v1802 = vshrl.u32 %v1801, 7
        %v1803 = vsub.s32 %v1800, %v1802
        %v1804 = vrot.slane %v1796, %v1803
        %v1806 = vunpack.c.l.s4 1934713408
        %v1807 = vunpack.c.0.s8 %v1806
        %v1808 = vlaneseq
        %v1809 = vshrl.u32 %v1808, 7
        %v1810 = vsub.s32 %v1807, %v1809
        %v1811 = vrot.slane %v1797, %v1810
        %v1812 = vcombine.high %v1804, 0
        %v1813 = vcombine.high %v1811, 0
        %v1815 = vunpack.c.l.b16 %v1736
        %v1816 = vpack.c.b16 %v1815, %v1815
        %1817 = vrot.lane.b32.xlu0 %v1816, 16
        %v1818 = vpop.permute.xlu0 %1817
        %v1820 = vunpack.c.l.b16 %v1710
        %v1821 = vpack.c.b16 %v1820, %v1820
        %1822 = vrot.lane.b32.xlu0 %v1821, 32
        %v1823 = vpop.permute.xlu0 %1822
        %v1825 = vunpack.c.l.b16 %v1744
        %v1826 = vpack.c.b16 %v1825, %v1825
        %1827 = vrot.lane.b32.xlu0 %v1826, 48
        %v1828 = vpop.permute.xlu0 %1827
        %v1830 = vunpack.c.l.b16 %v1709
        %v1831 = vpack.c.b16 %v1830, %v1830
        %1832 = vrot.lane.b32.xlu0 %v1831, 64
        %v1833 = vpop.permute.xlu0 %1832
        %v1835 = vunpack.c.l.b16 %v1743
        %v1836 = vpack.c.b16 %v1835, %v1835
        %1837 = vrot.lane.b32.xlu0 %v1836, 80
        %v1838 = vpop.permute.xlu0 %1837
        %v1840 = vunpack.c.l.b16 %v1711
        %v1841 = vpack.c.b16 %v1840, %v1840
        %1842 = vrot.lane.b32.xlu0 %v1841, 96
        %v1843 = vpop.permute.xlu0 %1842
        %v1845 = vunpack.c.l.b16 %v1745
        %v1846 = vpack.c.b16 %v1845, %v1845
        %1847 = vrot.lane.b32.xlu0 %v1846, 112
        %v1848 = vpop.permute.xlu0 %1847
        %v1850 = vunpack.c.l.b16 %v1804
        %v1851 = vpack.c.b16 %v1850, %v1850
        %1852 = vrot.lane.b32.xlu0 %v1851, 16
        %v1853 = vpop.permute.xlu0 %1852
        %v1855 = vunpack.c.l.b16 %v1778
        %v1856 = vpack.c.b16 %v1855, %v1855
        %1857 = vrot.lane.b32.xlu0 %v1856, 32
        %v1858 = vpop.permute.xlu0 %1857
        %v1860 = vunpack.c.l.b16 %v1812
        %v1861 = vpack.c.b16 %v1860, %v1860
        %1862 = vrot.lane.b32.xlu0 %v1861, 48
        %v1863 = vpop.permute.xlu0 %1862
        %v1865 = vunpack.c.l.b16 %v1777
        %v1866 = vpack.c.b16 %v1865, %v1865
        %1867 = vrot.lane.b32.xlu0 %v1866, 64
        %v1868 = vpop.permute.xlu0 %1867
        %v1870 = vunpack.c.l.b16 %v1811
        %v1871 = vpack.c.b16 %v1870, %v1870
        %1872 = vrot.lane.b32.xlu0 %v1871, 80
        %v1873 = vpop.permute.xlu0 %1872
        %v1875 = vunpack.c.l.b16 %v1779
        %v1876 = vpack.c.b16 %v1875, %v1875
        %1877 = vrot.lane.b32.xlu0 %v1876, 96
        %v1878 = vpop.permute.xlu0 %1877
        %v1880 = vunpack.c.l.b16 %v1813
        %v1881 = vpack.c.b16 %v1880, %v1880
        %1882 = vrot.lane.b32.xlu0 %v1881, 112
        %v1883 = vpop.permute.xlu0 %1882
        %v1886 = vsel %vm910, %v1702, %v1818
        %v1888 = vsel %vm914, %v1886, %v1823
        %v1890 = vsel %vm917, %v1888, %v1828
        %v1892 = vsel %vm920, %v1890, %v1833
        %v1894 = vsel %vm923, %v1892, %v1838
        %v1896 = vsel %vm926, %v1894, %v1843
        %v1898 = vsel %vm929, %v1896, %v1848
        %v1902 = vsel %vm910, %v1770, %v1853
        %v1904 = vsel %vm914, %v1902, %v1858
        %v1906 = vsel %vm917, %v1904, %v1863
        %v1908 = vsel %vm920, %v1906, %v1868
        %v1910 = vsel %vm923, %v1908, %v1873
        %v1912 = vsel %vm926, %v1910, %v1878
        %v1914 = vsel %vm929, %v1912, %v1883
        %1916 = vst [vmem:[#allocation3 + $0x30] sm:$0x3] %v1898
        %1917 = vst [vmem:[#allocation3 + $0x38] sm:$0x3] %v1914
        %v1918 = vld [vmem:[#allocation2] sm:$0xf]
        %v1919 = vld [vmem:[#allocation2 + $0x4] sm:$0xf]
        %v1920 = vld [vmem:[#allocation2 + $0x8] sm:$0x1]
        %v1921 = vld [vmem:[#allocation2 + $0xc] sm:$0xf]
        %v1922 = vld [vmem:[#allocation2 + $0x10] sm:$0xf]
        %v1923 = vld [vmem:[#allocation2 + $0x14] sm:$0x1]
        %v1924 = vld [vmem:[#allocation2 + $0x18] sm:$0xf]
        %v1925 = vld [vmem:[#allocation2 + $0x1c] sm:$0xf]
        %v1926 = vld [vmem:[#allocation2 + $0x20] sm:$0x1]
        %v1927 = vld [vmem:[#allocation2 + $0x24] sm:$0xf]
        %v1928 = vld [vmem:[#allocation2 + $0x28] sm:$0xf]
        %v1929 = vld [vmem:[#allocation2 + $0x2c] sm:$0x1]
        %v1931 = vshrl.u32 %v1918, 16
        %v1933 = vrot.slane %v1931, 4
        %v1934 = vshll.u32 %v1918, 16
        %v1936 = vrot.slane %v1934, 5
        %v1937 = vor.u32 %v1933, %v1936
        %v1938 = vrot.slane %v1937, 4
        %v1940 = vshll.u32 %v1919, 16
        %v1942 = vrot.slane %v1940, 5
        %v1943 = vsel %vm1557, %v1938, %v1942
        %v1944 = vshrl.u32 %v1919, 16
        %v1946 = vrot.slane %v1944, 4
        %v1947 = vor.u32 %v1946, %v1942
        %v1948 = vrot.slane %v1947, 4
        %v1950 = vshll.u32 %v1920, 16
        %v1952 = vrot.slane %v1950, 5
        %v1953 = vsel %vm1557, %v1948, %v1952
        %v1955 = vshrl.u32 %v1921, 16
        %v1957 = vrot.slane %v1955, 4
        %v1958 = vshll.u32 %v1921, 16
        %v1960 = vrot.slane %v1958, 5
        %v1961 = vor.u32 %v1957, %v1960
        %v1962 = vrot.slane %v1961, 4
        %v1964 = vshll.u32 %v1922, 16
        %v1966 = vrot.slane %v1964, 5
        %v1967 = vsel %vm1557, %v1962, %v1966
        %v1968 = vshrl.u32 %v1922, 16
        %v1970 = vrot.slane %v1968, 4
        %v1971 = vor.u32 %v1970, %v1966
        %v1972 = vrot.slane %v1971, 4
        %v1974 = vshll.u32 %v1923, 16
        %v1976 = vrot.slane %v1974, 5
        %v1977 = vsel %vm1557, %v1972, %v1976
        %v1979 = vshrl.u32 %v1924, 16
        %v1981 = vrot.slane %v1979, 4
        %v1982 = vshll.u32 %v1924, 16
        %v1984 = vrot.slane %v1982, 5
        %v1985 = vor.u32 %v1981, %v1984
        %v1986 = vrot.slane %v1985, 4
        %v1988 = vshll.u32 %v1925, 16
        %v1990 = vrot.slane %v1988, 5
        %v1991 = vsel %vm1557, %v1986, %v1990
        %v1992 = vshrl.u32 %v1925, 16
        %v1994 = vrot.slane %v1992, 4
        %v1995 = vor.u32 %v1994, %v1990
        %v1996 = vrot.slane %v1995, 4
        %v1998 = vshll.u32 %v1926, 16
        %v2000 = vrot.slane %v1998, 5
        %v2001 = vsel %vm1557, %v1996, %v2000
        %v2003 = vshrl.u32 %v1927, 16
        %v2005 = vrot.slane %v2003, 4
        %v2006 = vshll.u32 %v1927, 16
        %v2008 = vrot.slane %v2006, 5
        %v2009 = vor.u32 %v2005, %v2008
        %v2010 = vrot.slane %v2009, 4
        %v2012 = vshll.u32 %v1928, 16
        %v2014 = vrot.slane %v2012, 5
        %v2015 = vsel %vm1557, %v2010, %v2014
        %v2016 = vshrl.u32 %v1928, 16
        %v2018 = vrot.slane %v2016, 4
        %v2019 = vor.u32 %v2018, %v2014
        %v2020 = vrot.slane %v2019, 4
        %v2022 = vshll.u32 %v1929, 16
        %v2024 = vrot.slane %v2022, 5
        %v2025 = vsel %vm1557, %v2020, %v2024
        %2026 = vrot.lane.b32.xlu0 %v1943, 127
        %v2027 = vpop.permute.xlu0 %2026
        %2028 = vrot.lane.b32.xlu0 %v1953, 127
        %v2029 = vpop.permute.xlu0 %2028
        %2030 = vrot.lane.b32.xlu0 %v1967, 127
        %v2031 = vpop.permute.xlu0 %2030
        %2032 = vrot.lane.b32.xlu0 %v1977, 127
        %v2033 = vpop.permute.xlu0 %2032
        %2034 = vrot.lane.b32.xlu0 %v1991, 127
        %v2035 = vpop.permute.xlu0 %2034
        %2036 = vrot.lane.b32.xlu0 %v2001, 127
        %v2037 = vpop.permute.xlu0 %2036
        %2038 = vrot.lane.b32.xlu0 %v2015, 127
        %v2039 = vpop.permute.xlu0 %2038
        %2040 = vrot.lane.b32.xlu0 %v2025, 127
        %v2041 = vpop.permute.xlu0 %2040
        %v2044 = vpack.i.b16 %v2031, %v2027
        %v2045 = vshrl.u32 %v2027, 16
        %v2046 = vshrl.u32 %v2031, 16
        %v2047 = vpack.i.b16 %v2046, %v2045
        %v2050 = vpack.i.b16 %v2039, %v2035
        %v2051 = vshrl.u32 %v2035, 16
        %v2052 = vshrl.u32 %v2039, 16
        %v2053 = vpack.i.b16 %v2052, %v2051
        %v2056 = vpack.i.b16 %v2033, %v2029
        %v2057 = vshrl.u32 %v2029, 16
        %v2058 = vshrl.u32 %v2033, 16
        %v2059 = vpack.i.b16 %v2058, %v2057
        %v2062 = vpack.i.b16 %v2041, %v2037
        %v2063 = vshrl.u32 %v2037, 16
        %v2064 = vshrl.u32 %v2041, 16
        %v2065 = vpack.i.b16 %v2064, %v2063
        %v2068 = vunpack.c.l.s4 1983009808
        %v2069 = vunpack.c.0.s8 %v2068
        %v2070 = vlaneseq
        %v2071 = vshrl.u32 %v2070, 7
        %v2072 = vsub.s32 %v2069, %v2071
        %v2073 = vrot.slane %v2044, %v2072
        %v2076 = vunpack.c.l.s4 1983009808
        %v2077 = vunpack.c.0.s8 %v2076
        %v2078 = vlaneseq
        %v2079 = vshrl.u32 %v2078, 7
        %v2080 = vsub.s32 %v2077, %v2079
        %v2081 = vrot.slane %v2050, %v2080
        %v2082 = vcombine.low %v2073, %v2081
        %v2083 = vcombine.high %v2073, %v2081
        %v2085 = vunpack.c.l.s4 1934713408
        %v2086 = vunpack.c.0.s8 %v2085
        %v2087 = vlaneseq
        %v2088 = vshrl.u32 %v2087, 7
        %v2089 = vsub.s32 %v2086, %v2088
        %v2090 = vrot.slane %v2082, %v2089
        %v2092 = vunpack.c.l.s4 1934713408
        %v2093 = vunpack.c.0.s8 %v2092
        %v2094 = vlaneseq
        %v2095 = vshrl.u32 %v2094, 7
        %v2096 = vsub.s32 %v2093, %v2095
        %v2097 = vrot.slane %v2083, %v2096
        %v2098 = vcombine.high %v2090, 0
        %v2099 = vcombine.high %v2097, 0
        %v2102 = vunpack.c.l.s4 1983009808
        %v2103 = vunpack.c.0.s8 %v2102
        %v2104 = vlaneseq
        %v2105 = vshrl.u32 %v2104, 7
        %v2106 = vsub.s32 %v2103, %v2105
        %v2107 = vrot.slane %v2047, %v2106
        %v2110 = vunpack.c.l.s4 1983009808
        %v2111 = vunpack.c.0.s8 %v2110
        %v2112 = vlaneseq
        %v2113 = vshrl.u32 %v2112, 7
        %v2114 = vsub.s32 %v2111, %v2113
        %v2115 = vrot.slane %v2053, %v2114
        %v2116 = vcombine.low %v2107, %v2115
        %v2117 = vcombine.high %v2107, %v2115
        %v2119 = vunpack.c.l.s4 1934713408
        %v2120 = vunpack.c.0.s8 %v2119
        %v2121 = vlaneseq
        %v2122 = vshrl.u32 %v2121, 7
        %v2123 = vsub.s32 %v2120, %v2122
        %v2124 = vrot.slane %v2116, %v2123
        %v2126 = vunpack.c.l.s4 1934713408
        %v2127 = vunpack.c.0.s8 %v2126
        %v2128 = vlaneseq
        %v2129 = vshrl.u32 %v2128, 7
        %v2130 = vsub.s32 %v2127, %v2129
        %v2131 = vrot.slane %v2117, %v2130
        %v2132 = vcombine.high %v2124, 0
        %v2133 = vcombine.high %v2131, 0
        %v2136 = vunpack.c.l.s4 1983009808
        %v2137 = vunpack.c.0.s8 %v2136
        %v2138 = vlaneseq
        %v2139 = vshrl.u32 %v2138, 7
        %v2140 = vsub.s32 %v2137, %v2139
        %v2141 = vrot.slane %v2056, %v2140
        %v2144 = vunpack.c.l.s4 1983009808
        %v2145 = vunpack.c.0.s8 %v2144
        %v2146 = vlaneseq
        %v2147 = vshrl.u32 %v2146, 7
        %v2148 = vsub.s32 %v2145, %v2147
        %v2149 = vrot.slane %v2062, %v2148
        %v2150 = vcombine.low %v2141, %v2149
        %v2151 = vcombine.high %v2141, %v2149
        %v2153 = vunpack.c.l.s4 1934713408
        %v2154 = vunpack.c.0.s8 %v2153
        %v2155 = vlaneseq
        %v2156 = vshrl.u32 %v2155, 7
        %v2157 = vsub.s32 %v2154, %v2156
        %v2158 = vrot.slane %v2150, %v2157
        %v2160 = vunpack.c.l.s4 1934713408
        %v2161 = vunpack.c.0.s8 %v2160
        %v2162 = vlaneseq
        %v2163 = vshrl.u32 %v2162, 7
        %v2164 = vsub.s32 %v2161, %v2163
        %v2165 = vrot.slane %v2151, %v2164
        %v2166 = vcombine.high %v2158, 0
        %v2167 = vcombine.high %v2165, 0
        %v2170 = vunpack.c.l.s4 1983009808
        %v2171 = vunpack.c.0.s8 %v2170
        %v2172 = vlaneseq
        %v2173 = vshrl.u32 %v2172, 7
        %v2174 = vsub.s32 %v2171, %v2173
        %v2175 = vrot.slane %v2059, %v2174
        %v2178 = vunpack.c.l.s4 1983009808
        %v2179 = vunpack.c.0.s8 %v2178
        %v2180 = vlaneseq
        %v2181 = vshrl.u32 %v2180, 7
        %v2182 = vsub.s32 %v2179, %v2181
        %v2183 = vrot.slane %v2065, %v2182
        %v2184 = vcombine.low %v2175, %v2183
        %v2185 = vcombine.high %v2175, %v2183
        %v2187 = vunpack.c.l.s4 1934713408
        %v2188 = vunpack.c.0.s8 %v2187
        %v2189 = vlaneseq
        %v2190 = vshrl.u32 %v2189, 7
        %v2191 = vsub.s32 %v2188, %v2190
        %v2192 = vrot.slane %v2184, %v2191
        %v2194 = vunpack.c.l.s4 1934713408
        %v2195 = vunpack.c.0.s8 %v2194
        %v2196 = vlaneseq
        %v2197 = vshrl.u32 %v2196, 7
        %v2198 = vsub.s32 %v2195, %v2197
        %v2199 = vrot.slane %v2185, %v2198
        %v2200 = vcombine.high %v2192, 0
        %v2201 = vcombine.high %v2199, 0
        %v2203 = vunpack.c.l.b16 %v2124
        %v2204 = vpack.c.b16 %v2203, %v2203
        %2205 = vrot.lane.b32.xlu0 %v2204, 16
        %v2206 = vpop.permute.xlu0 %2205
        %v2208 = vunpack.c.l.b16 %v2098
        %v2209 = vpack.c.b16 %v2208, %v2208
        %2210 = vrot.lane.b32.xlu0 %v2209, 32
        %v2211 = vpop.permute.xlu0 %2210
        %v2213 = vunpack.c.l.b16 %v2132
        %v2214 = vpack.c.b16 %v2213, %v2213
        %2215 = vrot.lane.b32.xlu0 %v2214, 48
        %v2216 = vpop.permute.xlu0 %2215
        %v2218 = vunpack.c.l.b16 %v2097
        %v2219 = vpack.c.b16 %v2218, %v2218
        %2220 = vrot.lane.b32.xlu0 %v2219, 64
        %v2221 = vpop.permute.xlu0 %2220
        %v2223 = vunpack.c.l.b16 %v2131
        %v2224 = vpack.c.b16 %v2223, %v2223
        %2225 = vrot.lane.b32.xlu0 %v2224, 80
        %v2226 = vpop.permute.xlu0 %2225
        %v2228 = vunpack.c.l.b16 %v2099
        %v2229 = vpack.c.b16 %v2228, %v2228
        %2230 = vrot.lane.b32.xlu0 %v2229, 96
        %v2231 = vpop.permute.xlu0 %2230
        %v2233 = vunpack.c.l.b16 %v2133
        %v2234 = vpack.c.b16 %v2233, %v2233
        %2235 = vrot.lane.b32.xlu0 %v2234, 112
        %v2236 = vpop.permute.xlu0 %2235
        %v2238 = vunpack.c.l.b16 %v2192
        %v2239 = vpack.c.b16 %v2238, %v2238
        %2240 = vrot.lane.b32.xlu0 %v2239, 16
        %v2241 = vpop.permute.xlu0 %2240
        %v2243 = vunpack.c.l.b16 %v2166
        %v2244 = vpack.c.b16 %v2243, %v2243
        %2245 = vrot.lane.b32.xlu0 %v2244, 32
        %v2246 = vpop.permute.xlu0 %2245
        %v2248 = vunpack.c.l.b16 %v2200
        %v2249 = vpack.c.b16 %v2248, %v2248
        %2250 = vrot.lane.b32.xlu0 %v2249, 48
        %v2251 = vpop.permute.xlu0 %2250
        %v2253 = vunpack.c.l.b16 %v2165
        %v2254 = vpack.c.b16 %v2253, %v2253
        %2255 = vrot.lane.b32.xlu0 %v2254, 64
        %v2256 = vpop.permute.xlu0 %2255
        %v2258 = vunpack.c.l.b16 %v2199
        %v2259 = vpack.c.b16 %v2258, %v2258
        %2260 = vrot.lane.b32.xlu0 %v2259, 80
        %v2261 = vpop.permute.xlu0 %2260
        %v2263 = vunpack.c.l.b16 %v2167
        %v2264 = vpack.c.b16 %v2263, %v2263
        %2265 = vrot.lane.b32.xlu0 %v2264, 96
        %v2266 = vpop.permute.xlu0 %2265
        %v2268 = vunpack.c.l.b16 %v2201
        %v2269 = vpack.c.b16 %v2268, %v2268
        %2270 = vrot.lane.b32.xlu0 %v2269, 112
        %v2271 = vpop.permute.xlu0 %2270
        %v2274 = vsel %vm910, %v2090, %v2206
        %v2276 = vsel %vm914, %v2274, %v2211
        %v2278 = vsel %vm917, %v2276, %v2216
        %v2280 = vsel %vm920, %v2278, %v2221
        %v2282 = vsel %vm923, %v2280, %v2226
        %v2284 = vsel %vm926, %v2282, %v2231
        %v2286 = vsel %vm929, %v2284, %v2236
        %v2290 = vsel %vm910, %v2158, %v2241
        %v2292 = vsel %vm914, %v2290, %v2246
        %v2294 = vsel %vm917, %v2292, %v2251
        %v2296 = vsel %vm920, %v2294, %v2256
        %v2298 = vsel %vm923, %v2296, %v2261
        %v2300 = vsel %vm926, %v2298, %v2266
        %v2302 = vsel %vm929, %v2300, %v2271
        %2304 = vst [vmem:[#allocation3 + $0x40] sm:$0x3] %v2286
        %2305 = vst [vmem:[#allocation3 + $0x48] sm:$0x3] %v2302
        %v2306 = vld [vmem:[#allocation2] sm:$0xf]
        %v2307 = vld [vmem:[#allocation2 + $0x4] sm:$0xf]
        %v2308 = vld [vmem:[#allocation2 + $0x8] sm:$0x1]
        %v2309 = vld [vmem:[#allocation2 + $0xc] sm:$0xf]
        %v2310 = vld [vmem:[#allocation2 + $0x10] sm:$0xf]
        %v2311 = vld [vmem:[#allocation2 + $0x14] sm:$0x1]
        %v2312 = vld [vmem:[#allocation2 + $0x18] sm:$0xf]
        %v2313 = vld [vmem:[#allocation2 + $0x1c] sm:$0xf]
        %v2314 = vld [vmem:[#allocation2 + $0x20] sm:$0x1]
        %v2315 = vld [vmem:[#allocation2 + $0x24] sm:$0xf]
        %v2316 = vld [vmem:[#allocation2 + $0x28] sm:$0xf]
        %v2317 = vld [vmem:[#allocation2 + $0x2c] sm:$0x1]
        %v2319 = vshrl.u32 %v2306, 16
        %v2321 = vrot.slane %v2319, 4
        %v2322 = vshll.u32 %v2306, 16
        %v2324 = vrot.slane %v2322, 5
        %v2325 = vor.u32 %v2321, %v2324
        %v2326 = vrot.slane %v2325, 4
        %v2328 = vshll.u32 %v2307, 16
        %v2330 = vrot.slane %v2328, 5
        %v2331 = vsel %vm1557, %v2326, %v2330
        %v2332 = vshrl.u32 %v2307, 16
        %v2334 = vrot.slane %v2332, 4
        %v2335 = vor.u32 %v2334, %v2330
        %v2336 = vrot.slane %v2335, 4
        %v2338 = vshll.u32 %v2308, 16
        %v2340 = vrot.slane %v2338, 5
        %v2341 = vsel %vm1557, %v2336, %v2340
        %v2343 = vshrl.u32 %v2309, 16
        %v2345 = vrot.slane %v2343, 4
        %v2346 = vshll.u32 %v2309, 16
        %v2348 = vrot.slane %v2346, 5
        %v2349 = vor.u32 %v2345, %v2348
        %v2350 = vrot.slane %v2349, 4
        %v2352 = vshll.u32 %v2310, 16
        %v2354 = vrot.slane %v2352, 5
        %v2355 = vsel %vm1557, %v2350, %v2354
        %v2356 = vshrl.u32 %v2310, 16
        %v2358 = vrot.slane %v2356, 4
        %v2359 = vor.u32 %v2358, %v2354
        %v2360 = vrot.slane %v2359, 4
        %v2362 = vshll.u32 %v2311, 16
        %v2364 = vrot.slane %v2362, 5
        %v2365 = vsel %vm1557, %v2360, %v2364
        %v2367 = vshrl.u32 %v2312, 16
        %v2369 = vrot.slane %v2367, 4
        %v2370 = vshll.u32 %v2312, 16
        %v2372 = vrot.slane %v2370, 5
        %v2373 = vor.u32 %v2369, %v2372
        %v2374 = vrot.slane %v2373, 4
        %v2376 = vshll.u32 %v2313, 16
        %v2378 = vrot.slane %v2376, 5
        %v2379 = vsel %vm1557, %v2374, %v2378
        %v2380 = vshrl.u32 %v2313, 16
        %v2382 = vrot.slane %v2380, 4
        %v2383 = vor.u32 %v2382, %v2378
        %v2384 = vrot.slane %v2383, 4
        %v2386 = vshll.u32 %v2314, 16
        %v2388 = vrot.slane %v2386, 5
        %v2389 = vsel %vm1557, %v2384, %v2388
        %v2391 = vshrl.u32 %v2315, 16
        %v2393 = vrot.slane %v2391, 4
        %v2394 = vshll.u32 %v2315, 16
        %v2396 = vrot.slane %v2394, 5
        %v2397 = vor.u32 %v2393, %v2396
        %v2398 = vrot.slane %v2397, 4
        %v2400 = vshll.u32 %v2316, 16
        %v2402 = vrot.slane %v2400, 5
        %v2403 = vsel %vm1557, %v2398, %v2402
        %v2404 = vshrl.u32 %v2316, 16
        %v2406 = vrot.slane %v2404, 4
        %v2407 = vor.u32 %v2406, %v2402
        %v2408 = vrot.slane %v2407, 4
        %v2410 = vshll.u32 %v2317, 16
        %v2412 = vrot.slane %v2410, 5
        %v2413 = vsel %vm1557, %v2408, %v2412
        %2414 = vrot.lane.b32.xlu0 %v2331, 126
        %v2415 = vpop.permute.xlu0 %2414
        %2416 = vrot.lane.b32.xlu0 %v2341, 126
        %v2417 = vpop.permute.xlu0 %2416
        %2418 = vrot.lane.b32.xlu0 %v2355, 126
        %v2419 = vpop.permute.xlu0 %2418
        %2420 = vrot.lane.b32.xlu0 %v2365, 126
        %v2421 = vpop.permute.xlu0 %2420
        %2422 = vrot.lane.b32.xlu0 %v2379, 126
        %v2423 = vpop.permute.xlu0 %2422
        %2424 = vrot.lane.b32.xlu0 %v2389, 126
        %v2425 = vpop.permute.xlu0 %2424
        %2426 = vrot.lane.b32.xlu0 %v2403, 126
        %v2427 = vpop.permute.xlu0 %2426
        %2428 = vrot.lane.b32.xlu0 %v2413, 126
        %v2429 = vpop.permute.xlu0 %2428
        %v2432 = vpack.i.b16 %v2419, %v2415
        %v2433 = vshrl.u32 %v2415, 16
        %v2434 = vshrl.u32 %v2419, 16
        %v2435 = vpack.i.b16 %v2434, %v2433
        %v2438 = vpack.i.b16 %v2427, %v2423
        %v2439 = vshrl.u32 %v2423, 16
        %v2440 = vshrl.u32 %v2427, 16
        %v2441 = vpack.i.b16 %v2440, %v2439
        %v2444 = vpack.i.b16 %v2421, %v2417
        %v2445 = vshrl.u32 %v2417, 16
        %v2446 = vshrl.u32 %v2421, 16
        %v2447 = vpack.i.b16 %v2446, %v2445
        %v2450 = vpack.i.b16 %v2429, %v2425
        %v2451 = vshrl.u32 %v2425, 16
        %v2452 = vshrl.u32 %v2429, 16
        %v2453 = vpack.i.b16 %v2452, %v2451
        %v2456 = vunpack.c.l.s4 1983009808
        %v2457 = vunpack.c.0.s8 %v2456
        %v2458 = vlaneseq
        %v2459 = vshrl.u32 %v2458, 7
        %v2460 = vsub.s32 %v2457, %v2459
        %v2461 = vrot.slane %v2432, %v2460
        %v2464 = vunpack.c.l.s4 1983009808
        %v2465 = vunpack.c.0.s8 %v2464
        %v2466 = vlaneseq
        %v2467 = vshrl.u32 %v2466, 7
        %v2468 = vsub.s32 %v2465, %v2467
        %v2469 = vrot.slane %v2438, %v2468
        %v2470 = vcombine.low %v2461, %v2469
        %v2471 = vcombine.high %v2461, %v2469
        %v2473 = vunpack.c.l.s4 1934713408
        %v2474 = vunpack.c.0.s8 %v2473
        %v2475 = vlaneseq
        %v2476 = vshrl.u32 %v2475, 7
        %v2477 = vsub.s32 %v2474, %v2476
        %v2478 = vrot.slane %v2470, %v2477
        %v2480 = vunpack.c.l.s4 1934713408
        %v2481 = vunpack.c.0.s8 %v2480
        %v2482 = vlaneseq
        %v2483 = vshrl.u32 %v2482, 7
        %v2484 = vsub.s32 %v2481, %v2483
        %v2485 = vrot.slane %v2471, %v2484
        %v2486 = vcombine.high %v2478, 0
        %v2487 = vcombine.high %v2485, 0
        %v2490 = vunpack.c.l.s4 1983009808
        %v2491 = vunpack.c.0.s8 %v2490
        %v2492 = vlaneseq
        %v2493 = vshrl.u32 %v2492, 7
        %v2494 = vsub.s32 %v2491, %v2493
        %v2495 = vrot.slane %v2435, %v2494
        %v2498 = vunpack.c.l.s4 1983009808
        %v2499 = vunpack.c.0.s8 %v2498
        %v2500 = vlaneseq
        %v2501 = vshrl.u32 %v2500, 7
        %v2502 = vsub.s32 %v2499, %v2501
        %v2503 = vrot.slane %v2441, %v2502
        %v2504 = vcombine.low %v2495, %v2503
        %v2505 = vcombine.high %v2495, %v2503
        %v2507 = vunpack.c.l.s4 1934713408
        %v2508 = vunpack.c.0.s8 %v2507
        %v2509 = vlaneseq
        %v2510 = vshrl.u32 %v2509, 7
        %v2511 = vsub.s32 %v2508, %v2510
        %v2512 = vrot.slane %v2504, %v2511
        %v2514 = vunpack.c.l.s4 1934713408
        %v2515 = vunpack.c.0.s8 %v2514
        %v2516 = vlaneseq
        %v2517 = vshrl.u32 %v2516, 7
        %v2518 = vsub.s32 %v2515, %v2517
        %v2519 = vrot.slane %v2505, %v2518
        %v2520 = vcombine.high %v2512, 0
        %v2521 = vcombine.high %v2519, 0
        %v2524 = vunpack.c.l.s4 1983009808
        %v2525 = vunpack.c.0.s8 %v2524
        %v2526 = vlaneseq
        %v2527 = vshrl.u32 %v2526, 7
        %v2528 = vsub.s32 %v2525, %v2527
        %v2529 = vrot.slane %v2444, %v2528
        %v2532 = vunpack.c.l.s4 1983009808
        %v2533 = vunpack.c.0.s8 %v2532
        %v2534 = vlaneseq
        %v2535 = vshrl.u32 %v2534, 7
        %v2536 = vsub.s32 %v2533, %v2535
        %v2537 = vrot.slane %v2450, %v2536
        %v2538 = vcombine.low %v2529, %v2537
        %v2539 = vcombine.high %v2529, %v2537
        %v2541 = vunpack.c.l.s4 1934713408
        %v2542 = vunpack.c.0.s8 %v2541
        %v2543 = vlaneseq
        %v2544 = vshrl.u32 %v2543, 7
        %v2545 = vsub.s32 %v2542, %v2544
        %v2546 = vrot.slane %v2538, %v2545
        %v2548 = vunpack.c.l.s4 1934713408
        %v2549 = vunpack.c.0.s8 %v2548
        %v2550 = vlaneseq
        %v2551 = vshrl.u32 %v2550, 7
        %v2552 = vsub.s32 %v2549, %v2551
        %v2553 = vrot.slane %v2539, %v2552
        %v2554 = vcombine.high %v2546, 0
        %v2555 = vcombine.high %v2553, 0
        %v2558 = vunpack.c.l.s4 1983009808
        %v2559 = vunpack.c.0.s8 %v2558
        %v2560 = vlaneseq
        %v2561 = vshrl.u32 %v2560, 7
        %v2562 = vsub.s32 %v2559, %v2561
        %v2563 = vrot.slane %v2447, %v2562
        %v2566 = vunpack.c.l.s4 1983009808
        %v2567 = vunpack.c.0.s8 %v2566
        %v2568 = vlaneseq
        %v2569 = vshrl.u32 %v2568, 7
        %v2570 = vsub.s32 %v2567, %v2569
        %v2571 = vrot.slane %v2453, %v2570
        %v2572 = vcombine.low %v2563, %v2571
        %v2573 = vcombine.high %v2563, %v2571
        %v2575 = vunpack.c.l.s4 1934713408
        %v2576 = vunpack.c.0.s8 %v2575
        %v2577 = vlaneseq
        %v2578 = vshrl.u32 %v2577, 7
        %v2579 = vsub.s32 %v2576, %v2578
        %v2580 = vrot.slane %v2572, %v2579
        %v2582 = vunpack.c.l.s4 1934713408
        %v2583 = vunpack.c.0.s8 %v2582
        %v2584 = vlaneseq
        %v2585 = vshrl.u32 %v2584, 7
        %v2586 = vsub.s32 %v2583, %v2585
        %v2587 = vrot.slane %v2573, %v2586
        %v2588 = vcombine.high %v2580, 0
        %v2589 = vcombine.high %v2587, 0
        %v2591 = vunpack.c.l.b16 %v2512
        %v2592 = vpack.c.b16 %v2591, %v2591
        %2593 = vrot.lane.b32.xlu0 %v2592, 16
        %v2594 = vpop.permute.xlu0 %2593
        %v2596 = vunpack.c.l.b16 %v2486
        %v2597 = vpack.c.b16 %v2596, %v2596
        %2598 = vrot.lane.b32.xlu0 %v2597, 32
        %v2599 = vpop.permute.xlu0 %2598
        %v2601 = vunpack.c.l.b16 %v2520
        %v2602 = vpack.c.b16 %v2601, %v2601
        %2603 = vrot.lane.b32.xlu0 %v2602, 48
        %v2604 = vpop.permute.xlu0 %2603
        %v2606 = vunpack.c.l.b16 %v2485
        %v2607 = vpack.c.b16 %v2606, %v2606
        %2608 = vrot.lane.b32.xlu0 %v2607, 64
        %v2609 = vpop.permute.xlu0 %2608
        %v2611 = vunpack.c.l.b16 %v2519
        %v2612 = vpack.c.b16 %v2611, %v2611
        %2613 = vrot.lane.b32.xlu0 %v2612, 80
        %v2614 = vpop.permute.xlu0 %2613
        %v2616 = vunpack.c.l.b16 %v2487
        %v2617 = vpack.c.b16 %v2616, %v2616
        %2618 = vrot.lane.b32.xlu0 %v2617, 96
        %v2619 = vpop.permute.xlu0 %2618
        %v2621 = vunpack.c.l.b16 %v2521
        %v2622 = vpack.c.b16 %v2621, %v2621
        %2623 = vrot.lane.b32.xlu0 %v2622, 112
        %v2624 = vpop.permute.xlu0 %2623
        %v2626 = vunpack.c.l.b16 %v2580
        %v2627 = vpack.c.b16 %v2626, %v2626
        %2628 = vrot.lane.b32.xlu0 %v2627, 16
        %v2629 = vpop.permute.xlu0 %2628
        %v2631 = vunpack.c.l.b16 %v2554
        %v2632 = vpack.c.b16 %v2631, %v2631
        %2633 = vrot.lane.b32.xlu0 %v2632, 32
        %v2634 = vpop.permute.xlu0 %2633
        %v2636 = vunpack.c.l.b16 %v2588
        %v2637 = vpack.c.b16 %v2636, %v2636
        %2638 = vrot.lane.b32.xlu0 %v2637, 48
        %v2639 = vpop.permute.xlu0 %2638
        %v2641 = vunpack.c.l.b16 %v2553
        %v2642 = vpack.c.b16 %v2641, %v2641
        %2643 = vrot.lane.b32.xlu0 %v2642, 64
        %v2644 = vpop.permute.xlu0 %2643
        %v2646 = vunpack.c.l.b16 %v2587
        %v2647 = vpack.c.b16 %v2646, %v2646
        %2648 = vrot.lane.b32.xlu0 %v2647, 80
        %v2649 = vpop.permute.xlu0 %2648
        %v2651 = vunpack.c.l.b16 %v2555
        %v2652 = vpack.c.b16 %v2651, %v2651
        %2653 = vrot.lane.b32.xlu0 %v2652, 96
        %v2654 = vpop.permute.xlu0 %2653
        %v2656 = vunpack.c.l.b16 %v2589
        %v2657 = vpack.c.b16 %v2656, %v2656
        %2658 = vrot.lane.b32.xlu0 %v2657, 112
        %v2659 = vpop.permute.xlu0 %2658
        %v2662 = vsel %vm910, %v2478, %v2594
        %v2664 = vsel %vm914, %v2662, %v2599
        %v2666 = vsel %vm917, %v2664, %v2604
        %v2668 = vsel %vm920, %v2666, %v2609
        %v2670 = vsel %vm923, %v2668, %v2614
        %v2672 = vsel %vm926, %v2670, %v2619
        %v2674 = vsel %vm929, %v2672, %v2624
        %v2678 = vsel %vm910, %v2546, %v2629
        %v2680 = vsel %vm914, %v2678, %v2634
        %v2682 = vsel %vm917, %v2680, %v2639
        %v2684 = vsel %vm920, %v2682, %v2644
        %v2686 = vsel %vm923, %v2684, %v2649
        %v2688 = vsel %vm926, %v2686, %v2654
        %v2690 = vsel %vm929, %v2688, %v2659
        %2692 = vst [vmem:[#allocation3 + $0x50] sm:$0x3] %v2674
        %2693 = vst [vmem:[#allocation3 + $0x58] sm:$0x3] %v2690
        %v2694 = vld [vmem:[#allocation2] sm:$0xe]
        %v2695 = vld [vmem:[#allocation2 + $0x4] sm:$0xf]
        %v2696 = vld [vmem:[#allocation2 + $0x8] sm:$0x1]
        %v2697 = vld [vmem:[#allocation2 + $0xc] sm:$0xe]
        %v2698 = vld [vmem:[#allocation2 + $0x10] sm:$0xf]
        %v2699 = vld [vmem:[#allocation2 + $0x14] sm:$0x1]
        %v2700 = vld [vmem:[#allocation2 + $0x18] sm:$0xe]
        %v2701 = vld [vmem:[#allocation2 + $0x1c] sm:$0xf]
        %v2702 = vld [vmem:[#allocation2 + $0x20] sm:$0x1]
        %v2703 = vld [vmem:[#allocation2 + $0x24] sm:$0xe]
        %v2704 = vld [vmem:[#allocation2 + $0x28] sm:$0xf]
        %v2705 = vld [vmem:[#allocation2 + $0x2c] sm:$0x1]
        %vm2718 = vcmask 1042432
        %vm2719 = vcmask 1046532
        %vm2720 = vmor %vm2718, %vm2719
        %v2721 = vrot.slane %v2694, 5
        %v2722 = vrot.slane %v2721, 4
        %v2723 = vrot.slane %v2695, 5
        %v2724 = vsel %vm2720, %v2722, %v2723
        %v2725 = vrot.slane %v2723, 4
        %v2726 = vrot.slane %v2696, 5
        %v2727 = vsel %vm2720, %v2725, %v2726
        %v2728 = vrot.slane %v2697, 5
        %v2729 = vrot.slane %v2728, 4
        %v2730 = vrot.slane %v2698, 5
        %v2731 = vsel %vm2720, %v2729, %v2730
        %v2732 = vrot.slane %v2730, 4
        %v2733 = vrot.slane %v2699, 5
        %v2734 = vsel %vm2720, %v2732, %v2733
        %v2735 = vrot.slane %v2700, 5
        %v2736 = vrot.slane %v2735, 4
        %v2737 = vrot.slane %v2701, 5
        %v2738 = vsel %vm2720, %v2736, %v2737
        %v2739 = vrot.slane %v2737, 4
        %v2740 = vrot.slane %v2702, 5
        %v2741 = vsel %vm2720, %v2739, %v2740
        %v2742 = vrot.slane %v2703, 5
        %v2743 = vrot.slane %v2742, 4
        %v2744 = vrot.slane %v2704, 5
        %v2745 = vsel %vm2720, %v2743, %v2744
        %v2746 = vrot.slane %v2744, 4
        %v2747 = vrot.slane %v2705, 5
        %v2748 = vsel %vm2720, %v2746, %v2747
        %v2751 = vpack.i.b16 %v2731, %v2724
        %v2752 = vshrl.u32 %v2724, 16
        %v2753 = vshrl.u32 %v2731, 16
        %v2754 = vpack.i.b16 %v2753, %v2752
        %v2757 = vpack.i.b16 %v2745, %v2738
        %v2758 = vshrl.u32 %v2738, 16
        %v2759 = vshrl.u32 %v2745, 16
        %v2760 = vpack.i.b16 %v2759, %v2758
        %v2763 = vpack.i.b16 %v2734, %v2727
        %v2764 = vshrl.u32 %v2727, 16
        %v2765 = vshrl.u32 %v2734, 16
        %v2766 = vpack.i.b16 %v2765, %v2764
        %v2769 = vpack.i.b16 %v2748, %v2741
        %v2770 = vshrl.u32 %v2741, 16
        %v2771 = vshrl.u32 %v2748, 16
        %v2772 = vpack.i.b16 %v2771, %v2770
        %v2775 = vunpack.c.l.s4 1983009808
        %v2776 = vunpack.c.0.s8 %v2775
        %v2777 = vlaneseq
        %v2778 = vshrl.u32 %v2777, 7
        %v2779 = vsub.s32 %v2776, %v2778
        %v2780 = vrot.slane %v2751, %v2779
        %v2783 = vunpack.c.l.s4 1983009808
        %v2784 = vunpack.c.0.s8 %v2783
        %v2785 = vlaneseq
        %v2786 = vshrl.u32 %v2785, 7
        %v2787 = vsub.s32 %v2784, %v2786
        %v2788 = vrot.slane %v2757, %v2787
        %v2789 = vcombine.low %v2780, %v2788
        %v2790 = vcombine.high %v2780, %v2788
        %v2792 = vunpack.c.l.s4 1934713408
        %v2793 = vunpack.c.0.s8 %v2792
        %v2794 = vlaneseq
        %v2795 = vshrl.u32 %v2794, 7
        %v2796 = vsub.s32 %v2793, %v2795
        %v2797 = vrot.slane %v2789, %v2796
        %v2799 = vunpack.c.l.s4 1934713408
        %v2800 = vunpack.c.0.s8 %v2799
        %v2801 = vlaneseq
        %v2802 = vshrl.u32 %v2801, 7
        %v2803 = vsub.s32 %v2800, %v2802
        %v2804 = vrot.slane %v2790, %v2803
        %v2805 = vcombine.high %v2797, 0
        %v2806 = vcombine.high %v2804, 0
        %v2809 = vunpack.c.l.s4 1983009808
        %v2810 = vunpack.c.0.s8 %v2809
        %v2811 = vlaneseq
        %v2812 = vshrl.u32 %v2811, 7
        %v2813 = vsub.s32 %v2810, %v2812
        %v2814 = vrot.slane %v2754, %v2813
        %v2817 = vunpack.c.l.s4 1983009808
        %v2818 = vunpack.c.0.s8 %v2817
        %v2819 = vlaneseq
        %v2820 = vshrl.u32 %v2819, 7
        %v2821 = vsub.s32 %v2818, %v2820
        %v2822 = vrot.slane %v2760, %v2821
        %v2823 = vcombine.low %v2814, %v2822
        %v2824 = vcombine.high %v2814, %v2822
        %v2826 = vunpack.c.l.s4 1934713408
        %v2827 = vunpack.c.0.s8 %v2826
        %v2828 = vlaneseq
        %v2829 = vshrl.u32 %v2828, 7
        %v2830 = vsub.s32 %v2827, %v2829
        %v2831 = vrot.slane %v2823, %v2830
        %v2833 = vunpack.c.l.s4 1934713408
        %v2834 = vunpack.c.0.s8 %v2833
        %v2835 = vlaneseq
        %v2836 = vshrl.u32 %v2835, 7
        %v2837 = vsub.s32 %v2834, %v2836
        %v2838 = vrot.slane %v2824, %v2837
        %v2839 = vcombine.high %v2831, 0
        %v2840 = vcombine.high %v2838, 0
        %v2843 = vunpack.c.l.s4 1983009808
        %v2844 = vunpack.c.0.s8 %v2843
        %v2845 = vlaneseq
        %v2846 = vshrl.u32 %v2845, 7
        %v2847 = vsub.s32 %v2844, %v2846
        %v2848 = vrot.slane %v2763, %v2847
        %v2851 = vunpack.c.l.s4 1983009808
        %v2852 = vunpack.c.0.s8 %v2851
        %v2853 = vlaneseq
        %v2854 = vshrl.u32 %v2853, 7
        %v2855 = vsub.s32 %v2852, %v2854
        %v2856 = vrot.slane %v2769, %v2855
        %v2857 = vcombine.low %v2848, %v2856
        %v2858 = vcombine.high %v2848, %v2856
        %v2860 = vunpack.c.l.s4 1934713408
        %v2861 = vunpack.c.0.s8 %v2860
        %v2862 = vlaneseq
        %v2863 = vshrl.u32 %v2862, 7
        %v2864 = vsub.s32 %v2861, %v2863
        %v2865 = vrot.slane %v2857, %v2864
        %v2867 = vunpack.c.l.s4 1934713408
        %v2868 = vunpack.c.0.s8 %v2867
        %v2869 = vlaneseq
        %v2870 = vshrl.u32 %v2869, 7
        %v2871 = vsub.s32 %v2868, %v2870
        %v2872 = vrot.slane %v2858, %v2871
        %v2873 = vcombine.high %v2865, 0
        %v2874 = vcombine.high %v2872, 0
        %v2877 = vunpack.c.l.s4 1983009808
        %v2878 = vunpack.c.0.s8 %v2877
        %v2879 = vlaneseq
        %v2880 = vshrl.u32 %v2879, 7
        %v2881 = vsub.s32 %v2878, %v2880
        %v2882 = vrot.slane %v2766, %v2881
        %v2885 = vunpack.c.l.s4 1983009808
        %v2886 = vunpack.c.0.s8 %v2885
        %v2887 = vlaneseq
        %v2888 = vshrl.u32 %v2887, 7
        %v2889 = vsub.s32 %v2886, %v2888
        %v2890 = vrot.slane %v2772, %v2889
        %v2891 = vcombine.low %v2882, %v2890
        %v2892 = vcombine.high %v2882, %v2890
        %v2894 = vunpack.c.l.s4 1934713408
        %v2895 = vunpack.c.0.s8 %v2894
        %v2896 = vlaneseq
        %v2897 = vshrl.u32 %v2896, 7
        %v2898 = vsub.s32 %v2895, %v2897
        %v2899 = vrot.slane %v2891, %v2898
        %v2901 = vunpack.c.l.s4 1934713408
        %v2902 = vunpack.c.0.s8 %v2901
        %v2903 = vlaneseq
        %v2904 = vshrl.u32 %v2903, 7
        %v2905 = vsub.s32 %v2902, %v2904
        %v2906 = vrot.slane %v2892, %v2905
        %v2907 = vcombine.high %v2899, 0
        %v2908 = vcombine.high %v2906, 0
        %v2910 = vunpack.c.l.b16 %v2831
        %v2911 = vpack.c.b16 %v2910, %v2910
        %2912 = vrot.lane.b32.xlu0 %v2911, 16
        %v2913 = vpop.permute.xlu0 %2912
        %v2915 = vunpack.c.l.b16 %v2805
        %v2916 = vpack.c.b16 %v2915, %v2915
        %2917 = vrot.lane.b32.xlu0 %v2916, 32
        %v2918 = vpop.permute.xlu0 %2917
        %v2920 = vunpack.c.l.b16 %v2839
        %v2921 = vpack.c.b16 %v2920, %v2920
        %2922 = vrot.lane.b32.xlu0 %v2921, 48
        %v2923 = vpop.permute.xlu0 %2922
        %v2925 = vunpack.c.l.b16 %v2804
        %v2926 = vpack.c.b16 %v2925, %v2925
        %2927 = vrot.lane.b32.xlu0 %v2926, 64
        %v2928 = vpop.permute.xlu0 %2927
        %v2930 = vunpack.c.l.b16 %v2838
        %v2931 = vpack.c.b16 %v2930, %v2930
        %2932 = vrot.lane.b32.xlu0 %v2931, 80
        %v2933 = vpop.permute.xlu0 %2932
        %v2935 = vunpack.c.l.b16 %v2806
        %v2936 = vpack.c.b16 %v2935, %v2935
        %2937 = vrot.lane.b32.xlu0 %v2936, 96
        %v2938 = vpop.permute.xlu0 %2937
        %v2940 = vunpack.c.l.b16 %v2840
        %v2941 = vpack.c.b16 %v2940, %v2940
        %2942 = vrot.lane.b32.xlu0 %v2941, 112
        %v2943 = vpop.permute.xlu0 %2942
        %v2945 = vunpack.c.l.b16 %v2899
        %v2946 = vpack.c.b16 %v2945, %v2945
        %2947 = vrot.lane.b32.xlu0 %v2946, 16
        %v2948 = vpop.permute.xlu0 %2947
        %v2950 = vunpack.c.l.b16 %v2873
        %v2951 = vpack.c.b16 %v2950, %v2950
        %2952 = vrot.lane.b32.xlu0 %v2951, 32
        %v2953 = vpop.permute.xlu0 %2952
        %v2955 = vunpack.c.l.b16 %v2907
        %v2956 = vpack.c.b16 %v2955, %v2955
        %2957 = vrot.lane.b32.xlu0 %v2956, 48
        %v2958 = vpop.permute.xlu0 %2957
        %v2960 = vunpack.c.l.b16 %v2872
        %v2961 = vpack.c.b16 %v2960, %v2960
        %2962 = vrot.lane.b32.xlu0 %v2961, 64
        %v2963 = vpop.permute.xlu0 %2962
        %v2965 = vunpack.c.l.b16 %v2906
        %v2966 = vpack.c.b16 %v2965, %v2965
        %2967 = vrot.lane.b32.xlu0 %v2966, 80
        %v2968 = vpop.permute.xlu0 %2967
        %v2970 = vunpack.c.l.b16 %v2874
        %v2971 = vpack.c.b16 %v2970, %v2970
        %2972 = vrot.lane.b32.xlu0 %v2971, 96
        %v2973 = vpop.permute.xlu0 %2972
        %v2975 = vunpack.c.l.b16 %v2908
        %v2976 = vpack.c.b16 %v2975, %v2975
        %2977 = vrot.lane.b32.xlu0 %v2976, 112
        %v2978 = vpop.permute.xlu0 %2977
        %v2981 = vsel %vm910, %v2797, %v2913
        %v2983 = vsel %vm914, %v2981, %v2918
        %v2985 = vsel %vm917, %v2983, %v2923
        %v2987 = vsel %vm920, %v2985, %v2928
        %v2989 = vsel %vm923, %v2987, %v2933
        %v2991 = vsel %vm926, %v2989, %v2938
        %v2993 = vsel %vm929, %v2991, %v2943
        %v2997 = vsel %vm910, %v2865, %v2948
        %v2999 = vsel %vm914, %v2997, %v2953
        %v3001 = vsel %vm917, %v2999, %v2958
        %v3003 = vsel %vm920, %v3001, %v2963
        %v3005 = vsel %vm923, %v3003, %v2968
        %v3007 = vsel %vm926, %v3005, %v2973
        %v3009 = vsel %vm929, %v3007, %v2978
        %3011 = vst [vmem:[#allocation3 + $0x60] sm:$0x3] %v2993
        %3012 = vst [vmem:[#allocation3 + $0x68] sm:$0x3] %v3009
        %v3013 = vld [vmem:[#allocation2] sm:$0xe]
        %v3014 = vld [vmem:[#allocation2 + $0x4] sm:$0xf]
        %v3015 = vld [vmem:[#allocation2 + $0x8] sm:$0x1]
        %v3016 = vld [vmem:[#allocation2 + $0xc] sm:$0xe]
        %v3017 = vld [vmem:[#allocation2 + $0x10] sm:$0xf]
        %v3018 = vld [vmem:[#allocation2 + $0x14] sm:$0x1]
        %v3019 = vld [vmem:[#allocation2 + $0x18] sm:$0xe]
        %v3020 = vld [vmem:[#allocation2 + $0x1c] sm:$0xf]
        %v3021 = vld [vmem:[#allocation2 + $0x20] sm:$0x1]
        %v3022 = vld [vmem:[#allocation2 + $0x24] sm:$0xe]
        %v3023 = vld [vmem:[#allocation2 + $0x28] sm:$0xf]
        %v3024 = vld [vmem:[#allocation2 + $0x2c] sm:$0x1]
        %v3037 = vrot.slane %v3013, 5
        %v3038 = vrot.slane %v3037, 4
        %v3039 = vrot.slane %v3014, 5
        %v3040 = vsel %vm2720, %v3038, %v3039
        %v3041 = vrot.slane %v3039, 4
        %v3042 = vrot.slane %v3015, 5
        %v3043 = vsel %vm2720, %v3041, %v3042
        %v3044 = vrot.slane %v3016, 5
        %v3045 = vrot.slane %v3044, 4
        %v3046 = vrot.slane %v3017, 5
        %v3047 = vsel %vm2720, %v3045, %v3046
        %v3048 = vrot.slane %v3046, 4
        %v3049 = vrot.slane %v3018, 5
        %v3050 = vsel %vm2720, %v3048, %v3049
        %v3051 = vrot.slane %v3019, 5
        %v3052 = vrot.slane %v3051, 4
        %v3053 = vrot.slane %v3020, 5
        %v3054 = vsel %vm2720, %v3052, %v3053
        %v3055 = vrot.slane %v3053, 4
        %v3056 = vrot.slane %v3021, 5
        %v3057 = vsel %vm2720, %v3055, %v3056
        %v3058 = vrot.slane %v3022, 5
        %v3059 = vrot.slane %v3058, 4
        %v3060 = vrot.slane %v3023, 5
        %v3061 = vsel %vm2720, %v3059, %v3060
        %v3062 = vrot.slane %v3060, 4
        %v3063 = vrot.slane %v3024, 5
        %v3064 = vsel %vm2720, %v3062, %v3063
        %3065 = vrot.lane.b32.xlu0 %v3040, 127
        %v3066 = vpop.permute.xlu0 %3065
        %3067 = vrot.lane.b32.xlu0 %v3043, 127
        %v3068 = vpop.permute.xlu0 %3067
        %3069 = vrot.lane.b32.xlu0 %v3047, 127
        %v3070 = vpop.permute.xlu0 %3069
        %3071 = vrot.lane.b32.xlu0 %v3050, 127
        %v3072 = vpop.permute.xlu0 %3071
        %3073 = vrot.lane.b32.xlu0 %v3054, 127
        %v3074 = vpop.permute.xlu0 %3073
        %3075 = vrot.lane.b32.xlu0 %v3057, 127
        %v3076 = vpop.permute.xlu0 %3075
        %3077 = vrot.lane.b32.xlu0 %v3061, 127
        %v3078 = vpop.permute.xlu0 %3077
        %3079 = vrot.lane.b32.xlu0 %v3064, 127
        %v3080 = vpop.permute.xlu0 %3079
        %v3083 = vpack.i.b16 %v3070, %v3066
        %v3084 = vshrl.u32 %v3066, 16
        %v3085 = vshrl.u32 %v3070, 16
        %v3086 = vpack.i.b16 %v3085, %v3084
        %v3089 = vpack.i.b16 %v3078, %v3074
        %v3090 = vshrl.u32 %v3074, 16
        %v3091 = vshrl.u32 %v3078, 16
        %v3092 = vpack.i.b16 %v3091, %v3090
        %v3095 = vpack.i.b16 %v3072, %v3068
        %v3096 = vshrl.u32 %v3068, 16
        %v3097 = vshrl.u32 %v3072, 16
        %v3098 = vpack.i.b16 %v3097, %v3096
        %v3101 = vpack.i.b16 %v3080, %v3076
        %v3102 = vshrl.u32 %v3076, 16
        %v3103 = vshrl.u32 %v3080, 16
        %v3104 = vpack.i.b16 %v3103, %v3102
        %v3107 = vunpack.c.l.s4 1983009808
        %v3108 = vunpack.c.0.s8 %v3107
        %v3109 = vlaneseq
        %v3110 = vshrl.u32 %v3109, 7
        %v3111 = vsub.s32 %v3108, %v3110
        %v3112 = vrot.slane %v3083, %v3111
        %v3115 = vunpack.c.l.s4 1983009808
        %v3116 = vunpack.c.0.s8 %v3115
        %v3117 = vlaneseq
        %v3118 = vshrl.u32 %v3117, 7
        %v3119 = vsub.s32 %v3116, %v3118
        %v3120 = vrot.slane %v3089, %v3119
        %v3121 = vcombine.low %v3112, %v3120
        %v3122 = vcombine.high %v3112, %v3120
        %v3124 = vunpack.c.l.s4 1934713408
        %v3125 = vunpack.c.0.s8 %v3124
        %v3126 = vlaneseq
        %v3127 = vshrl.u32 %v3126, 7
        %v3128 = vsub.s32 %v3125, %v3127
        %v3129 = vrot.slane %v3121, %v3128
        %v3131 = vunpack.c.l.s4 1934713408
        %v3132 = vunpack.c.0.s8 %v3131
        %v3133 = vlaneseq
        %v3134 = vshrl.u32 %v3133, 7
        %v3135 = vsub.s32 %v3132, %v3134
        %v3136 = vrot.slane %v3122, %v3135
        %v3137 = vcombine.high %v3129, 0
        %v3138 = vcombine.high %v3136, 0
        %v3141 = vunpack.c.l.s4 1983009808
        %v3142 = vunpack.c.0.s8 %v3141
        %v3143 = vlaneseq
        %v3144 = vshrl.u32 %v3143, 7
        %v3145 = vsub.s32 %v3142, %v3144
        %v3146 = vrot.slane %v3086, %v3145
        %v3149 = vunpack.c.l.s4 1983009808
        %v3150 = vunpack.c.0.s8 %v3149
        %v3151 = vlaneseq
        %v3152 = vshrl.u32 %v3151, 7
        %v3153 = vsub.s32 %v3150, %v3152
        %v3154 = vrot.slane %v3092, %v3153
        %v3155 = vcombine.low %v3146, %v3154
        %v3156 = vcombine.high %v3146, %v3154
        %v3158 = vunpack.c.l.s4 1934713408
        %v3159 = vunpack.c.0.s8 %v3158
        %v3160 = vlaneseq
        %v3161 = vshrl.u32 %v3160, 7
        %v3162 = vsub.s32 %v3159, %v3161
        %v3163 = vrot.slane %v3155, %v3162
        %v3165 = vunpack.c.l.s4 1934713408
        %v3166 = vunpack.c.0.s8 %v3165
        %v3167 = vlaneseq
        %v3168 = vshrl.u32 %v3167, 7
        %v3169 = vsub.s32 %v3166, %v3168
        %v3170 = vrot.slane %v3156, %v3169
        %v3171 = vcombine.high %v3163, 0
        %v3172 = vcombine.high %v3170, 0
        %v3175 = vunpack.c.l.s4 1983009808
        %v3176 = vunpack.c.0.s8 %v3175
        %v3177 = vlaneseq
        %v3178 = vshrl.u32 %v3177, 7
        %v3179 = vsub.s32 %v3176, %v3178
        %v3180 = vrot.slane %v3095, %v3179
        %v3183 = vunpack.c.l.s4 1983009808
        %v3184 = vunpack.c.0.s8 %v3183
        %v3185 = vlaneseq
        %v3186 = vshrl.u32 %v3185, 7
        %v3187 = vsub.s32 %v3184, %v3186
        %v3188 = vrot.slane %v3101, %v3187
        %v3189 = vcombine.low %v3180, %v3188
        %v3190 = vcombine.high %v3180, %v3188
        %v3192 = vunpack.c.l.s4 1934713408
        %v3193 = vunpack.c.0.s8 %v3192
        %v3194 = vlaneseq
        %v3195 = vshrl.u32 %v3194, 7
        %v3196 = vsub.s32 %v3193, %v3195
        %v3197 = vrot.slane %v3189, %v3196
        %v3199 = vunpack.c.l.s4 1934713408
        %v3200 = vunpack.c.0.s8 %v3199
        %v3201 = vlaneseq
        %v3202 = vshrl.u32 %v3201, 7
        %v3203 = vsub.s32 %v3200, %v3202
        %v3204 = vrot.slane %v3190, %v3203
        %v3205 = vcombine.high %v3197, 0
        %v3206 = vcombine.high %v3204, 0
        %v3209 = vunpack.c.l.s4 1983009808
        %v3210 = vunpack.c.0.s8 %v3209
        %v3211 = vlaneseq
        %v3212 = vshrl.u32 %v3211, 7
        %v3213 = vsub.s32 %v3210, %v3212
        %v3214 = vrot.slane %v3098, %v3213
        %v3217 = vunpack.c.l.s4 1983009808
        %v3218 = vunpack.c.0.s8 %v3217
        %v3219 = vlaneseq
        %v3220 = vshrl.u32 %v3219, 7
        %v3221 = vsub.s32 %v3218, %v3220
        %v3222 = vrot.slane %v3104, %v3221
        %v3223 = vcombine.low %v3214, %v3222
        %v3224 = vcombine.high %v3214, %v3222
        %v3226 = vunpack.c.l.s4 1934713408
        %v3227 = vunpack.c.0.s8 %v3226
        %v3228 = vlaneseq
        %v3229 = vshrl.u32 %v3228, 7
        %v3230 = vsub.s32 %v3227, %v3229
        %v3231 = vrot.slane %v3223, %v3230
        %v3233 = vunpack.c.l.s4 1934713408
        %v3234 = vunpack.c.0.s8 %v3233
        %v3235 = vlaneseq
        %v3236 = vshrl.u32 %v3235, 7
        %v3237 = vsub.s32 %v3234, %v3236
        %v3238 = vrot.slane %v3224, %v3237
        %v3239 = vcombine.high %v3231, 0
        %v3240 = vcombine.high %v3238, 0
        %v3242 = vunpack.c.l.b16 %v3163
        %v3243 = vpack.c.b16 %v3242, %v3242
        %3244 = vrot.lane.b32.xlu0 %v3243, 16
        %v3245 = vpop.permute.xlu0 %3244
        %v3247 = vunpack.c.l.b16 %v3137
        %v3248 = vpack.c.b16 %v3247, %v3247
        %3249 = vrot.lane.b32.xlu0 %v3248, 32
        %v3250 = vpop.permute.xlu0 %3249
        %v3252 = vunpack.c.l.b16 %v3171
        %v3253 = vpack.c.b16 %v3252, %v3252
        %3254 = vrot.lane.b32.xlu0 %v3253, 48
        %v3255 = vpop.permute.xlu0 %3254
        %v3257 = vunpack.c.l.b16 %v3136
        %v3258 = vpack.c.b16 %v3257, %v3257
        %3259 = vrot.lane.b32.xlu0 %v3258, 64
        %v3260 = vpop.permute.xlu0 %3259
        %v3262 = vunpack.c.l.b16 %v3170
        %v3263 = vpack.c.b16 %v3262, %v3262
        %3264 = vrot.lane.b32.xlu0 %v3263, 80
        %v3265 = vpop.permute.xlu0 %3264
        %v3267 = vunpack.c.l.b16 %v3138
        %v3268 = vpack.c.b16 %v3267, %v3267
        %3269 = vrot.lane.b32.xlu0 %v3268, 96
        %v3270 = vpop.permute.xlu0 %3269
        %v3272 = vunpack.c.l.b16 %v3172
        %v3273 = vpack.c.b16 %v3272, %v3272
        %3274 = vrot.lane.b32.xlu0 %v3273, 112
        %v3275 = vpop.permute.xlu0 %3274
        %v3277 = vunpack.c.l.b16 %v3231
        %v3278 = vpack.c.b16 %v3277, %v3277
        %3279 = vrot.lane.b32.xlu0 %v3278, 16
        %v3280 = vpop.permute.xlu0 %3279
        %v3282 = vunpack.c.l.b16 %v3205
        %v3283 = vpack.c.b16 %v3282, %v3282
        %3284 = vrot.lane.b32.xlu0 %v3283, 32
        %v3285 = vpop.permute.xlu0 %3284
        %v3287 = vunpack.c.l.b16 %v3239
        %v3288 = vpack.c.b16 %v3287, %v3287
        %3289 = vrot.lane.b32.xlu0 %v3288, 48
        %v3290 = vpop.permute.xlu0 %3289
        %v3292 = vunpack.c.l.b16 %v3204
        %v3293 = vpack.c.b16 %v3292, %v3292
        %3294 = vrot.lane.b32.xlu0 %v3293, 64
        %v3295 = vpop.permute.xlu0 %3294
        %v3297 = vunpack.c.l.b16 %v3238
        %v3298 = vpack.c.b16 %v3297, %v3297
        %3299 = vrot.lane.b32.xlu0 %v3298, 80
        %v3300 = vpop.permute.xlu0 %3299
        %v3302 = vunpack.c.l.b16 %v3206
        %v3303 = vpack.c.b16 %v3302, %v3302
        %3304 = vrot.lane.b32.xlu0 %v3303, 96
        %v3305 = vpop.permute.xlu0 %3304
        %v3307 = vunpack.c.l.b16 %v3240
        %v3308 = vpack.c.b16 %v3307, %v3307
        %3309 = vrot.lane.b32.xlu0 %v3308, 112
        %v3310 = vpop.permute.xlu0 %3309
        %v3313 = vsel %vm910, %v3129, %v3245
        %v3315 = vsel %vm914, %v3313, %v3250
        %v3317 = vsel %vm917, %v3315, %v3255
        %v3319 = vsel %vm920, %v3317, %v3260
        %v3321 = vsel %vm923, %v3319, %v3265
        %v3323 = vsel %vm926, %v3321, %v3270
        %v3325 = vsel %vm929, %v3323, %v3275
        %v3329 = vsel %vm910, %v3197, %v3280
        %v3331 = vsel %vm914, %v3329, %v3285
        %v3333 = vsel %vm917, %v3331, %v3290
        %v3335 = vsel %vm920, %v3333, %v3295
        %v3337 = vsel %vm923, %v3335, %v3300
        %v3339 = vsel %vm926, %v3337, %v3305
        %v3341 = vsel %vm929, %v3339, %v3310
        %3343 = vst [vmem:[#allocation3 + $0x70] sm:$0x3] %v3325
        %3344 = vst [vmem:[#allocation3 + $0x78] sm:$0x3] %v3341
        %v3345 = vld [vmem:[#allocation2] sm:$0xe]
        %v3346 = vld [vmem:[#allocation2 + $0x4] sm:$0xf]
        %v3347 = vld [vmem:[#allocation2 + $0x8] sm:$0x1]
        %v3348 = vld [vmem:[#allocation2 + $0xc] sm:$0xe]
        %v3349 = vld [vmem:[#allocation2 + $0x10] sm:$0xf]
        %v3350 = vld [vmem:[#allocation2 + $0x14] sm:$0x1]
        %v3351 = vld [vmem:[#allocation2 + $0x18] sm:$0xe]
        %v3352 = vld [vmem:[#allocation2 + $0x1c] sm:$0xf]
        %v3353 = vld [vmem:[#allocation2 + $0x20] sm:$0x1]
        %v3354 = vld [vmem:[#allocation2 + $0x24] sm:$0xe]
        %v3355 = vld [vmem:[#allocation2 + $0x28] sm:$0xf]
        %v3356 = vld [vmem:[#allocation2 + $0x2c] sm:$0x1]
        %v3369 = vrot.slane %v3345, 5
        %v3370 = vrot.slane %v3369, 4
        %v3371 = vrot.slane %v3346, 5
        %v3372 = vsel %vm2720, %v3370, %v3371
        %v3373 = vrot.slane %v3371, 4
        %v3374 = vrot.slane %v3347, 5
        %v3375 = vsel %vm2720, %v3373, %v3374
        %v3376 = vrot.slane %v3348, 5
        %v3377 = vrot.slane %v3376, 4
        %v3378 = vrot.slane %v3349, 5
        %v3379 = vsel %vm2720, %v3377, %v3378
        %v3380 = vrot.slane %v3378, 4
        %v3381 = vrot.slane %v3350, 5
        %v3382 = vsel %vm2720, %v3380, %v3381
        %v3383 = vrot.slane %v3351, 5
        %v3384 = vrot.slane %v3383, 4
        %v3385 = vrot.slane %v3352, 5
        %v3386 = vsel %vm2720, %v3384, %v3385
        %v3387 = vrot.slane %v3385, 4
        %v3388 = vrot.slane %v3353, 5
        %v3389 = vsel %vm2720, %v3387, %v3388
        %v3390 = vrot.slane %v3354, 5
        %v3391 = vrot.slane %v3390, 4
        %v3392 = vrot.slane %v3355, 5
        %v3393 = vsel %vm2720, %v3391, %v3392
        %v3394 = vrot.slane %v3392, 4
        %v3395 = vrot.slane %v3356, 5
        %v3396 = vsel %vm2720, %v3394, %v3395
        %3397 = vrot.lane.b32.xlu0 %v3372, 126
        %v3398 = vpop.permute.xlu0 %3397
        %3399 = vrot.lane.b32.xlu0 %v3375, 126
        %v3400 = vpop.permute.xlu0 %3399
        %3401 = vrot.lane.b32.xlu0 %v3379, 126
        %v3402 = vpop.permute.xlu0 %3401
        %3403 = vrot.lane.b32.xlu0 %v3382, 126
        %v3404 = vpop.permute.xlu0 %3403
        %3405 = vrot.lane.b32.xlu0 %v3386, 126
        %v3406 = vpop.permute.xlu0 %3405
        %3407 = vrot.lane.b32.xlu0 %v3389, 126
        %v3408 = vpop.permute.xlu0 %3407
        %3409 = vrot.lane.b32.xlu0 %v3393, 126
        %v3410 = vpop.permute.xlu0 %3409
        %3411 = vrot.lane.b32.xlu0 %v3396, 126
        %v3412 = vpop.permute.xlu0 %3411
        %v3415 = vpack.i.b16 %v3402, %v3398
        %v3416 = vshrl.u32 %v3398, 16
        %v3417 = vshrl.u32 %v3402, 16
        %v3418 = vpack.i.b16 %v3417, %v3416
        %v3421 = vpack.i.b16 %v3410, %v3406
        %v3422 = vshrl.u32 %v3406, 16
        %v3423 = vshrl.u32 %v3410, 16
        %v3424 = vpack.i.b16 %v3423, %v3422
        %v3427 = vpack.i.b16 %v3404, %v3400
        %v3428 = vshrl.u32 %v3400, 16
        %v3429 = vshrl.u32 %v3404, 16
        %v3430 = vpack.i.b16 %v3429, %v3428
        %v3433 = vpack.i.b16 %v3412, %v3408
        %v3434 = vshrl.u32 %v3408, 16
        %v3435 = vshrl.u32 %v3412, 16
        %v3436 = vpack.i.b16 %v3435, %v3434
        %v3439 = vunpack.c.l.s4 1983009808
        %v3440 = vunpack.c.0.s8 %v3439
        %v3441 = vlaneseq
        %v3442 = vshrl.u32 %v3441, 7
        %v3443 = vsub.s32 %v3440, %v3442
        %v3444 = vrot.slane %v3415, %v3443
        %v3447 = vunpack.c.l.s4 1983009808
        %v3448 = vunpack.c.0.s8 %v3447
        %v3449 = vlaneseq
        %v3450 = vshrl.u32 %v3449, 7
        %v3451 = vsub.s32 %v3448, %v3450
        %v3452 = vrot.slane %v3421, %v3451
        %v3453 = vcombine.low %v3444, %v3452
        %v3454 = vcombine.high %v3444, %v3452
        %v3456 = vunpack.c.l.s4 1934713408
        %v3457 = vunpack.c.0.s8 %v3456
        %v3458 = vlaneseq
        %v3459 = vshrl.u32 %v3458, 7
        %v3460 = vsub.s32 %v3457, %v3459
        %v3461 = vrot.slane %v3453, %v3460
        %v3463 = vunpack.c.l.s4 1934713408
        %v3464 = vunpack.c.0.s8 %v3463
        %v3465 = vlaneseq
        %v3466 = vshrl.u32 %v3465, 7
        %v3467 = vsub.s32 %v3464, %v3466
        %v3468 = vrot.slane %v3454, %v3467
        %v3469 = vcombine.high %v3461, 0
        %v3470 = vcombine.high %v3468, 0
        %v3473 = vunpack.c.l.s4 1983009808
        %v3474 = vunpack.c.0.s8 %v3473
        %v3475 = vlaneseq
        %v3476 = vshrl.u32 %v3475, 7
        %v3477 = vsub.s32 %v3474, %v3476
        %v3478 = vrot.slane %v3418, %v3477
        %v3481 = vunpack.c.l.s4 1983009808
        %v3482 = vunpack.c.0.s8 %v3481
        %v3483 = vlaneseq
        %v3484 = vshrl.u32 %v3483, 7
        %v3485 = vsub.s32 %v3482, %v3484
        %v3486 = vrot.slane %v3424, %v3485
        %v3487 = vcombine.low %v3478, %v3486
        %v3488 = vcombine.high %v3478, %v3486
        %v3490 = vunpack.c.l.s4 1934713408
        %v3491 = vunpack.c.0.s8 %v3490
        %v3492 = vlaneseq
        %v3493 = vshrl.u32 %v3492, 7
        %v3494 = vsub.s32 %v3491, %v3493
        %v3495 = vrot.slane %v3487, %v3494
        %v3497 = vunpack.c.l.s4 1934713408
        %v3498 = vunpack.c.0.s8 %v3497
        %v3499 = vlaneseq
        %v3500 = vshrl.u32 %v3499, 7
        %v3501 = vsub.s32 %v3498, %v3500
        %v3502 = vrot.slane %v3488, %v3501
        %v3503 = vcombine.high %v3495, 0
        %v3504 = vcombine.high %v3502, 0
        %v3507 = vunpack.c.l.s4 1983009808
        %v3508 = vunpack.c.0.s8 %v3507
        %v3509 = vlaneseq
        %v3510 = vshrl.u32 %v3509, 7
        %v3511 = vsub.s32 %v3508, %v3510
        %v3512 = vrot.slane %v3427, %v3511
        %v3515 = vunpack.c.l.s4 1983009808
        %v3516 = vunpack.c.0.s8 %v3515
        %v3517 = vlaneseq
        %v3518 = vshrl.u32 %v3517, 7
        %v3519 = vsub.s32 %v3516, %v3518
        %v3520 = vrot.slane %v3433, %v3519
        %v3521 = vcombine.low %v3512, %v3520
        %v3522 = vcombine.high %v3512, %v3520
        %v3524 = vunpack.c.l.s4 1934713408
        %v3525 = vunpack.c.0.s8 %v3524
        %v3526 = vlaneseq
        %v3527 = vshrl.u32 %v3526, 7
        %v3528 = vsub.s32 %v3525, %v3527
        %v3529 = vrot.slane %v3521, %v3528
        %v3531 = vunpack.c.l.s4 1934713408
        %v3532 = vunpack.c.0.s8 %v3531
        %v3533 = vlaneseq
        %v3534 = vshrl.u32 %v3533, 7
        %v3535 = vsub.s32 %v3532, %v3534
        %v3536 = vrot.slane %v3522, %v3535
        %v3537 = vcombine.high %v3529, 0
        %v3538 = vcombine.high %v3536, 0
        %v3541 = vunpack.c.l.s4 1983009808
        %v3542 = vunpack.c.0.s8 %v3541
        %v3543 = vlaneseq
        %v3544 = vshrl.u32 %v3543, 7
        %v3545 = vsub.s32 %v3542, %v3544
        %v3546 = vrot.slane %v3430, %v3545
        %v3549 = vunpack.c.l.s4 1983009808
        %v3550 = vunpack.c.0.s8 %v3549
        %v3551 = vlaneseq
        %v3552 = vshrl.u32 %v3551, 7
        %v3553 = vsub.s32 %v3550, %v3552
        %v3554 = vrot.slane %v3436, %v3553
        %v3555 = vcombine.low %v3546, %v3554
        %v3556 = vcombine.high %v3546, %v3554
        %v3558 = vunpack.c.l.s4 1934713408
        %v3559 = vunpack.c.0.s8 %v3558
        %v3560 = vlaneseq
        %v3561 = vshrl.u32 %v3560, 7
        %v3562 = vsub.s32 %v3559, %v3561
        %v3563 = vrot.slane %v3555, %v3562
        %v3565 = vunpack.c.l.s4 1934713408
        %v3566 = vunpack.c.0.s8 %v3565
        %v3567 = vlaneseq
        %v3568 = vshrl.u32 %v3567, 7
        %v3569 = vsub.s32 %v3566, %v3568
        %v3570 = vrot.slane %v3556, %v3569
        %v3571 = vcombine.high %v3563, 0
        %v3572 = vcombine.high %v3570, 0
        %v3574 = vunpack.c.l.b16 %v3495
        %v3575 = vpack.c.b16 %v3574, %v3574
        %3576 = vrot.lane.b32.xlu0 %v3575, 16
        %v3577 = vpop.permute.xlu0 %3576
        %v3579 = vunpack.c.l.b16 %v3469
        %v3580 = vpack.c.b16 %v3579, %v3579
        %3581 = vrot.lane.b32.xlu0 %v3580, 32
        %v3582 = vpop.permute.xlu0 %3581
        %v3584 = vunpack.c.l.b16 %v3503
        %v3585 = vpack.c.b16 %v3584, %v3584
        %3586 = vrot.lane.b32.xlu0 %v3585, 48
        %v3587 = vpop.permute.xlu0 %3586
        %v3589 = vunpack.c.l.b16 %v3468
        %v3590 = vpack.c.b16 %v3589, %v3589
        %3591 = vrot.lane.b32.xlu0 %v3590, 64
        %v3592 = vpop.permute.xlu0 %3591
        %v3594 = vunpack.c.l.b16 %v3502
        %v3595 = vpack.c.b16 %v3594, %v3594
        %3596 = vrot.lane.b32.xlu0 %v3595, 80
        %v3597 = vpop.permute.xlu0 %3596
        %v3599 = vunpack.c.l.b16 %v3470
        %v3600 = vpack.c.b16 %v3599, %v3599
        %3601 = vrot.lane.b32.xlu0 %v3600, 96
        %v3602 = vpop.permute.xlu0 %3601
        %v3604 = vunpack.c.l.b16 %v3504
        %v3605 = vpack.c.b16 %v3604, %v3604
        %3606 = vrot.lane.b32.xlu0 %v3605, 112
        %v3607 = vpop.permute.xlu0 %3606
        %v3609 = vunpack.c.l.b16 %v3563
        %v3610 = vpack.c.b16 %v3609, %v3609
        %3611 = vrot.lane.b32.xlu0 %v3610, 16
        %v3612 = vpop.permute.xlu0 %3611
        %v3614 = vunpack.c.l.b16 %v3537
        %v3615 = vpack.c.b16 %v3614, %v3614
        %3616 = vrot.lane.b32.xlu0 %v3615, 32
        %v3617 = vpop.permute.xlu0 %3616
        %v3619 = vunpack.c.l.b16 %v3571
        %v3620 = vpack.c.b16 %v3619, %v3619
        %3621 = vrot.lane.b32.xlu0 %v3620, 48
        %v3622 = vpop.permute.xlu0 %3621
        %v3624 = vunpack.c.l.b16 %v3536
        %v3625 = vpack.c.b16 %v3624, %v3624
        %3626 = vrot.lane.b32.xlu0 %v3625, 64
        %v3627 = vpop.permute.xlu0 %3626
        %v3629 = vunpack.c.l.b16 %v3570
        %v3630 = vpack.c.b16 %v3629, %v3629
        %3631 = vrot.lane.b32.xlu0 %v3630, 80
        %v3632 = vpop.permute.xlu0 %3631
        %v3634 = vunpack.c.l.b16 %v3538
        %v3635 = vpack.c.b16 %v3634, %v3634
        %3636 = vrot.lane.b32.xlu0 %v3635, 96
        %v3637 = vpop.permute.xlu0 %3636
        %v3639 = vunpack.c.l.b16 %v3572
        %v3640 = vpack.c.b16 %v3639, %v3639
        %3641 = vrot.lane.b32.xlu0 %v3640, 112
        %v3642 = vpop.permute.xlu0 %3641
        %v3645 = vsel %vm910, %v3461, %v3577
        %v3647 = vsel %vm914, %v3645, %v3582
        %v3649 = vsel %vm917, %v3647, %v3587
        %v3651 = vsel %vm920, %v3649, %v3592
        %v3653 = vsel %vm923, %v3651, %v3597
        %v3655 = vsel %vm926, %v3653, %v3602
        %v3657 = vsel %vm929, %v3655, %v3607
        %v3661 = vsel %vm910, %v3529, %v3612
        %v3663 = vsel %vm914, %v3661, %v3617
        %v3665 = vsel %vm917, %v3663, %v3622
        %v3667 = vsel %vm920, %v3665, %v3627
        %v3669 = vsel %vm923, %v3667, %v3632
        %v3671 = vsel %vm926, %v3669, %v3637
        %v3673 = vsel %vm929, %v3671, %v3642
        %3675 = vst [vmem:[#allocation3 + $0x80] sm:$0x3] %v3657
        %3676 = vst [vmem:[#allocation3 + $0x88] sm:$0x3] %v3673
        %v3677 = vld [vmem:[#allocation7] sm:$0xf]
        %v3678 = vld [vmem:[#allocation3] sm:$0xff]
        %v3679 = vld [vmem:[#allocation3 + $0x8] sm:$0xff]
        %v3680 = vld [vmem:[#allocation3 + $0x10] sm:$0xff]
        %v3681 = vld [vmem:[#allocation3 + $0x18] sm:$0xff]
        %v3682 = vld [vmem:[#allocation3 + $0x20] sm:$0xff]
        %v3683 = vld [vmem:[#allocation3 + $0x28] sm:$0xff]
        %v3684 = vld [vmem:[#allocation3 + $0x30] sm:$0xff]
        %v3685 = vld [vmem:[#allocation3 + $0x38] sm:$0xff]
        %v3686 = vld [vmem:[#allocation3 + $0x40] sm:$0xff]
        %v3687 = vld [vmem:[#allocation3 + $0x48] sm:$0xff]
        %v3688 = vld [vmem:[#allocation3 + $0x50] sm:$0xff]
        %v3689 = vld [vmem:[#allocation3 + $0x58] sm:$0xff]
        %v3690 = vld [vmem:[#allocation3 + $0x60] sm:$0xff]
        %v3691 = vld [vmem:[#allocation3 + $0x68] sm:$0xff]
        %v3692 = vld [vmem:[#allocation3 + $0x70] sm:$0xff]
        %v3693 = vld [vmem:[#allocation3 + $0x78] sm:$0xff]
        %v3694 = vld [vmem:[#allocation3 + $0x80] sm:$0xff]
        %v3695 = vld [vmem:[#allocation3 + $0x88] sm:$0xff]
        %v3698 = vunpack.c.l.s4 1983009808
        %v3699 = vunpack.c.0.s8 %v3698
        %v3700 = vlaneseq
        %v3701 = vshrl.u32 %v3700, 7
        %v3702 = vsub.s32 %v3699, %v3701
        %v3703 = vrot.slane %v3677, %v3702
        %v3704 = vcombine.high %v3703, %v3703
        %v3707 = vsel %vm910, %v3704, 0
        %3709 = vmatprep.subr.bf16.mxu0 %v3679
        %3710 = vmatpush1.bf16.msra.mxu0 %v3678
        %3711 = vmatprep.subr.bf16.mxu0 %v3681
        %3712 = vmatpush1.bf16.msra.mxu0 %v3680
        %3713 = vmatprep.subr.bf16.mxu0 %v3683
        %3714 = vmatpush1.bf16.msra.mxu0 %v3682
        %3715 = vmatprep.subr.bf16.mxu0 %v3685
        %3716 = vmatpush1.bf16.msra.mxu0 %v3684
        %3717 = vmatprep.subr.bf16.mxu0 %v3687
        %3718 = vmatpush1.bf16.msra.mxu0 %v3686
        %3719 = vmatprep.subr.bf16.mxu0 %v3689
        %3720 = vmatpush1.bf16.msra.mxu0 %v3688
        %3721 = vmatprep.subr.bf16.mxu0 %v3691
        %3722 = vmatpush1.bf16.msra.mxu0 %v3690
        %3723 = vmatprep.subr.bf16.mxu0 %v3693
        %3724 = vmatpush1.bf16.msra.mxu0 %v3692
        %3725 = vmatprep.subr.bf16.mxu0 %v3695
        %3726 = vmatpush1.bf16.msra.mxu0 %v3694
        %3727 = vmatprep.subr.bf16.mxu0 0
        %3728 = vmatpush1.bf16.msra.mxu0 0
        %3729 = vmatprep.subr.bf16.mxu0 0
        %3730 = vmatpush1.bf16.msra.mxu0 0
        %3731 = vmatprep.subr.bf16.mxu0 0
        %3732 = vmatpush1.bf16.msra.mxu0 0
        %3733 = vmatprep.subr.bf16.mxu0 0
        %3734 = vmatpush1.bf16.msra.mxu0 0
        %3735 = vmatprep.subr.bf16.mxu0 0
        %3736 = vmatpush1.bf16.msra.mxu0 0
        %3737 = vmatprep.subr.bf16.mxu0 0
        %3738 = vmatpush1.bf16.msra.mxu0 0
        %3739 = vmatprep.subr.bf16.mxu0 0
        %3740 = vmatpush1.bf16.msra.mxu0 0
        %3741 = vmatprep.mubr.bf16.mxu0 %v3707
        %3742 = vmatmul.mubr.bf16.gmra.mrb[0].mxu0 %v3703
        %v3743 = vpop.f32.mrb[0].mxu0
        %v3744 = vadd.f32 0.0, %v3743
        %v3745 = vpop.f32.mrb[0].mxu0
        %v3746 = vadd.f32 0.0, %v3745
        %v3747 = vpop.f32.mrb[0].mxu0
        %v3748 = vpop.f32.mrb[0].mxu0
        %3749 = vdwg.mxu0
        %v3750 = vpack.c.bf16 %v3744, %v3744
        %v3751 = vpack.c.bf16 %v3746, %v3746
        %v3754 = vcombine.low %v3750, %v3751
        %v3756 = vunpack.c.l.s4 1983009808
        %v3757 = vunpack.c.0.s8 %v3756
        %v3758 = vlaneseq
        %v3759 = vshrl.u32 %v3758, 7
        %v3760 = vsub.s32 %v3757, %v3759
        %v3761 = vrot.slane %v3754, %v3760
        %3763 = vst [vmem:[%s282] sm:$0xf] %v3761
        %vm3764 = vcmask 1043456
        %v3765 = vsel %vm3764, %v3744, 0.0
        %v3766 = vsel %vm3764, %v3746, 0.0
        %v3767 = vadd.f32 %v3765, %v3766
        %3768 = vadd.xlane.f32.xlu0 %v3767
        %v3769 = vpop.xlane.xlu0 %3768
        %vm3770 = vcmask 3072
        %3771 = vst.msk [vmem:[%s289] sm:$0xf] %vm3770, %v3769
        %v3772 = vmul.f32 %v3744, %v3744
        %v3773 = vmul.f32 %v3746, %v3746
        %v3774 = vsel %vm3764, %v3772, 0.0
        %v3775 = vsel %vm3764, %v3773, 0.0
        %v3776 = vadd.f32 %v3774, %v3775
        %3777 = vadd.xlane.f32.xlu0 %v3776
        %v3778 = vpop.xlane.xlu0 %3777
        %vm3779 = vcmask 11272
        %3780 = vst.msk [vmem:[%s289] sm:$0xf] %vm3779, %v3778
        %s3781 = sand.u32 %s125, 1
        %s3782 = scalar_lea.sflag [#allocation6], %s3781
        %s3783 = sand.u32 %s125, 1
        %s3784 = smul.addr %s3783, 4
        %s3785 = scalar_lea.vmem [#allocation12], %s3784
        %s3786 = sand.u32 %s151, 1
        %s3787 = scalar_lea.sflag [#allocation14], %s3786
        %s3788 = sand.u32 %s151, 1
        %s3789 = smul.addr %s3788, 4
        %s3790 = scalar_lea.vmem [#allocation13], %s3789
        // Predicated region
        $region53: #{regular_bottleneck_forward.5} parent=35 // pred_check
          %p3791 = pneg %p135
        $region54: #{regular_bottleneck_forward.5} parent=35 // pred_check_branch
          %3793 = sbr.rel (%p3791) target = $region56
        $region55: #{regular_bottleneck_forward.5} parent=35 // pred_region
          %s3795 = ssub.s32 64, 64
          %3796 = vsyncadd %s3782, %s3795
          %s3797 = smul.addr %s28, 2
          %s3798 = smul.addr %s3797, 32
          %s3799 = scalar_lea.hbm %s4, %s3798
          %s3801 = sshll.u32 %s3785, 4
          %s3802 = int_to_ptr.vmem [resolvable:$true] %s3801
          %3804 = dma.vmem_to_hbm [thread:$0]  %s3802, 64, %s3799, %s3782
        $region56: #{regular_bottleneck_forward.5} parent=35 // pred_fallthru
          _
        // Predicated region
        $region57: #{regular_bottleneck_forward.5} parent=35 // pred_check
          %p3805 = pneg %p161
        $region58: #{regular_bottleneck_forward.5} parent=35 // pred_check_branch
          %3807 = sbr.rel (%p3805) target = $region60
        $region59: #{regular_bottleneck_forward.5} parent=35 // pred_region
          %s3809 = ssub.s32 64, 64
          %3810 = vsyncadd %s3787, %s3809
          %s3811 = smul.addr %s28, 64
          %s3812 = scalar_lea.hbm %s5, %s3811
          %s3814 = sshll.u32 %s3790, 4
          %s3815 = int_to_ptr.vmem [resolvable:$true] %s3814
          %3817 = dma.vmem_to_hbm [thread:$0]  %s3815, 64, %s3812, %s3787
        $region60: #{regular_bottleneck_forward.5} parent=35 // pred_fallthru
          _
      $region36: #{regular_bottleneck_forward.5} parent=5 // pred_fallthru
        _
      %p3818 = scmp.le.s32.totalorder 2, %s23
      // Predicated region
      $region61: #{regular_bottleneck_forward.5} parent=5 // pred_check
        %p3819 = pneg %p3818
      $region62: #{regular_bottleneck_forward.5} parent=5 // pred_check_branch
        %3821 = sbr.rel (%p3819) target = $region64
      $region63: #{regular_bottleneck_forward.5} parent=5 // pred_region
        %s3822 = ssub.s32 %s23, 2
        // Predicated region
        $region65: #{regular_bottleneck_forward.5} parent=63 // pred_check
          %p3823 = pneg %p141
        $region66: #{regular_bottleneck_forward.5} parent=63 // pred_check_branch
          %3825 = sbr.rel (%p3823) target = $region68
        $region67: #{regular_bottleneck_forward.5} parent=63 // pred_region
          %s3826 = sand.u32 %s126, 1
          %s3827 = scalar_lea.sflag [#allocation6], %s3826
          %s3828 = sand.u32 %s126, 1
          %s3829 = smul.addr %s3828, 4
          %s3830 = scalar_lea.vmem [#allocation12], %s3829
          %3831 = dma.done %s3827, 64
        $region68: #{regular_bottleneck_forward.5} parent=63 // pred_fallthru
          _
        // Predicated region
        $region69: #{regular_bottleneck_forward.5} parent=63 // pred_check
          %p3832 = pneg %p167
        $region70: #{regular_bottleneck_forward.5} parent=63 // pred_check_branch
          %3834 = sbr.rel (%p3832) target = $region72
        $region71: #{regular_bottleneck_forward.5} parent=63 // pred_region
          %s3835 = sand.u32 %s152, 1
          %s3836 = scalar_lea.sflag [#allocation14], %s3835
          %s3837 = sand.u32 %s152, 1
          %s3838 = smul.addr %s3837, 4
          %s3839 = scalar_lea.vmem [#allocation13], %s3838
          %3840 = dma.done %s3836, 64
        $region72: #{regular_bottleneck_forward.5} parent=63 // pred_fallthru
          _
      $region64: #{regular_bottleneck_forward.5} parent=5 // pred_fallthru
        _
    $region6: #{regular_bottleneck_forward.5} parent=1 // loop_footer
      %s27 = sadd.s32 1, %s23
    $region7: #{regular_bottleneck_forward.5} parent=1 // loop_footer_branch
      %22 = sbr.rel target = $region3
    $region8: #{regular_bottleneck_forward.5} parent=1 // loop_exit
      _
    %3841 = vsyncpa [#allocation5], 1
    %s3842 = scalar_lea.sflag [#allocation5], 1
    %3843 = vsyncpa %s3842, 1
    %3844 = vsyncpa [#allocation8], 1
    %3845 = vsyncpa [#allocation11], 1
    %3846 = vsyncpa [#allocation6], 1
    %s3847 = scalar_lea.sflag [#allocation6], 1
    %3848 = vsyncpa %s3847, 1
    %3849 = vsyncpa [#allocation14], 1
    %s3850 = scalar_lea.sflag [#allocation14], 1
    %3851 = vsyncpa %s3850, 1

</llo_original>
